<compile_context>
chip_gen: v5e
topology: v5e:2x2
jax: 0.10.0
libtpu: 0.0.40
codegen_flags: <defaults>
</compile_context>

<pallas_src>
from functools import partial

import jax
import jax.numpy as jnp
from jax.experimental import pallas as pl
from jax.experimental.pallas import tpu as pltpu

EMB = 128      # embedding_dim (forced by embeds.view(1, 1, 128))
HID = 128      # hidden_dim    (forced by lstm_out.view(1, 128))
VOCAB = 256    # vocab_size    (free parameter; lane-friendly)


def lstm_seq_kernel(x_ref,          # (T_pad, EMB)     bf16  gathered embedding rows
                    w_ih_ref,       # (EMB, 4*HID)     bf16  W_ih^T
                    w_hh_ref,       # (HID, 4*HID)     bf16  W_hh^T
                    b_gates_ref,    # (1, 4*HID)       f32   b_ih + b_hh
                    w_tag_ref,      # (HID, VOCAB)     bf16  W_tag^T
                    b_tag_ref,      # (1, VOCAB)       f32
                    h0_ref, c0_ref,            # (1, HID) f32 initial hidden
                    scores_ref,                # (T_pad, VOCAB) f32 output
                    h_ref, c_ref,              # (1, HID) f32 final hidden
                    x_proj_ref,                # (T_pad, 4*HID) f32 VMEM scratch
                    h_all_ref,                 # (T_pad, HID)   f32 VMEM scratch
                    *, seq_len):
    # ---- Prologue: batched input projection (off the recurrence critical path). ----
    x_proj_ref[...] = (jnp.dot(x_ref[...], w_ih_ref[...],
                               preferred_element_type=jnp.float32)
                       + b_gates_ref[...])
    # Zero so padded rows (T_pad > seq_len) produce finite (discarded) scores.
    h_all_ref[...] = jnp.zeros_like(h_all_ref)

    # ---- Recurrence: only  h @ W_hh^T + X[t]  + gate elementwise math per step. ----
    def step(t, carry):
        h, c = carry                                           # (1, HID) f32 each
        gates = (x_proj_ref[pl.ds(t, 1), :]
                 + jnp.dot(h.astype(jnp.bfloat16), w_hh_ref[...],
                           preferred_element_type=jnp.float32))   # (1, 4*HID) f32
        i_g = jax.nn.sigmoid(gates[:, 0 * HID:1 * HID])
        f_g = jax.nn.sigmoid(gates[:, 1 * HID:2 * HID])
        g_g = jnp.tanh(gates[:, 2 * HID:3 * HID])
        o_g = jax.nn.sigmoid(gates[:, 3 * HID:4 * HID])
        c_new = f_g * c + i_g * g_g
        h_new = o_g * jnp.tanh(c_new)
        h_all_ref[pl.ds(t, 1), :] = h_new
        return (h_new, c_new)

    h_fin, c_fin = jax.lax.fori_loop(0, seq_len, step,
                                     (h0_ref[...], c0_ref[...]),
                                     unroll=True)
    h_ref[...] = h_fin
    c_ref[...] = c_fin

    # ---- Epilogue: batched output projection + log_softmax (single dense matmul). ----
    tag = (jnp.dot(h_all_ref[...].astype(jnp.bfloat16), w_tag_ref[...],
                   preferred_element_type=jnp.float32)
           + b_tag_ref[...])                                   # (T_pad, VOCAB) f32
    m = jnp.max(tag, axis=1, keepdims=True)
    lse = jnp.log(jnp.sum(jnp.exp(tag - m), axis=1, keepdims=True)) + m
    scores_ref[...] = tag - lse


def prepare_params(params):
    """One-time parameter layout prep (transpose / bias-merge / bf16 cast)."""
    return {
        "emb": params["embedding"].astype(jnp.bfloat16),                       # (VOCAB, EMB)
        "w_ih": params["w_ih"].T.astype(jnp.bfloat16),                         # (EMB, 4*HID)
        "w_hh": params["w_hh"].T.astype(jnp.bfloat16),                         # (HID, 4*HID)
        "b_gates": (params["b_ih"] + params["b_hh"]).reshape(1, 4 * HID).astype(jnp.float32),
        "w_tag": params["w_tag"].T.astype(jnp.bfloat16),                       # (HID, VOCAB)
        "b_tag": params["b_tag"].reshape(1, VOCAB).astype(jnp.float32),
    }


@jax.jit
def lstm_predictor_forward(tokens, prep, hidden):
    """Runs the whole token sequence in one pallas_call (single grid point,
    in-kernel unrolled recurrence).  Returns (scores: (T, VOCAB), (h, c))."""
    h0, c0 = hidden
    tokens = jnp.clip(tokens.astype(jnp.int32), 0, VOCAB - 1)   # guard the row gather
    T = tokens.shape[0]
    T_pad = ((T + 7) // 8) * 8                                  # sublane-align the batch

    # Embedding gather hoisted into the wrapper (bf16 rows, one jnp.take).
    x_emb = jnp.take(prep["emb"], tokens, axis=0)               # (T, EMB) bf16
    if T_pad != T:
        x_emb = jnp.pad(x_emb, ((0, T_pad - T), (0, 0)))

    kernel = partial(lstm_seq_kernel, seq_len=T)

    grid_spec = pltpu.PrefetchScalarGridSpec(
        num_scalar_prefetch=0,
        grid=(1,),
        in_specs=[
            pl.BlockSpec((T_pad, EMB), lambda i: (0, 0)),
            pl.BlockSpec((EMB, 4 * HID), lambda i: (0, 0)),
            pl.BlockSpec((HID, 4 * HID), lambda i: (0, 0)),
            pl.BlockSpec((1, 4 * HID), lambda i: (0, 0)),
            pl.BlockSpec((HID, VOCAB), lambda i: (0, 0)),
            pl.BlockSpec((1, VOCAB), lambda i: (0, 0)),
            pl.BlockSpec((1, HID), lambda i: (0, 0)),
            pl.BlockSpec((1, HID), lambda i: (0, 0)),
        ],
        out_specs=[
            pl.BlockSpec((T_pad, VOCAB), lambda i: (0, 0)),     # sublane-dense score block
            pl.BlockSpec((1, HID), lambda i: (0, 0)),           # final h
            pl.BlockSpec((1, HID), lambda i: (0, 0)),           # final c
        ],
        scratch_shapes=[
            pltpu.VMEM((T_pad, 4 * HID), jnp.float32),          # batched input projection
            pltpu.VMEM((T_pad, HID), jnp.float32),              # accumulated h_t
        ],
    )

    scores, h, c = pl.pallas_call(
        kernel,
        out_shape=(jax.ShapeDtypeStruct((T_pad, VOCAB), jnp.float32),
                   jax.ShapeDtypeStruct((1, HID), jnp.float32),
                   jax.ShapeDtypeStruct((1, HID), jnp.float32)),
        grid_spec=grid_spec,
        compiler_params=pltpu.CompilerParams(
            dimension_semantics=("arbitrary",)),                # recurrent: stays sequential
    )(x_emb, prep["w_ih"], prep["w_hh"], prep["b_gates"],
      prep["w_tag"], prep["b_tag"], h0, c0)

    return scores[:T], (h, c)


def init_params(key):
    ks = jax.random.split(key, 7)
    s = 0.05
    return {
        "embedding": s * jax.random.normal(ks[0], (VOCAB, EMB), jnp.float32),
        "w_ih": s * jax.random.normal(ks[1], (4 * HID, EMB), jnp.float32),
        "w_hh": s * jax.random.normal(ks[2], (4 * HID, HID), jnp.float32),
        "b_ih": s * jax.random.normal(ks[3], (4 * HID,), jnp.float32),
        "b_hh": s * jax.random.normal(ks[4], (4 * HID,), jnp.float32),
        "w_tag": s * jax.random.normal(ks[5], (VOCAB, HID), jnp.float32),
        "b_tag": s * jax.random.normal(ks[6], (VOCAB,), jnp.float32),
    }


def reference_forward(tokens, prep, hidden):
    """Pure-JAX reference mirroring the kernel math (same bf16 prepared params),
    equivalent to T successive LSTMPredictor.forward calls."""
    h, c = hidden
    x = prep["emb"][tokens]                                     # (T, EMB) bf16
    x_proj = jnp.dot(x, prep["w_ih"],
                     preferred_element_type=jnp.float32) + prep["b_gates"]
    hs = []
    for t in range(tokens.shape[0]):
        gates = x_proj[t:t + 1] + jnp.dot(h.astype(jnp.bfloat16), prep["w_hh"],
                                          preferred_element_type=jnp.float32)
        i_g = jax.nn.sigmoid(gates[:, 0 * HID:1 * HID])
        f_g = jax.nn.sigmoid(gates[:, 1 * HID:2 * HID])
        g_g = jnp.tanh(gates[:, 2 * HID:3 * HID])
        o_g = jax.nn.sigmoid(gates[:, 3 * HID:4 * HID])
        c = f_g * c + i_g * g_g
        h = o_g * jnp.tanh(c)
        hs.append(h)
    h_all = jnp.concatenate(hs, axis=0)
    tag = jnp.dot(h_all.astype(jnp.bfloat16), prep["w_tag"],
                  preferred_element_type=jnp.float32) + prep["b_tag"]
    return jax.nn.log_softmax(tag, axis=1), (h, c)


if __name__ == "__main__":
    key_params, key_tok = jax.random.split(jax.random.PRNGKey(0))
    params = init_params(key_params)
    prep = prepare_params(params)           # one-time layout prep (out of the step path)

    # init_hidden(): zeros of shape (1, 1, hidden_dim) -> kernel uses (1, hidden_dim).
    hidden0 = (jnp.zeros((1, HID), jnp.float32), jnp.zeros((1, HID), jnp.float32))

    # Small deterministic token sequence (seq = 8).
    T = 8
    tokens = jax.random.randint(key_tok, (T,), 0, VOCAB, dtype=jnp.int32)

    scores, (h1, c1) = lstm_predictor_forward(tokens, prep, hidden0)
    jax.block_until_ready((scores, h1, c1))

    ref_scores, (ref_h, ref_c) = reference_forward(tokens, prep, hidden0)
    assert scores.shape == (T, VOCAB)
    assert jnp.max(jnp.abs(scores - ref_scores)) < 2e-3
    assert jnp.max(jnp.abs(h1 - ref_h)) < 2e-3
    assert jnp.max(jnp.abs(c1 - ref_c)) < 2e-3

    print("KERNEL_OK")
</pallas_src>

<mosaic_0001>
module attributes {stable_mosaic.version = 11 : i64} {
  func.func @lstm_seq_kernel(%arg0: i32, %arg1: memref<8x128xbf16, #tpu.memory_space<vmem>>, %arg2: memref<128x512xbf16, #tpu.memory_space<vmem>>, %arg3: memref<128x512xbf16, #tpu.memory_space<vmem>>, %arg4: memref<1x512xf32, #tpu.memory_space<vmem>>, %arg5: memref<128x256xbf16, #tpu.memory_space<vmem>>, %arg6: memref<1x256xf32, #tpu.memory_space<vmem>>, %arg7: memref<1x128xf32, #tpu.memory_space<vmem>>, %arg8: memref<1x128xf32, #tpu.memory_space<vmem>>, %arg9: memref<8x256xf32, #tpu.memory_space<vmem>>, %arg10: memref<1x128xf32, #tpu.memory_space<vmem>>, %arg11: memref<1x128xf32, #tpu.memory_space<vmem>>, %arg12: memref<8x512xf32, #tpu.memory_space<vmem>>, %arg13: memref<8x128xf32, #tpu.memory_space<vmem>>) attributes {dimension_semantics = [#tpu.dimension_semantics<arbitrary>], iteration_bounds = array<i64: 1>, scalar_prefetch = 0 : i64, scratch_operands = 2 : i64, tpu.core_type = #tpu.core_type<tc>, window_params = [{pipeline_mode = #tpu.pipeline_mode<synchronous>, transform_indices = @transform_0, window_bounds = array<i64: 8, 128>}, {pipeline_mode = #tpu.pipeline_mode<synchronous>, transform_indices = @transform_1, window_bounds = array<i64: 128, 512>}, {pipeline_mode = #tpu.pipeline_mode<synchronous>, transform_indices = @transform_2, window_bounds = array<i64: 128, 512>}, {pipeline_mode = #tpu.pipeline_mode<synchronous>, transform_indices = @transform_3, window_bounds = array<i64: 1, 512>}, {pipeline_mode = #tpu.pipeline_mode<synchronous>, transform_indices = @transform_4, window_bounds = array<i64: 128, 256>}, {pipeline_mode = #tpu.pipeline_mode<synchronous>, transform_indices = @transform_5, window_bounds = array<i64: 1, 256>}, {pipeline_mode = #tpu.pipeline_mode<synchronous>, transform_indices = @transform_6, window_bounds = array<i64: 1, 128>}, {pipeline_mode = #tpu.pipeline_mode<synchronous>, transform_indices = @transform_7, window_bounds = array<i64: 1, 128>}, {pipeline_mode = #tpu.pipeline_mode<synchronous>, transform_indices = @transform_8, window_bounds = array<i64: 8, 256>}, {pipeline_mode = #tpu.pipeline_mode<synchronous>, transform_indices = @transform_9, window_bounds = array<i64: 1, 128>}, {pipeline_mode = #tpu.pipeline_mode<synchronous>, transform_indices = @transform_10, window_bounds = array<i64: 1, 128>}]} {
    %c0 = arith.constant 0 : index
    %c0_0 = arith.constant 0 : index
    %0 = vector.load %arg1[%c0, %c0_0] : memref<8x128xbf16, #tpu.memory_space<vmem>>, vector<8x128xbf16>
    %c0_1 = arith.constant 0 : index
    %c0_2 = arith.constant 0 : index
    %1 = vector.load %arg2[%c0_1, %c0_2] : memref<128x512xbf16, #tpu.memory_space<vmem>>, vector<128x512xbf16>
    %cst = arith.constant dense<0.000000e+00> : vector<8x512xf32>
    %2 = tpu.matmul %0, %1, %cst {dimension_numbers = #tpu.dot_dimension_numbers<[1], [0], [0], [1], [0, 0, 1, 1], [], []>} : vector<8x128xbf16>, vector<128x512xbf16>, vector<8x512xf32> -> vector<8x512xf32>
    %c0_3 = arith.constant 0 : index
    %c0_4 = arith.constant 0 : index
    %3 = vector.load %arg4[%c0_3, %c0_4] : memref<1x512xf32, #tpu.memory_space<vmem>>, vector<1x512xf32>
    %4 = vector.broadcast %3 : vector<1x512xf32> to vector<8x512xf32>
    %5 = arith.addf %2, %4 : vector<8x512xf32>
    %c0_5 = arith.constant 0 : index
    %c0_6 = arith.constant 0 : index
    %6 = vector.load %arg12[%c0_5, %c0_6] : memref<8x512xf32, #tpu.memory_space<vmem>>, vector<8x512xf32>
    tpu.vector_store %arg12[%c0_5, %c0_6], %5 {strides = array<i32>} : memref<8x512xf32, #tpu.memory_space<vmem>>, vector<8x512xf32>,
    %cst_7 = arith.constant 0.000000e+00 : f32
    %7 = vector.broadcast %cst_7 : f32 to vector<8x128xf32>
    %c0_8 = arith.constant 0 : index
    %c0_9 = arith.constant 0 : index
    %8 = vector.load %arg13[%c0_8, %c0_9] : memref<8x128xf32, #tpu.memory_space<vmem>>, vector<8x128xf32>
    tpu.vector_store %arg13[%c0_8, %c0_9], %7 {strides = array<i32>} : memref<8x128xf32, #tpu.memory_space<vmem>>, vector<8x128xf32>,
    %c0_10 = arith.constant 0 : index
    %c0_11 = arith.constant 0 : index
    %9 = vector.load %arg7[%c0_10, %c0_11] : memref<1x128xf32, #tpu.memory_space<vmem>>, vector<1x128xf32>
    %c0_12 = arith.constant 0 : index
    %c0_13 = arith.constant 0 : index
    %10 = vector.load %arg8[%c0_12, %c0_13] : memref<1x128xf32, #tpu.memory_space<vmem>>, vector<1x128xf32>
    %c0_i32 = arith.constant 0 : i32
    %11 = arith.index_cast %c0_i32 : i32 to index
    %c0_14 = arith.constant 0 : index
    %12 = vector.load %arg12[%11, %c0_14] : memref<8x512xf32, #tpu.memory_space<vmem>>, vector<1x512xf32>
    %13 = arith.truncf %9 : vector<1x128xf32> to vector<1x128xbf16>
    %c0_15 = arith.constant 0 : index
    %c0_16 = arith.constant 0 : index
    %14 = vector.load %arg3[%c0_15, %c0_16] : memref<128x512xbf16, #tpu.memory_space<vmem>>, vector<128x512xbf16>
    %cst_17 = arith.constant dense<0.000000e+00> : vector<1x512xf32>
    %15 = tpu.matmul %13, %14, %cst_17 {dimension_numbers = #tpu.dot_dimension_numbers<[1], [0], [0], [1], [0, 0, 1, 1], [], []>} : vector<1x128xbf16>, vector<128x512xbf16>, vector<1x512xf32> -> vector<1x512xf32>
    %16 = arith.addf %12, %15 : vector<1x512xf32>
    %17 = vector.extract_strided_slice %16 {offsets = [0, 0], sizes = [1, 128], strides = [1, 1]} : vector<1x512xf32> to vector<1x128xf32>
    %18 = arith.negf %17 : vector<1x128xf32>
    %19 = math.exp %18 : vector<1x128xf32>
    %cst_18 = arith.constant 1.000000e+00 : f32
    %20 = vector.broadcast %cst_18 : f32 to vector<1x128xf32>
    %21 = arith.addf %20, %19 : vector<1x128xf32>
    %22 = arith.divf %20, %21 : vector<1x128xf32>
    %23 = vector.extract_strided_slice %16 {offsets = [0, 128], sizes = [1, 128], strides = [1, 1]} : vector<1x512xf32> to vector<1x128xf32>
    %24 = arith.negf %23 : vector<1x128xf32>
    %25 = math.exp %24 : vector<1x128xf32>
    %cst_19 = arith.constant 1.000000e+00 : f32
    %26 = vector.broadcast %cst_19 : f32 to vector<1x128xf32>
    %27 = arith.addf %26, %25 : vector<1x128xf32>
    %28 = arith.divf %26, %27 : vector<1x128xf32>
    %29 = vector.extract_strided_slice %16 {offsets = [0, 256], sizes = [1, 128], strides = [1, 1]} : vector<1x512xf32> to vector<1x128xf32>
    %30 = math.tanh %29 : vector<1x128xf32>
    %31 = vector.extract_strided_slice %16 {offsets = [0, 384], sizes = [1, 128], strides = [1, 1]} : vector<1x512xf32> to vector<1x128xf32>
    %32 = arith.negf %31 : vector<1x128xf32>
    %33 = math.exp %32 : vector<1x128xf32>
    %cst_20 = arith.constant 1.000000e+00 : f32
    %34 = vector.broadcast %cst_20 : f32 to vector<1x128xf32>
    %35 = arith.addf %34, %33 : vector<1x128xf32>
    %36 = arith.divf %34, %35 : vector<1x128xf32>
    %37 = arith.mulf %28, %10 : vector<1x128xf32>
    %38 = arith.mulf %22, %30 : vector<1x128xf32>
    %39 = arith.addf %37, %38 : vector<1x128xf32>
    %40 = math.tanh %39 : vector<1x128xf32>
    %41 = arith.mulf %36, %40 : vector<1x128xf32>
    %42 = arith.index_cast %c0_i32 : i32 to index
    %c0_21 = arith.constant 0 : index
    %43 = vector.load %arg13[%42, %c0_21] : memref<8x128xf32, #tpu.memory_space<vmem>>, vector<1x128xf32>
    tpu.vector_store %arg13[%42, %c0_21], %41 {strides = array<i32>} : memref<8x128xf32, #tpu.memory_space<vmem>>, vector<1x128xf32>,
    %c1_i32 = arith.constant 1 : i32
    %44 = arith.index_cast %c1_i32 : i32 to index
    %c0_22 = arith.constant 0 : index
    %45 = vector.load %arg12[%44, %c0_22] : memref<8x512xf32, #tpu.memory_space<vmem>>, vector<1x512xf32>
    %46 = arith.truncf %41 : vector<1x128xf32> to vector<1x128xbf16>
    %c0_23 = arith.constant 0 : index
    %c0_24 = arith.constant 0 : index
    %47 = vector.load %arg3[%c0_23, %c0_24] : memref<128x512xbf16, #tpu.memory_space<vmem>>, vector<128x512xbf16>
    %cst_25 = arith.constant dense<0.000000e+00> : vector<1x512xf32>
    %48 = tpu.matmul %46, %47, %cst_25 {dimension_numbers = #tpu.dot_dimension_numbers<[1], [0], [0], [1], [0, 0, 1, 1], [], []>} : vector<1x128xbf16>, vector<128x512xbf16>, vector<1x512xf32> -> vector<1x512xf32>
    %49 = arith.addf %45, %48 : vector<1x512xf32>
    %50 = vector.extract_strided_slice %49 {offsets = [0, 0], sizes = [1, 128], strides = [1, 1]} : vector<1x512xf32> to vector<1x128xf32>
    %51 = arith.negf %50 : vector<1x128xf32>
    %52 = math.exp %51 : vector<1x128xf32>
    %cst_26 = arith.constant 1.000000e+00 : f32
    %53 = vector.broadcast %cst_26 : f32 to vector<1x128xf32>
    %54 = arith.addf %53, %52 : vector<1x128xf32>
    %55 = arith.divf %53, %54 : vector<1x128xf32>
    %56 = vector.extract_strided_slice %49 {offsets = [0, 128], sizes = [1, 128], strides = [1, 1]} : vector<1x512xf32> to vector<1x128xf32>
    %57 = arith.negf %56 : vector<1x128xf32>
    %58 = math.exp %57 : vector<1x128xf32>
    %cst_27 = arith.constant 1.000000e+00 : f32
    %59 = vector.broadcast %cst_27 : f32 to vector<1x128xf32>
    %60 = arith.addf %59, %58 : vector<1x128xf32>
    %61 = arith.divf %59, %60 : vector<1x128xf32>
    %62 = vector.extract_strided_slice %49 {offsets = [0, 256], sizes = [1, 128], strides = [1, 1]} : vector<1x512xf32> to vector<1x128xf32>
    %63 = math.tanh %62 : vector<1x128xf32>
    %64 = vector.extract_strided_slice %49 {offsets = [0, 384], sizes = [1, 128], strides = [1, 1]} : vector<1x512xf32> to vector<1x128xf32>
    %65 = arith.negf %64 : vector<1x128xf32>
    %66 = math.exp %65 : vector<1x128xf32>
    %cst_28 = arith.constant 1.000000e+00 : f32
    %67 = vector.broadcast %cst_28 : f32 to vector<1x128xf32>
    %68 = arith.addf %67, %66 : vector<1x128xf32>
    %69 = arith.divf %67, %68 : vector<1x128xf32>
    %70 = arith.mulf %61, %39 : vector<1x128xf32>
    %71 = arith.mulf %55, %63 : vector<1x128xf32>
    %72 = arith.addf %70, %71 : vector<1x128xf32>
    %73 = math.tanh %72 : vector<1x128xf32>
    %74 = arith.mulf %69, %73 : vector<1x128xf32>
    %75 = arith.index_cast %c1_i32 : i32 to index
    %c0_29 = arith.constant 0 : index
    %76 = vector.load %arg13[%75, %c0_29] : memref<8x128xf32, #tpu.memory_space<vmem>>, vector<1x128xf32>
    tpu.vector_store %arg13[%75, %c0_29], %74 {strides = array<i32>} : memref<8x128xf32, #tpu.memory_space<vmem>>, vector<1x128xf32>,
    %c2_i32 = arith.constant 2 : i32
    %77 = arith.index_cast %c2_i32 : i32 to index
    %c0_30 = arith.constant 0 : index
    %78 = vector.load %arg12[%77, %c0_30] : memref<8x512xf32, #tpu.memory_space<vmem>>, vector<1x512xf32>
    %79 = arith.truncf %74 : vector<1x128xf32> to vector<1x128xbf16>
    %c0_31 = arith.constant 0 : index
    %c0_32 = arith.constant 0 : index
    %80 = vector.load %arg3[%c0_31, %c0_32] : memref<128x512xbf16, #tpu.memory_space<vmem>>, vector<128x512xbf16>
    %cst_33 = arith.constant dense<0.000000e+00> : vector<1x512xf32>
    %81 = tpu.matmul %79, %80, %cst_33 {dimension_numbers = #tpu.dot_dimension_numbers<[1], [0], [0], [1], [0, 0, 1, 1], [], []>} : vector<1x128xbf16>, vector<128x512xbf16>, vector<1x512xf32> -> vector<1x512xf32>
    %82 = arith.addf %78, %81 : vector<1x512xf32>
    %83 = vector.extract_strided_slice %82 {offsets = [0, 0], sizes = [1, 128], strides = [1, 1]} : vector<1x512xf32> to vector<1x128xf32>
    %84 = arith.negf %83 : vector<1x128xf32>
    %85 = math.exp %84 : vector<1x128xf32>
    %cst_34 = arith.constant 1.000000e+00 : f32
    %86 = vector.broadcast %cst_34 : f32 to vector<1x128xf32>
    %87 = arith.addf %86, %85 : vector<1x128xf32>
    %88 = arith.divf %86, %87 : vector<1x128xf32>
    %89 = vector.extract_strided_slice %82 {offsets = [0, 128], sizes = [1, 128], strides = [1, 1]} : vector<1x512xf32> to vector<1x128xf32>
    %90 = arith.negf %89 : vector<1x128xf32>
    %91 = math.exp %90 : vector<1x128xf32>
    %cst_35 = arith.constant 1.000000e+00 : f32
    %92 = vector.broadcast %cst_35 : f32 to vector<1x128xf32>
    %93 = arith.addf %92, %91 : vector<1x128xf32>
    %94 = arith.divf %92, %93 : vector<1x128xf32>
    %95 = vector.extract_strided_slice %82 {offsets = [0, 256], sizes = [1, 128], strides = [1, 1]} : vector<1x512xf32> to vector<1x128xf32>
    %96 = math.tanh %95 : vector<1x128xf32>
    %97 = vector.extract_strided_slice %82 {offsets = [0, 384], sizes = [1, 128], strides = [1, 1]} : vector<1x512xf32> to vector<1x128xf32>
    %98 = arith.negf %97 : vector<1x128xf32>
    %99 = math.exp %98 : vector<1x128xf32>
    %cst_36 = arith.constant 1.000000e+00 : f32
    %100 = vector.broadcast %cst_36 : f32 to vector<1x128xf32>
    %101 = arith.addf %100, %99 : vector<1x128xf32>
    %102 = arith.divf %100, %101 : vector<1x128xf32>
    %103 = arith.mulf %94, %72 : vector<1x128xf32>
    %104 = arith.mulf %88, %96 : vector<1x128xf32>
    %105 = arith.addf %103, %104 : vector<1x128xf32>
    %106 = math.tanh %105 : vector<1x128xf32>
    %107 = arith.mulf %102, %106 : vector<1x128xf32>
    %108 = arith.index_cast %c2_i32 : i32 to index
    %c0_37 = arith.constant 0 : index
    %109 = vector.load %arg13[%108, %c0_37] : memref<8x128xf32, #tpu.memory_space<vmem>>, vector<1x128xf32>
    tpu.vector_store %arg13[%108, %c0_37], %107 {strides = array<i32>} : memref<8x128xf32, #tpu.memory_space<vmem>>, vector<1x128xf32>,
    %c3_i32 = arith.constant 3 : i32
    %110 = arith.index_cast %c3_i32 : i32 to index
    %c0_38 = arith.constant 0 : index
    %111 = vector.load %arg12[%110, %c0_38] : memref<8x512xf32, #tpu.memory_space<vmem>>, vector<1x512xf32>
    %112 = arith.truncf %107 : vector<1x128xf32> to vector<1x128xbf16>
    %c0_39 = arith.constant 0 : index
    %c0_40 = arith.constant 0 : index
    %113 = vector.load %arg3[%c0_39, %c0_40] : memref<128x512xbf16, #tpu.memory_space<vmem>>, vector<128x512xbf16>
    %cst_41 = arith.constant dense<0.000000e+00> : vector<1x512xf32>
    %114 = tpu.matmul %112, %113, %cst_41 {dimension_numbers = #tpu.dot_dimension_numbers<[1], [0], [0], [1], [0, 0, 1, 1], [], []>} : vector<1x128xbf16>, vector<128x512xbf16>, vector<1x512xf32> -> vector<1x512xf32>
    %115 = arith.addf %111, %114 : vector<1x512xf32>
    %116 = vector.extract_strided_slice %115 {offsets = [0, 0], sizes = [1, 128], strides = [1, 1]} : vector<1x512xf32> to vector<1x128xf32>
    %117 = arith.negf %116 : vector<1x128xf32>
    %118 = math.exp %117 : vector<1x128xf32>
    %cst_42 = arith.constant 1.000000e+00 : f32
    %119 = vector.broadcast %cst_42 : f32 to vector<1x128xf32>
    %120 = arith.addf %119, %118 : vector<1x128xf32>
    %121 = arith.divf %119, %120 : vector<1x128xf32>
    %122 = vector.extract_strided_slice %115 {offsets = [0, 128], sizes = [1, 128], strides = [1, 1]} : vector<1x512xf32> to vector<1x128xf32>
    %123 = arith.negf %122 : vector<1x128xf32>
    %124 = math.exp %123 : vector<1x128xf32>
    %cst_43 = arith.constant 1.000000e+00 : f32
    %125 = vector.broadcast %cst_43 : f32 to vector<1x128xf32>
    %126 = arith.addf %125, %124 : vector<1x128xf32>
    %127 = arith.divf %125, %126 : vector<1x128xf32>
    %128 = vector.extract_strided_slice %115 {offsets = [0, 256], sizes = [1, 128], strides = [1, 1]} : vector<1x512xf32> to vector<1x128xf32>
    %129 = math.tanh %128 : vector<1x128xf32>
    %130 = vector.extract_strided_slice %115 {offsets = [0, 384], sizes = [1, 128], strides = [1, 1]} : vector<1x512xf32> to vector<1x128xf32>
    %131 = arith.negf %130 : vector<1x128xf32>
    %132 = math.exp %131 : vector<1x128xf32>
    %cst_44 = arith.constant 1.000000e+00 : f32
    %133 = vector.broadcast %cst_44 : f32 to vector<1x128xf32>
    %134 = arith.addf %133, %132 : vector<1x128xf32>
    %135 = arith.divf %133, %134 : vector<1x128xf32>
    %136 = arith.mulf %127, %105 : vector<1x128xf32>
    %137 = arith.mulf %121, %129 : vector<1x128xf32>
    %138 = arith.addf %136, %137 : vector<1x128xf32>
    %139 = math.tanh %138 : vector<1x128xf32>
    %140 = arith.mulf %135, %139 : vector<1x128xf32>
    %141 = arith.index_cast %c3_i32 : i32 to index
    %c0_45 = arith.constant 0 : index
    %142 = vector.load %arg13[%141, %c0_45] : memref<8x128xf32, #tpu.memory_space<vmem>>, vector<1x128xf32>
    tpu.vector_store %arg13[%141, %c0_45], %140 {strides = array<i32>} : memref<8x128xf32, #tpu.memory_space<vmem>>, vector<1x128xf32>,
    %c4_i32 = arith.constant 4 : i32
    %143 = arith.index_cast %c4_i32 : i32 to index
    %c0_46 = arith.constant 0 : index
    %144 = vector.load %arg12[%143, %c0_46] : memref<8x512xf32, #tpu.memory_space<vmem>>, vector<1x512xf32>
    %145 = arith.truncf %140 : vector<1x128xf32> to vector<1x128xbf16>
    %c0_47 = arith.constant 0 : index
    %c0_48 = arith.constant 0 : index
    %146 = vector.load %arg3[%c0_47, %c0_48] : memref<128x512xbf16, #tpu.memory_space<vmem>>, vector<128x512xbf16>
    %cst_49 = arith.constant dense<0.000000e+00> : vector<1x512xf32>
    %147 = tpu.matmul %145, %146, %cst_49 {dimension_numbers = #tpu.dot_dimension_numbers<[1], [0], [0], [1], [0, 0, 1, 1], [], []>} : vector<1x128xbf16>, vector<128x512xbf16>, vector<1x512xf32> -> vector<1x512xf32>
    %148 = arith.addf %144, %147 : vector<1x512xf32>
    %149 = vector.extract_strided_slice %148 {offsets = [0, 0], sizes = [1, 128], strides = [1, 1]} : vector<1x512xf32> to vector<1x128xf32>
    %150 = arith.negf %149 : vector<1x128xf32>
    %151 = math.exp %150 : vector<1x128xf32>
    %cst_50 = arith.constant 1.000000e+00 : f32
    %152 = vector.broadcast %cst_50 : f32 to vector<1x128xf32>
    %153 = arith.addf %152, %151 : vector<1x128xf32>
    %154 = arith.divf %152, %153 : vector<1x128xf32>
    %155 = vector.extract_strided_slice %148 {offsets = [0, 128], sizes = [1, 128], strides = [1, 1]} : vector<1x512xf32> to vector<1x128xf32>
    %156 = arith.negf %155 : vector<1x128xf32>
    %157 = math.exp %156 : vector<1x128xf32>
    %cst_51 = arith.constant 1.000000e+00 : f32
    %158 = vector.broadcast %cst_51 : f32 to vector<1x128xf32>
    %159 = arith.addf %158, %157 : vector<1x128xf32>
    %160 = arith.divf %158, %159 : vector<1x128xf32>
    %161 = vector.extract_strided_slice %148 {offsets = [0, 256], sizes = [1, 128], strides = [1, 1]} : vector<1x512xf32> to vector<1x128xf32>
    %162 = math.tanh %161 : vector<1x128xf32>
    %163 = vector.extract_strided_slice %148 {offsets = [0, 384], sizes = [1, 128], strides = [1, 1]} : vector<1x512xf32> to vector<1x128xf32>
    %164 = arith.negf %163 : vector<1x128xf32>
    %165 = math.exp %164 : vector<1x128xf32>
    %cst_52 = arith.constant 1.000000e+00 : f32
    %166 = vector.broadcast %cst_52 : f32 to vector<1x128xf32>
    %167 = arith.addf %166, %165 : vector<1x128xf32>
    %168 = arith.divf %166, %167 : vector<1x128xf32>
    %169 = arith.mulf %160, %138 : vector<1x128xf32>
    %170 = arith.mulf %154, %162 : vector<1x128xf32>
    %171 = arith.addf %169, %170 : vector<1x128xf32>
    %172 = math.tanh %171 : vector<1x128xf32>
    %173 = arith.mulf %168, %172 : vector<1x128xf32>
    %174 = arith.index_cast %c4_i32 : i32 to index
    %c0_53 = arith.constant 0 : index
    %175 = vector.load %arg13[%174, %c0_53] : memref<8x128xf32, #tpu.memory_space<vmem>>, vector<1x128xf32>
    tpu.vector_store %arg13[%174, %c0_53], %173 {strides = array<i32>} : memref<8x128xf32, #tpu.memory_space<vmem>>, vector<1x128xf32>,
    %c5_i32 = arith.constant 5 : i32
    %176 = arith.index_cast %c5_i32 : i32 to index
    %c0_54 = arith.constant 0 : index
    %177 = vector.load %arg12[%176, %c0_54] : memref<8x512xf32, #tpu.memory_space<vmem>>, vector<1x512xf32>
    %178 = arith.truncf %173 : vector<1x128xf32> to vector<1x128xbf16>
    %c0_55 = arith.constant 0 : index
    %c0_56 = arith.constant 0 : index
    %179 = vector.load %arg3[%c0_55, %c0_56] : memref<128x512xbf16, #tpu.memory_space<vmem>>, vector<128x512xbf16>
    %cst_57 = arith.constant dense<0.000000e+00> : vector<1x512xf32>
    %180 = tpu.matmul %178, %179, %cst_57 {dimension_numbers = #tpu.dot_dimension_numbers<[1], [0], [0], [1], [0, 0, 1, 1], [], []>} : vector<1x128xbf16>, vector<128x512xbf16>, vector<1x512xf32> -> vector<1x512xf32>
    %181 = arith.addf %177, %180 : vector<1x512xf32>
    %182 = vector.extract_strided_slice %181 {offsets = [0, 0], sizes = [1, 128], strides = [1, 1]} : vector<1x512xf32> to vector<1x128xf32>
    %183 = arith.negf %182 : vector<1x128xf32>
    %184 = math.exp %183 : vector<1x128xf32>
    %cst_58 = arith.constant 1.000000e+00 : f32
    %185 = vector.broadcast %cst_58 : f32 to vector<1x128xf32>
    %186 = arith.addf %185, %184 : vector<1x128xf32>
    %187 = arith.divf %185, %186 : vector<1x128xf32>
    %188 = vector.extract_strided_slice %181 {offsets = [0, 128], sizes = [1, 128], strides = [1, 1]} : vector<1x512xf32> to vector<1x128xf32>
    %189 = arith.negf %188 : vector<1x128xf32>
    %190 = math.exp %189 : vector<1x128xf32>
    %cst_59 = arith.constant 1.000000e+00 : f32
    %191 = vector.broadcast %cst_59 : f32 to vector<1x128xf32>
    %192 = arith.addf %191, %190 : vector<1x128xf32>
    %193 = arith.divf %191, %192 : vector<1x128xf32>
    %194 = vector.extract_strided_slice %181 {offsets = [0, 256], sizes = [1, 128], strides = [1, 1]} : vector<1x512xf32> to vector<1x128xf32>
    %195 = math.tanh %194 : vector<1x128xf32>
    %196 = vector.extract_strided_slice %181 {offsets = [0, 384], sizes = [1, 128], strides = [1, 1]} : vector<1x512xf32> to vector<1x128xf32>
    %197 = arith.negf %196 : vector<1x128xf32>
    %198 = math.exp %197 : vector<1x128xf32>
    %cst_60 = arith.constant 1.000000e+00 : f32
    %199 = vector.broadcast %cst_60 : f32 to vector<1x128xf32>
    %200 = arith.addf %199, %198 : vector<1x128xf32>
    %201 = arith.divf %199, %200 : vector<1x128xf32>
    %202 = arith.mulf %193, %171 : vector<1x128xf32>
    %203 = arith.mulf %187, %195 : vector<1x128xf32>
    %204 = arith.addf %202, %203 : vector<1x128xf32>
    %205 = math.tanh %204 : vector<1x128xf32>
    %206 = arith.mulf %201, %205 : vector<1x128xf32>
    %207 = arith.index_cast %c5_i32 : i32 to index
    %c0_61 = arith.constant 0 : index
    %208 = vector.load %arg13[%207, %c0_61] : memref<8x128xf32, #tpu.memory_space<vmem>>, vector<1x128xf32>
    tpu.vector_store %arg13[%207, %c0_61], %206 {strides = array<i32>} : memref<8x128xf32, #tpu.memory_space<vmem>>, vector<1x128xf32>,
    %c6_i32 = arith.constant 6 : i32
    %209 = arith.index_cast %c6_i32 : i32 to index
    %c0_62 = arith.constant 0 : index
    %210 = vector.load %arg12[%209, %c0_62] : memref<8x512xf32, #tpu.memory_space<vmem>>, vector<1x512xf32>
    %211 = arith.truncf %206 : vector<1x128xf32> to vector<1x128xbf16>
    %c0_63 = arith.constant 0 : index
    %c0_64 = arith.constant 0 : index
    %212 = vector.load %arg3[%c0_63, %c0_64] : memref<128x512xbf16, #tpu.memory_space<vmem>>, vector<128x512xbf16>
    %cst_65 = arith.constant dense<0.000000e+00> : vector<1x512xf32>
    %213 = tpu.matmul %211, %212, %cst_65 {dimension_numbers = #tpu.dot_dimension_numbers<[1], [0], [0], [1], [0, 0, 1, 1], [], []>} : vector<1x128xbf16>, vector<128x512xbf16>, vector<1x512xf32> -> vector<1x512xf32>
    %214 = arith.addf %210, %213 : vector<1x512xf32>
    %215 = vector.extract_strided_slice %214 {offsets = [0, 0], sizes = [1, 128], strides = [1, 1]} : vector<1x512xf32> to vector<1x128xf32>
    %216 = arith.negf %215 : vector<1x128xf32>
    %217 = math.exp %216 : vector<1x128xf32>
    %cst_66 = arith.constant 1.000000e+00 : f32
    %218 = vector.broadcast %cst_66 : f32 to vector<1x128xf32>
    %219 = arith.addf %218, %217 : vector<1x128xf32>
    %220 = arith.divf %218, %219 : vector<1x128xf32>
    %221 = vector.extract_strided_slice %214 {offsets = [0, 128], sizes = [1, 128], strides = [1, 1]} : vector<1x512xf32> to vector<1x128xf32>
    %222 = arith.negf %221 : vector<1x128xf32>
    %223 = math.exp %222 : vector<1x128xf32>
    %cst_67 = arith.constant 1.000000e+00 : f32
    %224 = vector.broadcast %cst_67 : f32 to vector<1x128xf32>
    %225 = arith.addf %224, %223 : vector<1x128xf32>
    %226 = arith.divf %224, %225 : vector<1x128xf32>
    %227 = vector.extract_strided_slice %214 {offsets = [0, 256], sizes = [1, 128], strides = [1, 1]} : vector<1x512xf32> to vector<1x128xf32>
    %228 = math.tanh %227 : vector<1x128xf32>
    %229 = vector.extract_strided_slice %214 {offsets = [0, 384], sizes = [1, 128], strides = [1, 1]} : vector<1x512xf32> to vector<1x128xf32>
    %230 = arith.negf %229 : vector<1x128xf32>
    %231 = math.exp %230 : vector<1x128xf32>
    %cst_68 = arith.constant 1.000000e+00 : f32
    %232 = vector.broadcast %cst_68 : f32 to vector<1x128xf32>
    %233 = arith.addf %232, %231 : vector<1x128xf32>
    %234 = arith.divf %232, %233 : vector<1x128xf32>
    %235 = arith.mulf %226, %204 : vector<1x128xf32>
    %236 = arith.mulf %220, %228 : vector<1x128xf32>
    %237 = arith.addf %235, %236 : vector<1x128xf32>
    %238 = math.tanh %237 : vector<1x128xf32>
    %239 = arith.mulf %234, %238 : vector<1x128xf32>
    %240 = arith.index_cast %c6_i32 : i32 to index
    %c0_69 = arith.constant 0 : index
    %241 = vector.load %arg13[%240, %c0_69] : memref<8x128xf32, #tpu.memory_space<vmem>>, vector<1x128xf32>
    tpu.vector_store %arg13[%240, %c0_69], %239 {strides = array<i32>} : memref<8x128xf32, #tpu.memory_space<vmem>>, vector<1x128xf32>,
    %c7_i32 = arith.constant 7 : i32
    %242 = arith.index_cast %c7_i32 : i32 to index
    %c0_70 = arith.constant 0 : index
    %243 = vector.load %arg12[%242, %c0_70] : memref<8x512xf32, #tpu.memory_space<vmem>>, vector<1x512xf32>
    %244 = arith.truncf %239 : vector<1x128xf32> to vector<1x128xbf16>
    %c0_71 = arith.constant 0 : index
    %c0_72 = arith.constant 0 : index
    %245 = vector.load %arg3[%c0_71, %c0_72] : memref<128x512xbf16, #tpu.memory_space<vmem>>, vector<128x512xbf16>
    %cst_73 = arith.constant dense<0.000000e+00> : vector<1x512xf32>
    %246 = tpu.matmul %244, %245, %cst_73 {dimension_numbers = #tpu.dot_dimension_numbers<[1], [0], [0], [1], [0, 0, 1, 1], [], []>} : vector<1x128xbf16>, vector<128x512xbf16>, vector<1x512xf32> -> vector<1x512xf32>
    %247 = arith.addf %243, %246 : vector<1x512xf32>
    %248 = vector.extract_strided_slice %247 {offsets = [0, 0], sizes = [1, 128], strides = [1, 1]} : vector<1x512xf32> to vector<1x128xf32>
    %249 = arith.negf %248 : vector<1x128xf32>
    %250 = math.exp %249 : vector<1x128xf32>
    %cst_74 = arith.constant 1.000000e+00 : f32
    %251 = vector.broadcast %cst_74 : f32 to vector<1x128xf32>
    %252 = arith.addf %251, %250 : vector<1x128xf32>
    %253 = arith.divf %251, %252 : vector<1x128xf32>
    %254 = vector.extract_strided_slice %247 {offsets = [0, 128], sizes = [1, 128], strides = [1, 1]} : vector<1x512xf32> to vector<1x128xf32>
    %255 = arith.negf %254 : vector<1x128xf32>
    %256 = math.exp %255 : vector<1x128xf32>
    %cst_75 = arith.constant 1.000000e+00 : f32
    %257 = vector.broadcast %cst_75 : f32 to vector<1x128xf32>
    %258 = arith.addf %257, %256 : vector<1x128xf32>
    %259 = arith.divf %257, %258 : vector<1x128xf32>
    %260 = vector.extract_strided_slice %247 {offsets = [0, 256], sizes = [1, 128], strides = [1, 1]} : vector<1x512xf32> to vector<1x128xf32>
    %261 = math.tanh %260 : vector<1x128xf32>
    %262 = vector.extract_strided_slice %247 {offsets = [0, 384], sizes = [1, 128], strides = [1, 1]} : vector<1x512xf32> to vector<1x128xf32>
    %263 = arith.negf %262 : vector<1x128xf32>
    %264 = math.exp %263 : vector<1x128xf32>
    %cst_76 = arith.constant 1.000000e+00 : f32
    %265 = vector.broadcast %cst_76 : f32 to vector<1x128xf32>
    %266 = arith.addf %265, %264 : vector<1x128xf32>
    %267 = arith.divf %265, %266 : vector<1x128xf32>
    %268 = arith.mulf %259, %237 : vector<1x128xf32>
    %269 = arith.mulf %253, %261 : vector<1x128xf32>
    %270 = arith.addf %268, %269 : vector<1x128xf32>
    %271 = math.tanh %270 : vector<1x128xf32>
    %272 = arith.mulf %267, %271 : vector<1x128xf32>
    %273 = arith.index_cast %c7_i32 : i32 to index
    %c0_77 = arith.constant 0 : index
    %274 = vector.load %arg13[%273, %c0_77] : memref<8x128xf32, #tpu.memory_space<vmem>>, vector<1x128xf32>
    tpu.vector_store %arg13[%273, %c0_77], %272 {strides = array<i32>} : memref<8x128xf32, #tpu.memory_space<vmem>>, vector<1x128xf32>,
    %c8_i32 = arith.constant 8 : i32
    %c0_78 = arith.constant 0 : index
    %c0_79 = arith.constant 0 : index
    %275 = vector.load %arg10[%c0_78, %c0_79] : memref<1x128xf32, #tpu.memory_space<vmem>>, vector<1x128xf32>
    tpu.vector_store %arg10[%c0_78, %c0_79], %272 {strides = array<i32>} : memref<1x128xf32, #tpu.memory_space<vmem>>, vector<1x128xf32>,
    %c0_80 = arith.constant 0 : index
    %c0_81 = arith.constant 0 : index
    %276 = vector.load %arg11[%c0_80, %c0_81] : memref<1x128xf32, #tpu.memory_space<vmem>>, vector<1x128xf32>
    tpu.vector_store %arg11[%c0_80, %c0_81], %270 {strides = array<i32>} : memref<1x128xf32, #tpu.memory_space<vmem>>, vector<1x128xf32>,
    %c0_82 = arith.constant 0 : index
    %c0_83 = arith.constant 0 : index
    %277 = vector.load %arg13[%c0_82, %c0_83] : memref<8x128xf32, #tpu.memory_space<vmem>>, vector<8x128xf32>
    %278 = arith.truncf %277 : vector<8x128xf32> to vector<8x128xbf16>
    %c0_84 = arith.constant 0 : index
    %c0_85 = arith.constant 0 : index
    %279 = vector.load %arg5[%c0_84, %c0_85] : memref<128x256xbf16, #tpu.memory_space<vmem>>, vector<128x256xbf16>
    %cst_86 = arith.constant dense<0.000000e+00> : vector<8x256xf32>
    %280 = tpu.matmul %278, %279, %cst_86 {dimension_numbers = #tpu.dot_dimension_numbers<[1], [0], [0], [1], [0, 0, 1, 1], [], []>} : vector<8x128xbf16>, vector<128x256xbf16>, vector<8x256xf32> -> vector<8x256xf32>
    %c0_87 = arith.constant 0 : index
    %c0_88 = arith.constant 0 : index
    %281 = vector.load %arg6[%c0_87, %c0_88] : memref<1x256xf32, #tpu.memory_space<vmem>>, vector<1x256xf32>
    %282 = vector.broadcast %281 : vector<1x256xf32> to vector<8x256xf32>
    %283 = arith.addf %280, %282 : vector<8x256xf32>
    %cst_89 = arith.constant dense<0xFF800000> : vector<8xf32>
    %284 = vector.multi_reduction <maximumf>, %283, %cst_89 [1] : vector<8x256xf32> to vector<8xf32>
    %285 = vector.shape_cast %284 : vector<8xf32> to vector<8x1xf32>
    %286 = vector.broadcast %285 : vector<8x1xf32> to vector<8x256xf32>
    %287 = arith.subf %283, %286 : vector<8x256xf32>
    %288 = math.exp %287 : vector<8x256xf32>
    %cst_90 = arith.constant dense<0.000000e+00> : vector<8xf32>
    %289 = vector.multi_reduction <add>, %288, %cst_90 [1] : vector<8x256xf32> to vector<8xf32>
    %290 = vector.shape_cast %289 : vector<8xf32> to vector<8x1xf32>
    %291 = math.log %290 : vector<8x1xf32>
    %292 = arith.addf %291, %285 : vector<8x1xf32>
    %293 = vector.broadcast %292 : vector<8x1xf32> to vector<8x256xf32>
    %294 = arith.subf %283, %293 : vector<8x256xf32>
    %c0_91 = arith.constant 0 : index
    %c0_92 = arith.constant 0 : index
    %295 = vector.load %arg9[%c0_91, %c0_92] : memref<8x256xf32, #tpu.memory_space<vmem>>, vector<8x256xf32>
    tpu.vector_store %arg9[%c0_91, %c0_92], %294 {strides = array<i32>} : memref<8x256xf32, #tpu.memory_space<vmem>>, vector<8x256xf32>,
    return
  }
  func.func @transform_0(%arg0: i32) -> (i32, i32) {
    %c0_i32 = arith.constant 0 : i32
    %c0_i32_0 = arith.constant 0 : i32
    %c0_i32_1 = arith.constant 0 : i32
    return %c0_i32, %c0_i32_0 : i32, i32
  }
  func.func @transform_1(%arg0: i32) -> (i32, i32) {
    %c0_i32 = arith.constant 0 : i32
    %c0_i32_0 = arith.constant 0 : i32
    %c0_i32_1 = arith.constant 0 : i32
    return %c0_i32, %c0_i32_0 : i32, i32
  }
  func.func @transform_2(%arg0: i32) -> (i32, i32) {
    %c0_i32 = arith.constant 0 : i32
    %c0_i32_0 = arith.constant 0 : i32
    %c0_i32_1 = arith.constant 0 : i32
    return %c0_i32, %c0_i32_0 : i32, i32
  }
  func.func @transform_3(%arg0: i32) -> (i32, i32) {
    %c0_i32 = arith.constant 0 : i32
    %c0_i32_0 = arith.constant 0 : i32
    %c0_i32_1 = arith.constant 0 : i32
    return %c0_i32, %c0_i32_0 : i32, i32
  }
  func.func @transform_4(%arg0: i32) -> (i32, i32) {
    %c0_i32 = arith.constant 0 : i32
    %c0_i32_0 = arith.constant 0 : i32
    %c0_i32_1 = arith.constant 0 : i32
    return %c0_i32, %c0_i32_0 : i32, i32
  }
  func.func @transform_5(%arg0: i32) -> (i32, i32) {
    %c0_i32 = arith.constant 0 : i32
    %c0_i32_0 = arith.constant 0 : i32
    %c0_i32_1 = arith.constant 0 : i32
    return %c0_i32, %c0_i32_0 : i32, i32
  }
  func.func @transform_6(%arg0: i32) -> (i32, i32) {
    %c0_i32 = arith.constant 0 : i32
    %c0_i32_0 = arith.constant 0 : i32
    %c0_i32_1 = arith.constant 0 : i32
    return %c0_i32, %c0_i32_0 : i32, i32
  }
  func.func @transform_7(%arg0: i32) -> (i32, i32) {
    %c0_i32 = arith.constant 0 : i32
    %c0_i32_0 = arith.constant 0 : i32
    %c0_i32_1 = arith.constant 0 : i32
    return %c0_i32, %c0_i32_0 : i32, i32
  }
  func.func @transform_8(%arg0: i32) -> (i32, i32) {
    %c0_i32 = arith.constant 0 : i32
    %c0_i32_0 = arith.constant 0 : i32
    %c0_i32_1 = arith.constant 0 : i32
    return %c0_i32, %c0_i32_0 : i32, i32
  }
  func.func @transform_9(%arg0: i32) -> (i32, i32) {
    %c0_i32 = arith.constant 0 : i32
    %c0_i32_0 = arith.constant 0 : i32
    %c0_i32_1 = arith.constant 0 : i32
    return %c0_i32, %c0_i32_0 : i32, i32
  }
  func.func @transform_10(%arg0: i32) -> (i32, i32) {
    %c0_i32 = arith.constant 0 : i32
    %c0_i32_0 = arith.constant 0 : i32
    %c0_i32_1 = arith.constant 0 : i32
    return %c0_i32, %c0_i32_0 : i32, i32
  }
}

</mosaic_0001>

<llo_original>
// kernel: lstm_predictor_forward.1
$region0: #{lstm_predictor_forward.1}
  #allocation0 [shape = 'u32[]', space=smem, size = 0x4, offset = 0x4, fixed_abs, tag = 'smem constant byte address 0x4 - core index']
  #allocation1 [shape = 'u32[72,128]{1,0:T(1,128)}', space=vmem, size = 0x9000, scoped, tag = 'internal scratch']
  #allocation2 [shape = 'f32[8,512]{1,0:T(8,128)}', space=vmem, size = 0x4000, scoped, tag = 'scratch operand']
  #allocation3 [shape = 'f32[8,128]{1,0:T(8,128)}', space=vmem, size = 0x1000, scoped, tag = 'scratch operand']
  %s0 = inlined_call_operand.vmem [shape: bf16[8,128], index: 0, kind: input, shape index: {}]
  %s1 = inlined_call_operand.hbm [shape: bf16[128,512], index: 1, kind: input, shape index: {}]
  %s2 = inlined_call_operand.hbm [shape: bf16[128,512], index: 2, kind: input, shape index: {}]
  %s3 = inlined_call_operand.vmem [shape: f32[1,512], index: 3, kind: input, shape index: {}]
  %s4 = inlined_call_operand.hbm [shape: bf16[128,256], index: 4, kind: input, shape index: {}]
  %s5 = inlined_call_operand.vmem [shape: f32[1,256], index: 5, kind: input, shape index: {}]
  %s6 = inlined_call_operand.vmem [shape: f32[1,128], index: 6, kind: input, shape index: {}]
  %s7 = inlined_call_operand.vmem [shape: f32[1,128], index: 7, kind: input, shape index: {}]
  %s8 = inlined_call_operand.hbm [shape: f32[8,256], index: 8, kind: output, shape index: {0}]
  %s9 = inlined_call_operand.hbm [shape: f32[1,128], index: 9, kind: output, shape index: {1}]
  %s10 = inlined_call_operand.hbm [shape: f32[1,128], index: 10, kind: output, shape index: {2}]
  %11 = xla_tuple %s8, %s9, %s10
  %s12 = sld [smem:[#allocation0]]
  $region70: #{lstm_predictor_forward.1} parent=0
    _
  %s14 = ssub.s32 1, %s12
  %s15 = scalar_select 0, %s14, %s12
  $region1: #{lstm_predictor_forward.1} parent=0
    #allocation4 [shape = 'u8[131072]{0}', space=vmem, size = 0x20000, scoped, tag = 'input window, operand 1, single buffered']
    #allocation5 [shape = 's32[1]{0}', space=sflag, size = 0x4, scoped, tag = 'scoped memory for lstm_predictor_forward.1']
    #allocation6 [shape = 's32[1]{0}', space=sflag, size = 0x4, scoped, tag = 'scoped memory for lstm_predictor_forward.1']
    #allocation7 [shape = 'u8[131072]{0}', space=vmem, size = 0x20000, scoped, tag = 'input window, operand 2, single buffered']
    #allocation8 [shape = 's32[1]{0}', space=sflag, size = 0x4, scoped, tag = 'scoped memory for lstm_predictor_forward.1']
    #allocation9 [shape = 'u8[65536]{0}', space=vmem, size = 0x10000, scoped, tag = 'input window, operand 4, single buffered']
    #allocation10 [shape = 'u8[8192]{0}', space=vmem, size = 0x2000, scoped, tag = 'output window, operand 0, single buffered']
    #allocation11 [shape = 'u8[512]{0}', space=vmem, size = 0x400, scoped, tag = 'output window, operand 1, single buffered']
    #allocation12 [shape = 's32[1]{0}', space=sflag, size = 0x4, scoped, tag = 'scoped memory for lstm_predictor_forward.1']
    #allocation13 [shape = 'u8[512]{0}', space=vmem, size = 0x400, scoped, tag = 'output window, operand 2, single buffered']
    %16 = vsyncpa [#allocation5], 0
    %17 = vsyncpa [#allocation8], 0
    %18 = vsyncpa [#allocation6], 0
    %19 = vsyncpa [#allocation12], 0
    // Predicated region
    $region2: #{lstm_predictor_forward.1} parent=1 // pred_check
      _
    $region3: #{lstm_predictor_forward.1} parent=1 // pred_check_branch
      %21 = sbr.rel (0) target = $region5
    $region4: #{lstm_predictor_forward.1} parent=1 // pred_region
      _
    $region5: #{lstm_predictor_forward.1} parent=1 // pred_fallthru
      _
    // Predicated region
    $region6: #{lstm_predictor_forward.1} parent=1 // pred_check
      _
    $region7: #{lstm_predictor_forward.1} parent=1 // pred_check_branch
      %23 = sbr.rel (0) target = $region9
    $region8: #{lstm_predictor_forward.1} parent=1 // pred_region
      %25 = vsyncadd [#allocation5], 0
      %s26 = sshll.u32 %s1, 4
      %s27 = int_to_ptr.hbm [resolvable:$true] %s26
      %s28 = sshll.u32 [#allocation4], 4
      %s29 = int_to_ptr.vmem [resolvable:$true] %s28
      %34 = dma.hbm_to_vmem [thread:$0]  %s27, 4096, %s29, [#allocation5], 256, 256, 16
    $region9: #{lstm_predictor_forward.1} parent=1 // pred_fallthru
      _
    // Predicated region
    $region10: #{lstm_predictor_forward.1} parent=1 // pred_check
      _
    $region11: #{lstm_predictor_forward.1} parent=1 // pred_check_branch
      %36 = sbr.rel (0) target = $region13
    $region12: #{lstm_predictor_forward.1} parent=1 // pred_region
      %38 = vsyncadd [#allocation8], 0
      %s39 = sshll.u32 %s2, 4
      %s40 = int_to_ptr.hbm [resolvable:$true] %s39
      %s41 = sshll.u32 [#allocation7], 4
      %s42 = int_to_ptr.vmem [resolvable:$true] %s41
      %47 = dma.hbm_to_vmem [thread:$0]  %s40, 4096, %s42, [#allocation8], 256, 256, 16
    $region13: #{lstm_predictor_forward.1} parent=1 // pred_fallthru
      _
    // Predicated region
    $region14: #{lstm_predictor_forward.1} parent=1 // pred_check
      _
    $region15: #{lstm_predictor_forward.1} parent=1 // pred_check_branch
      %49 = sbr.rel (0) target = $region17
    $region16: #{lstm_predictor_forward.1} parent=1 // pred_region
      _
    $region17: #{lstm_predictor_forward.1} parent=1 // pred_fallthru
      _
    // Predicated region
    $region18: #{lstm_predictor_forward.1} parent=1 // pred_check
      _
    $region19: #{lstm_predictor_forward.1} parent=1 // pred_check_branch
      %51 = sbr.rel (0) target = $region21
    $region20: #{lstm_predictor_forward.1} parent=1 // pred_region
      %53 = vsyncadd [#allocation8], 0
      %s54 = sshll.u32 %s4, 4
      %s55 = int_to_ptr.hbm [resolvable:$true] %s54
      %s56 = sshll.u32 [#allocation9], 4
      %s57 = int_to_ptr.vmem [resolvable:$true] %s56
      %62 = dma.hbm_to_vmem [thread:$0]  %s55, 2048, %s57, [#allocation8], 128, 128, 8
    $region21: #{lstm_predictor_forward.1} parent=1 // pred_fallthru
      _
    // Predicated region
    $region22: #{lstm_predictor_forward.1} parent=1 // pred_check
      _
    $region23: #{lstm_predictor_forward.1} parent=1 // pred_check_branch
      %64 = sbr.rel (0) target = $region25
    $region24: #{lstm_predictor_forward.1} parent=1 // pred_region
      _
    $region25: #{lstm_predictor_forward.1} parent=1 // pred_fallthru
      _
    // Predicated region
    $region26: #{lstm_predictor_forward.1} parent=1 // pred_check
      _
    $region27: #{lstm_predictor_forward.1} parent=1 // pred_check_branch
      %66 = sbr.rel (0) target = $region29
    $region28: #{lstm_predictor_forward.1} parent=1 // pred_region
      _
    $region29: #{lstm_predictor_forward.1} parent=1 // pred_fallthru
      _
    // Predicated region
    $region30: #{lstm_predictor_forward.1} parent=1 // pred_check
      _
    $region31: #{lstm_predictor_forward.1} parent=1 // pred_check_branch
      %68 = sbr.rel (0) target = $region33
    $region32: #{lstm_predictor_forward.1} parent=1 // pred_region
      _
    $region33: #{lstm_predictor_forward.1} parent=1 // pred_fallthru
      _
    // Predicated region
    $region34: #{lstm_predictor_forward.1} parent=1 // pred_check
      _
    $region35: #{lstm_predictor_forward.1} parent=1 // pred_check_branch
      %70 = sbr.rel (0) target = $region37
    $region36: #{lstm_predictor_forward.1} parent=1 // pred_region
      %72 = dma.done [#allocation5], 4096
    $region37: #{lstm_predictor_forward.1} parent=1 // pred_fallthru
      _
    // Predicated region
    $region38: #{lstm_predictor_forward.1} parent=1 // pred_check
      _
    $region39: #{lstm_predictor_forward.1} parent=1 // pred_check_branch
      %74 = sbr.rel (0) target = $region41
    $region40: #{lstm_predictor_forward.1} parent=1 // pred_region
      %76 = dma.done [#allocation8], 4096
    $region41: #{lstm_predictor_forward.1} parent=1 // pred_fallthru
      _
    // Predicated region
    $region42: #{lstm_predictor_forward.1} parent=1 // pred_check
      _
    $region43: #{lstm_predictor_forward.1} parent=1 // pred_check_branch
      %78 = sbr.rel (0) target = $region45
    $region44: #{lstm_predictor_forward.1} parent=1 // pred_region
      %80 = dma.done [#allocation8], 2048
    $region45: #{lstm_predictor_forward.1} parent=1 // pred_fallthru
      _
    %v81 = vld [vmem:[%s0] sm:$0xf]
    %v82 = vld [vmem:[#allocation4] sm:$0xff]
    %v83 = vld [vmem:[#allocation4 + $0x8] sm:$0xff]
    %v84 = vld [vmem:[#allocation4 + $0x10] sm:$0xff]
    %v85 = vld [vmem:[#allocation4 + $0x18] sm:$0xff]
    %v86 = vld [vmem:[#allocation4 + $0x20] sm:$0xff]
    %v87 = vld [vmem:[#allocation4 + $0x28] sm:$0xff]
    %v88 = vld [vmem:[#allocation4 + $0x30] sm:$0xff]
    %v89 = vld [vmem:[#allocation4 + $0x38] sm:$0xff]
    %v90 = vld [vmem:[#allocation4 + $0x40] sm:$0xff]
    %v91 = vld [vmem:[#allocation4 + $0x48] sm:$0xff]
    %v92 = vld [vmem:[#allocation4 + $0x50] sm:$0xff]
    %v93 = vld [vmem:[#allocation4 + $0x58] sm:$0xff]
    %v94 = vld [vmem:[#allocation4 + $0x60] sm:$0xff]
    %v95 = vld [vmem:[#allocation4 + $0x68] sm:$0xff]
    %v96 = vld [vmem:[#allocation4 + $0x70] sm:$0xff]
    %v97 = vld [vmem:[#allocation4 + $0x78] sm:$0xff]
    %v98 = vld [vmem:[#allocation4 + $0x80] sm:$0xff]
    %v99 = vld [vmem:[#allocation4 + $0x88] sm:$0xff]
    %v100 = vld [vmem:[#allocation4 + $0x90] sm:$0xff]
    %v101 = vld [vmem:[#allocation4 + $0x98] sm:$0xff]
    %v102 = vld [vmem:[#allocation4 + $0xa0] sm:$0xff]
    %v103 = vld [vmem:[#allocation4 + $0xa8] sm:$0xff]
    %v104 = vld [vmem:[#allocation4 + $0xb0] sm:$0xff]
    %v105 = vld [vmem:[#allocation4 + $0xb8] sm:$0xff]
    %v106 = vld [vmem:[#allocation4 + $0xc0] sm:$0xff]
    %v107 = vld [vmem:[#allocation4 + $0xc8] sm:$0xff]
    %v108 = vld [vmem:[#allocation4 + $0xd0] sm:$0xff]
    %v109 = vld [vmem:[#allocation4 + $0xd8] sm:$0xff]
    %v110 = vld [vmem:[#allocation4 + $0xe0] sm:$0xff]
    %v111 = vld [vmem:[#allocation4 + $0xe8] sm:$0xff]
    %v112 = vld [vmem:[#allocation4 + $0xf0] sm:$0xff]
    %v113 = vld [vmem:[#allocation4 + $0xf8] sm:$0xff]
    %v114 = vld [vmem:[%s3] sm:$0xf]
    %v116 = vperm.slane %v114, 0
    %v117 = vperm.slane %v114, 1
    %v118 = vperm.slane %v114, 2
    %v119 = vperm.slane %v114, 3
    %v156 = vunpack.c.l.b16 %v82
    %v157 = vunpack.c.h.b16 %v82
    %v158 = vunpack.c.l.b16 %v83
    %v159 = vunpack.c.h.b16 %v83
    %v160 = vunpack.c.l.b16 %v84
    %v161 = vunpack.c.h.b16 %v84
    %v162 = vunpack.c.l.b16 %v85
    %v163 = vunpack.c.h.b16 %v85
    %v164 = vunpack.c.l.b16 %v86
    %v165 = vunpack.c.h.b16 %v86
    %v166 = vunpack.c.l.b16 %v87
    %v167 = vunpack.c.h.b16 %v87
    %v168 = vunpack.c.l.b16 %v88
    %v169 = vunpack.c.h.b16 %v88
    %v170 = vunpack.c.l.b16 %v89
    %v171 = vunpack.c.h.b16 %v89
    %v172 = vunpack.c.l.b16 %v90
    %v173 = vunpack.c.h.b16 %v90
    %v174 = vunpack.c.l.b16 %v91
    %v175 = vunpack.c.h.b16 %v91
    %v176 = vunpack.c.l.b16 %v92
    %v177 = vunpack.c.h.b16 %v92
    %v178 = vunpack.c.l.b16 %v93
    %v179 = vunpack.c.h.b16 %v93
    %v180 = vunpack.c.l.b16 %v94
    %v181 = vunpack.c.h.b16 %v94
    %v182 = vunpack.c.l.b16 %v95
    %v183 = vunpack.c.h.b16 %v95
    %v184 = vunpack.c.l.b16 %v96
    %v185 = vunpack.c.h.b16 %v96
    %v186 = vunpack.c.l.b16 %v97
    %v187 = vunpack.c.h.b16 %v97
    %v188 = vunpack.c.l.b16 %v98
    %v189 = vunpack.c.h.b16 %v98
    %v190 = vunpack.c.l.b16 %v99
    %v191 = vunpack.c.h.b16 %v99
    %v192 = vunpack.c.l.b16 %v100
    %v193 = vunpack.c.h.b16 %v100
    %v194 = vunpack.c.l.b16 %v101
    %v195 = vunpack.c.h.b16 %v101
    %v196 = vunpack.c.l.b16 %v102
    %v197 = vunpack.c.h.b16 %v102
    %v198 = vunpack.c.l.b16 %v103
    %v199 = vunpack.c.h.b16 %v103
    %v200 = vunpack.c.l.b16 %v104
    %v201 = vunpack.c.h.b16 %v104
    %v202 = vunpack.c.l.b16 %v105
    %v203 = vunpack.c.h.b16 %v105
    %v204 = vunpack.c.l.b16 %v106
    %v205 = vunpack.c.h.b16 %v106
    %v206 = vunpack.c.l.b16 %v107
    %v207 = vunpack.c.h.b16 %v107
    %v208 = vunpack.c.l.b16 %v108
    %v209 = vunpack.c.h.b16 %v108
    %v210 = vunpack.c.l.b16 %v109
    %v211 = vunpack.c.h.b16 %v109
    %v212 = vunpack.c.l.b16 %v110
    %v213 = vunpack.c.h.b16 %v110
    %v214 = vunpack.c.l.b16 %v111
    %v215 = vunpack.c.h.b16 %v111
    %v216 = vunpack.c.l.b16 %v112
    %v217 = vunpack.c.h.b16 %v112
    %v218 = vunpack.c.l.b16 %v113
    %v219 = vunpack.c.h.b16 %v113
    %v220 = vpack.c.b16 %v160, %v156
    %v221 = vpack.c.b16 %v161, %v157
    %v222 = vpack.c.b16 %v162, %v158
    %v223 = vpack.c.b16 %v163, %v159
    %v224 = vpack.c.b16 %v168, %v164
    %v225 = vpack.c.b16 %v169, %v165
    %v226 = vpack.c.b16 %v170, %v166
    %v227 = vpack.c.b16 %v171, %v167
    %v228 = vpack.c.b16 %v176, %v172
    %v229 = vpack.c.b16 %v177, %v173
    %v230 = vpack.c.b16 %v178, %v174
    %v231 = vpack.c.b16 %v179, %v175
    %v232 = vpack.c.b16 %v184, %v180
    %v233 = vpack.c.b16 %v185, %v181
    %v234 = vpack.c.b16 %v186, %v182
    %v235 = vpack.c.b16 %v187, %v183
    %v236 = vpack.c.b16 %v192, %v188
    %v237 = vpack.c.b16 %v193, %v189
    %v238 = vpack.c.b16 %v194, %v190
    %v239 = vpack.c.b16 %v195, %v191
    %v240 = vpack.c.b16 %v200, %v196
    %v241 = vpack.c.b16 %v201, %v197
    %v242 = vpack.c.b16 %v202, %v198
    %v243 = vpack.c.b16 %v203, %v199
    %v244 = vpack.c.b16 %v208, %v204
    %v245 = vpack.c.b16 %v209, %v205
    %v246 = vpack.c.b16 %v210, %v206
    %v247 = vpack.c.b16 %v211, %v207
    %v248 = vpack.c.b16 %v216, %v212
    %v249 = vpack.c.b16 %v217, %v213
    %v250 = vpack.c.b16 %v218, %v214
    %v251 = vpack.c.b16 %v219, %v215
    %284 = vmatpush.bf16.msra.mxu0 %v248
    %285 = vmatpush.bf16.msra.mxu0 %v244
    %286 = vmatpush.bf16.msra.mxu0 %v240
    %287 = vmatpush.bf16.msra.mxu0 %v236
    %288 = vmatpush.bf16.msra.mxu0 %v232
    %289 = vmatpush.bf16.msra.mxu0 %v228
    %290 = vmatpush.bf16.msra.mxu0 %v224
    %291 = vmatpush.bf16.msra.mxu0 %v220
    %292 = vmatmul.bf16.gmra.mxu0 %v81
    %v293 = vpop.f32.mrf.mxu0
    %v294 = vadd.f32 %v116, %v293
    %v295 = vpop.f32.mrf.mxu0
    %296 = vdwg.mxu0
    %297 = vmatpush.bf16.msra.mxu0 %v249
    %298 = vmatpush.bf16.msra.mxu0 %v245
    %299 = vmatpush.bf16.msra.mxu0 %v241
    %300 = vmatpush.bf16.msra.mxu0 %v237
    %301 = vmatpush.bf16.msra.mxu0 %v233
    %302 = vmatpush.bf16.msra.mxu0 %v229
    %303 = vmatpush.bf16.msra.mxu0 %v225
    %304 = vmatpush.bf16.msra.mxu0 %v221
    %305 = vmatmul.bf16.gmra.mxu0 %v81
    %v306 = vpop.f32.mrf.mxu0
    %v307 = vadd.f32 %v117, %v306
    %v308 = vpop.f32.mrf.mxu0
    %309 = vdwg.mxu0
    %310 = vmatpush.bf16.msra.mxu0 %v250
    %311 = vmatpush.bf16.msra.mxu0 %v246
    %312 = vmatpush.bf16.msra.mxu0 %v242
    %313 = vmatpush.bf16.msra.mxu0 %v238
    %314 = vmatpush.bf16.msra.mxu0 %v234
    %315 = vmatpush.bf16.msra.mxu0 %v230
    %316 = vmatpush.bf16.msra.mxu0 %v226
    %317 = vmatpush.bf16.msra.mxu0 %v222
    %318 = vmatmul.bf16.gmra.mxu0 %v81
    %v319 = vpop.f32.mrf.mxu0
    %v320 = vadd.f32 %v118, %v319
    %v321 = vpop.f32.mrf.mxu0
    %322 = vdwg.mxu0
    %323 = vmatpush.bf16.msra.mxu0 %v251
    %324 = vmatpush.bf16.msra.mxu0 %v247
    %325 = vmatpush.bf16.msra.mxu0 %v243
    %326 = vmatpush.bf16.msra.mxu0 %v239
    %327 = vmatpush.bf16.msra.mxu0 %v235
    %328 = vmatpush.bf16.msra.mxu0 %v231
    %329 = vmatpush.bf16.msra.mxu0 %v227
    %330 = vmatpush.bf16.msra.mxu0 %v223
    %331 = vmatmul.bf16.gmra.mxu0 %v81
    %v332 = vpop.f32.mrf.mxu0
    %v333 = vadd.f32 %v119, %v332
    %v334 = vpop.f32.mrf.mxu0
    %335 = vdwg.mxu0
    %336 = vst [vmem:[#allocation2] sm:$0xff] %v294
    %337 = vst [vmem:[#allocation2 + $0x8] sm:$0xff] %v307
    %338 = vst [vmem:[#allocation2 + $0x10] sm:$0xff] %v320
    %339 = vst [vmem:[#allocation2 + $0x18] sm:$0xff] %v333
    %340 = vst [vmem:[#allocation3] sm:$0xff] 0.0
    %v341 = vld [vmem:[%s6] sm:$0x1]
    %v342 = vld [vmem:[%s7] sm:$0x1]
    %v343 = vld [vmem:[#allocation2] ss:$8 sm:$0xf]
    %v344 = vpack.c.bf16 %v341, %v341
    %v345 = vld [vmem:[#allocation7] sm:$0xff]
    %v346 = vld [vmem:[#allocation7 + $0x8] sm:$0xff]
    %v347 = vld [vmem:[#allocation7 + $0x10] sm:$0xff]
    %v348 = vld [vmem:[#allocation7 + $0x18] sm:$0xff]
    %v349 = vld [vmem:[#allocation7 + $0x20] sm:$0xff]
    %v350 = vld [vmem:[#allocation7 + $0x28] sm:$0xff]
    %v351 = vld [vmem:[#allocation7 + $0x30] sm:$0xff]
    %v352 = vld [vmem:[#allocation7 + $0x38] sm:$0xff]
    %v353 = vld [vmem:[#allocation7 + $0x40] sm:$0xff]
    %v354 = vld [vmem:[#allocation7 + $0x48] sm:$0xff]
    %v355 = vld [vmem:[#allocation7 + $0x50] sm:$0xff]
    %v356 = vld [vmem:[#allocation7 + $0x58] sm:$0xff]
    %v357 = vld [vmem:[#allocation7 + $0x60] sm:$0xff]
    %v358 = vld [vmem:[#allocation7 + $0x68] sm:$0xff]
    %v359 = vld [vmem:[#allocation7 + $0x70] sm:$0xff]
    %v360 = vld [vmem:[#allocation7 + $0x78] sm:$0xff]
    %v361 = vld [vmem:[#allocation7 + $0x80] sm:$0xff]
    %v362 = vld [vmem:[#allocation7 + $0x88] sm:$0xff]
    %v363 = vld [vmem:[#allocation7 + $0x90] sm:$0xff]
    %v364 = vld [vmem:[#allocation7 + $0x98] sm:$0xff]
    %v365 = vld [vmem:[#allocation7 + $0xa0] sm:$0xff]
    %v366 = vld [vmem:[#allocation7 + $0xa8] sm:$0xff]
    %v367 = vld [vmem:[#allocation7 + $0xb0] sm:$0xff]
    %v368 = vld [vmem:[#allocation7 + $0xb8] sm:$0xff]
    %v369 = vld [vmem:[#allocation7 + $0xc0] sm:$0xff]
    %v370 = vld [vmem:[#allocation7 + $0xc8] sm:$0xff]
    %v371 = vld [vmem:[#allocation7 + $0xd0] sm:$0xff]
    %v372 = vld [vmem:[#allocation7 + $0xd8] sm:$0xff]
    %v373 = vld [vmem:[#allocation7 + $0xe0] sm:$0xff]
    %v374 = vld [vmem:[#allocation7 + $0xe8] sm:$0xff]
    %v375 = vld [vmem:[#allocation7 + $0xf0] sm:$0xff]
    %v376 = vld [vmem:[#allocation7 + $0xf8] sm:$0xff]
    %v409 = vunpack.c.l.b16 %v345
    %v410 = vunpack.c.h.b16 %v345
    %v411 = vunpack.c.l.b16 %v346
    %v412 = vunpack.c.h.b16 %v346
    %v413 = vunpack.c.l.b16 %v347
    %v414 = vunpack.c.h.b16 %v347
    %v415 = vunpack.c.l.b16 %v348
    %v416 = vunpack.c.h.b16 %v348
    %v417 = vunpack.c.l.b16 %v349
    %v418 = vunpack.c.h.b16 %v349
    %v419 = vunpack.c.l.b16 %v350
    %v420 = vunpack.c.h.b16 %v350
    %v421 = vunpack.c.l.b16 %v351
    %v422 = vunpack.c.h.b16 %v351
    %v423 = vunpack.c.l.b16 %v352
    %v424 = vunpack.c.h.b16 %v352
    %v425 = vunpack.c.l.b16 %v353
    %v426 = vunpack.c.h.b16 %v353
    %v427 = vunpack.c.l.b16 %v354
    %v428 = vunpack.c.h.b16 %v354
    %v429 = vunpack.c.l.b16 %v355
    %v430 = vunpack.c.h.b16 %v355
    %v431 = vunpack.c.l.b16 %v356
    %v432 = vunpack.c.h.b16 %v356
    %v433 = vunpack.c.l.b16 %v357
    %v434 = vunpack.c.h.b16 %v357
    %v435 = vunpack.c.l.b16 %v358
    %v436 = vunpack.c.h.b16 %v358
    %v437 = vunpack.c.l.b16 %v359
    %v438 = vunpack.c.h.b16 %v359
    %v439 = vunpack.c.l.b16 %v360
    %v440 = vunpack.c.h.b16 %v360
    %v441 = vunpack.c.l.b16 %v361
    %v442 = vunpack.c.h.b16 %v361
    %v443 = vunpack.c.l.b16 %v362
    %v444 = vunpack.c.h.b16 %v362
    %v445 = vunpack.c.l.b16 %v363
    %v446 = vunpack.c.h.b16 %v363
    %v447 = vunpack.c.l.b16 %v364
    %v448 = vunpack.c.h.b16 %v364
    %v449 = vunpack.c.l.b16 %v365
    %v450 = vunpack.c.h.b16 %v365
    %v451 = vunpack.c.l.b16 %v366
    %v452 = vunpack.c.h.b16 %v366
    %v453 = vunpack.c.l.b16 %v367
    %v454 = vunpack.c.h.b16 %v367
    %v455 = vunpack.c.l.b16 %v368
    %v456 = vunpack.c.h.b16 %v368
    %v457 = vunpack.c.l.b16 %v369
    %v458 = vunpack.c.h.b16 %v369
    %v459 = vunpack.c.l.b16 %v370
    %v460 = vunpack.c.h.b16 %v370
    %v461 = vunpack.c.l.b16 %v371
    %v462 = vunpack.c.h.b16 %v371
    %v463 = vunpack.c.l.b16 %v372
    %v464 = vunpack.c.h.b16 %v372
    %v465 = vunpack.c.l.b16 %v373
    %v466 = vunpack.c.h.b16 %v373
    %v467 = vunpack.c.l.b16 %v374
    %v468 = vunpack.c.h.b16 %v374
    %v469 = vunpack.c.l.b16 %v375
    %v470 = vunpack.c.h.b16 %v375
    %v471 = vunpack.c.l.b16 %v376
    %v472 = vunpack.c.h.b16 %v376
    %v473 = vpack.c.b16 %v413, %v409
    %v474 = vpack.c.b16 %v414, %v410
    %v475 = vpack.c.b16 %v415, %v411
    %v476 = vpack.c.b16 %v416, %v412
    %v477 = vpack.c.b16 %v421, %v417
    %v478 = vpack.c.b16 %v422, %v418
    %v479 = vpack.c.b16 %v423, %v419
    %v480 = vpack.c.b16 %v424, %v420
    %v481 = vpack.c.b16 %v429, %v425
    %v482 = vpack.c.b16 %v430, %v426
    %v483 = vpack.c.b16 %v431, %v427
    %v484 = vpack.c.b16 %v432, %v428
    %v485 = vpack.c.b16 %v437, %v433
    %v486 = vpack.c.b16 %v438, %v434
    %v487 = vpack.c.b16 %v439, %v435
    %v488 = vpack.c.b16 %v440, %v436
    %v489 = vpack.c.b16 %v445, %v441
    %v490 = vpack.c.b16 %v446, %v442
    %v491 = vpack.c.b16 %v447, %v443
    %v492 = vpack.c.b16 %v448, %v444
    %v493 = vpack.c.b16 %v453, %v449
    %v494 = vpack.c.b16 %v454, %v450
    %v495 = vpack.c.b16 %v455, %v451
    %v496 = vpack.c.b16 %v456, %v452
    %v497 = vpack.c.b16 %v461, %v457
    %v498 = vpack.c.b16 %v462, %v458
    %v499 = vpack.c.b16 %v463, %v459
    %v500 = vpack.c.b16 %v464, %v460
    %v501 = vpack.c.b16 %v469, %v465
    %v502 = vpack.c.b16 %v470, %v466
    %v503 = vpack.c.b16 %v471, %v467
    %v504 = vpack.c.b16 %v472, %v468
    %537 = vmatpush.bf16.msra.mxu0 %v501
    %538 = vmatpush.bf16.msra.mxu0 %v497
    %539 = vmatpush.bf16.msra.mxu0 %v493
    %540 = vmatpush.bf16.msra.mxu0 %v489
    %541 = vmatpush.bf16.msra.mxu0 %v485
    %542 = vmatpush.bf16.msra.mxu0 %v481
    %543 = vmatpush.bf16.msra.mxu0 %v477
    %544 = vmatpush.bf16.msra.mxu0 %v473
    %545 = vmatmul.bf16.gmra.mxu0 %v344
    %v546 = vpop.f32.mrf.mxu0
    %v547 = vadd.f32 0.0, %v546
    %v548 = vpop.f32.mrf.mxu0
    %549 = vdwg.mxu0
    %550 = vmatpush.bf16.msra.mxu0 %v502
    %551 = vmatpush.bf16.msra.mxu0 %v498
    %552 = vmatpush.bf16.msra.mxu0 %v494
    %553 = vmatpush.bf16.msra.mxu0 %v490
    %554 = vmatpush.bf16.msra.mxu0 %v486
    %555 = vmatpush.bf16.msra.mxu0 %v482
    %556 = vmatpush.bf16.msra.mxu0 %v478
    %557 = vmatpush.bf16.msra.mxu0 %v474
    %558 = vmatmul.bf16.gmra.mxu0 %v344
    %v559 = vpop.f32.mrf.mxu0
    %v560 = vadd.f32 0.0, %v559
    %v561 = vpop.f32.mrf.mxu0
    %562 = vdwg.mxu0
    %563 = vmatpush.bf16.msra.mxu0 %v503
    %564 = vmatpush.bf16.msra.mxu0 %v499
    %565 = vmatpush.bf16.msra.mxu0 %v495
    %566 = vmatpush.bf16.msra.mxu0 %v491
    %567 = vmatpush.bf16.msra.mxu0 %v487
    %568 = vmatpush.bf16.msra.mxu0 %v483
    %569 = vmatpush.bf16.msra.mxu0 %v479
    %570 = vmatpush.bf16.msra.mxu0 %v475
    %571 = vmatmul.bf16.gmra.mxu0 %v344
    %v572 = vpop.f32.mrf.mxu0
    %v573 = vadd.f32 0.0, %v572
    %v574 = vpop.f32.mrf.mxu0
    %575 = vdwg.mxu0
    %576 = vmatpush.bf16.msra.mxu0 %v504
    %577 = vmatpush.bf16.msra.mxu0 %v500
    %578 = vmatpush.bf16.msra.mxu0 %v496
    %579 = vmatpush.bf16.msra.mxu0 %v492
    %580 = vmatpush.bf16.msra.mxu0 %v488
    %581 = vmatpush.bf16.msra.mxu0 %v484
    %582 = vmatpush.bf16.msra.mxu0 %v480
    %583 = vmatpush.bf16.msra.mxu0 %v476
    %584 = vmatmul.bf16.gmra.mxu0 %v344
    %v585 = vpop.f32.mrf.mxu0
    %v586 = vadd.f32 0.0, %v585
    %v587 = vpop.f32.mrf.mxu0
    %588 = vdwg.mxu0
    %v593 = vrot.slane %v560, 7
    %v594 = vrot.slane %v573, 6
    %v595 = vrot.slane %v586, 5
    %vm596 = vcmask 1040384
    %v597 = vsel %vm596, %v547, %v593
    %vm598 = vcmask 1042434
    %v599 = vsel %vm598, %v594, %v595
    %vm600 = vcmask 1041408
    %v601 = vsel %vm600, %v597, %v599
    %v603 = vadd.f32 %v343, %v601
    %v604 = vxor.u32 %v603, 2147483648
    %v605 = vmul.f32 %v604, 1.442695
    %v606 = vpow.pop %v605
    %v607 = vadd.f32 %v606, 1.0
    %v608 = vrcp.pop %v607
    %v609 = vmul.f32 %v607, %v608
    %v610 = vsub.f32 1.0, %v609
    %v611 = vmul.f32 %v608, %v610
    %v612 = vadd.f32 %v608, %v611
    %vm613 = vweird.f32 %v607
    %vm614 = vweird.f32 %v608
    %vm615 = vmor %vm613, %vm614
    %v616 = vsel %vm615, %v608, %v612
    %v617 = vand.u32 2147483647, %v607
    %vm618 = vcmp.eq.f32.partialorder %v617, 8.507059e+37
    %v619 = vand.u32 %v607, 2147483648
    %v620 = vor.u32 1.1754944e-38, %v619
    %v621 = vsel %vm618, %v620, %v616
    %v622 = vmul.f32 1.0, %v621
    %v624 = vrot.slane %v603, 1
    %v626 = vxor.u32 %v624, 2147483648
    %v627 = vmul.f32 %v626, 1.442695
    %v628 = vpow.pop %v627
    %v629 = vadd.f32 %v628, 1.0
    %v630 = vrcp.pop %v629
    %v631 = vmul.f32 %v629, %v630
    %v632 = vsub.f32 1.0, %v631
    %v633 = vmul.f32 %v630, %v632
    %v634 = vadd.f32 %v630, %v633
    %vm635 = vweird.f32 %v629
    %vm636 = vweird.f32 %v630
    %vm637 = vmor %vm635, %vm636
    %v638 = vsel %vm637, %v630, %v634
    %v639 = vand.u32 2147483647, %v629
    %vm640 = vcmp.eq.f32.partialorder %v639, 8.507059e+37
    %v641 = vand.u32 %v629, 2147483648
    %v642 = vor.u32 1.1754944e-38, %v641
    %v643 = vsel %vm640, %v642, %v638
    %v644 = vmul.f32 1.0, %v643
    %v645 = vrot.slane %v603, 2
    %v647 = vtanh.pop %v645
    %v648 = vrot.slane %v603, 3
    %v650 = vxor.u32 %v648, 2147483648
    %v651 = vmul.f32 %v650, 1.442695
    %v652 = vpow.pop %v651
    %v653 = vadd.f32 %v652, 1.0
    %v654 = vrcp.pop %v653
    %v655 = vmul.f32 %v653, %v654
    %v656 = vsub.f32 1.0, %v655
    %v657 = vmul.f32 %v654, %v656
    %v658 = vadd.f32 %v654, %v657
    %vm659 = vweird.f32 %v653
    %vm660 = vweird.f32 %v654
    %vm661 = vmor %vm659, %vm660
    %v662 = vsel %vm661, %v654, %v658
    %v663 = vand.u32 2147483647, %v653
    %vm664 = vcmp.eq.f32.partialorder %v663, 8.507059e+37
    %v665 = vand.u32 %v653, 2147483648
    %v666 = vor.u32 1.1754944e-38, %v665
    %v667 = vsel %vm664, %v666, %v662
    %v668 = vmul.f32 1.0, %v667
    %v669 = vmul.f32 %v644, %v342
    %v670 = vmul.f32 %v622, %v647
    %v671 = vadd.f32 %v669, %v670
    %v672 = vtanh.pop %v671
    %v673 = vmul.f32 %v668, %v672
    %674 = vst [vmem:[#allocation3] sm:$0x1] %v673
    %s675 = scalar_lea.vmem [#allocation2], 1
    %v676 = vld [vmem:[%s675] ss:$8 sm:$0xf]
    %v677 = vpack.c.bf16 %v673, %v673
    %v678 = vld [vmem:[#allocation7] sm:$0xff]
    %v679 = vld [vmem:[#allocation7 + $0x8] sm:$0xff]
    %v680 = vld [vmem:[#allocation7 + $0x10] sm:$0xff]
    %v681 = vld [vmem:[#allocation7 + $0x18] sm:$0xff]
    %v682 = vld [vmem:[#allocation7 + $0x20] sm:$0xff]
    %v683 = vld [vmem:[#allocation7 + $0x28] sm:$0xff]
    %v684 = vld [vmem:[#allocation7 + $0x30] sm:$0xff]
    %v685 = vld [vmem:[#allocation7 + $0x38] sm:$0xff]
    %v686 = vld [vmem:[#allocation7 + $0x40] sm:$0xff]
    %v687 = vld [vmem:[#allocation7 + $0x48] sm:$0xff]
    %v688 = vld [vmem:[#allocation7 + $0x50] sm:$0xff]
    %v689 = vld [vmem:[#allocation7 + $0x58] sm:$0xff]
    %v690 = vld [vmem:[#allocation7 + $0x60] sm:$0xff]
    %v691 = vld [vmem:[#allocation7 + $0x68] sm:$0xff]
    %v692 = vld [vmem:[#allocation7 + $0x70] sm:$0xff]
    %v693 = vld [vmem:[#allocation7 + $0x78] sm:$0xff]
    %v694 = vld [vmem:[#allocation7 + $0x80] sm:$0xff]
    %v695 = vld [vmem:[#allocation7 + $0x88] sm:$0xff]
    %v696 = vld [vmem:[#allocation7 + $0x90] sm:$0xff]
    %v697 = vld [vmem:[#allocation7 + $0x98] sm:$0xff]
    %v698 = vld [vmem:[#allocation7 + $0xa0] sm:$0xff]
    %v699 = vld [vmem:[#allocation7 + $0xa8] sm:$0xff]
    %v700 = vld [vmem:[#allocation7 + $0xb0] sm:$0xff]
    %v701 = vld [vmem:[#allocation7 + $0xb8] sm:$0xff]
    %v702 = vld [vmem:[#allocation7 + $0xc0] sm:$0xff]
    %v703 = vld [vmem:[#allocation7 + $0xc8] sm:$0xff]
    %v704 = vld [vmem:[#allocation7 + $0xd0] sm:$0xff]
    %v705 = vld [vmem:[#allocation7 + $0xd8] sm:$0xff]
    %v706 = vld [vmem:[#allocation7 + $0xe0] sm:$0xff]
    %v707 = vld [vmem:[#allocation7 + $0xe8] sm:$0xff]
    %v708 = vld [vmem:[#allocation7 + $0xf0] sm:$0xff]
    %v709 = vld [vmem:[#allocation7 + $0xf8] sm:$0xff]
    %v742 = vunpack.c.l.b16 %v678
    %v743 = vunpack.c.h.b16 %v678
    %v744 = vunpack.c.l.b16 %v679
    %v745 = vunpack.c.h.b16 %v679
    %v746 = vunpack.c.l.b16 %v680
    %v747 = vunpack.c.h.b16 %v680
    %v748 = vunpack.c.l.b16 %v681
    %v749 = vunpack.c.h.b16 %v681
    %v750 = vunpack.c.l.b16 %v682
    %v751 = vunpack.c.h.b16 %v682
    %v752 = vunpack.c.l.b16 %v683
    %v753 = vunpack.c.h.b16 %v683
    %v754 = vunpack.c.l.b16 %v684
    %v755 = vunpack.c.h.b16 %v684
    %v756 = vunpack.c.l.b16 %v685
    %v757 = vunpack.c.h.b16 %v685
    %v758 = vunpack.c.l.b16 %v686
    %v759 = vunpack.c.h.b16 %v686
    %v760 = vunpack.c.l.b16 %v687
    %v761 = vunpack.c.h.b16 %v687
    %v762 = vunpack.c.l.b16 %v688
    %v763 = vunpack.c.h.b16 %v688
    %v764 = vunpack.c.l.b16 %v689
    %v765 = vunpack.c.h.b16 %v689
    %v766 = vunpack.c.l.b16 %v690
    %v767 = vunpack.c.h.b16 %v690
    %v768 = vunpack.c.l.b16 %v691
    %v769 = vunpack.c.h.b16 %v691
    %v770 = vunpack.c.l.b16 %v692
    %v771 = vunpack.c.h.b16 %v692
    %v772 = vunpack.c.l.b16 %v693
    %v773 = vunpack.c.h.b16 %v693
    %v774 = vunpack.c.l.b16 %v694
    %v775 = vunpack.c.h.b16 %v694
    %v776 = vunpack.c.l.b16 %v695
    %v777 = vunpack.c.h.b16 %v695
    %v778 = vunpack.c.l.b16 %v696
    %v779 = vunpack.c.h.b16 %v696
    %v780 = vunpack.c.l.b16 %v697
    %v781 = vunpack.c.h.b16 %v697
    %v782 = vunpack.c.l.b16 %v698
    %v783 = vunpack.c.h.b16 %v698
    %v784 = vunpack.c.l.b16 %v699
    %v785 = vunpack.c.h.b16 %v699
    %v786 = vunpack.c.l.b16 %v700
    %v787 = vunpack.c.h.b16 %v700
    %v788 = vunpack.c.l.b16 %v701
    %v789 = vunpack.c.h.b16 %v701
    %v790 = vunpack.c.l.b16 %v702
    %v791 = vunpack.c.h.b16 %v702
    %v792 = vunpack.c.l.b16 %v703
    %v793 = vunpack.c.h.b16 %v703
    %v794 = vunpack.c.l.b16 %v704
    %v795 = vunpack.c.h.b16 %v704
    %v796 = vunpack.c.l.b16 %v705
    %v797 = vunpack.c.h.b16 %v705
    %v798 = vunpack.c.l.b16 %v706
    %v799 = vunpack.c.h.b16 %v706
    %v800 = vunpack.c.l.b16 %v707
    %v801 = vunpack.c.h.b16 %v707
    %v802 = vunpack.c.l.b16 %v708
    %v803 = vunpack.c.h.b16 %v708
    %v804 = vunpack.c.l.b16 %v709
    %v805 = vunpack.c.h.b16 %v709
    %v806 = vpack.c.b16 %v746, %v742
    %v807 = vpack.c.b16 %v747, %v743
    %v808 = vpack.c.b16 %v748, %v744
    %v809 = vpack.c.b16 %v749, %v745
    %v810 = vpack.c.b16 %v754, %v750
    %v811 = vpack.c.b16 %v755, %v751
    %v812 = vpack.c.b16 %v756, %v752
    %v813 = vpack.c.b16 %v757, %v753
    %v814 = vpack.c.b16 %v762, %v758
    %v815 = vpack.c.b16 %v763, %v759
    %v816 = vpack.c.b16 %v764, %v760
    %v817 = vpack.c.b16 %v765, %v761
    %v818 = vpack.c.b16 %v770, %v766
    %v819 = vpack.c.b16 %v771, %v767
    %v820 = vpack.c.b16 %v772, %v768
    %v821 = vpack.c.b16 %v773, %v769
    %v822 = vpack.c.b16 %v778, %v774
    %v823 = vpack.c.b16 %v779, %v775
    %v824 = vpack.c.b16 %v780, %v776
    %v825 = vpack.c.b16 %v781, %v777
    %v826 = vpack.c.b16 %v786, %v782
    %v827 = vpack.c.b16 %v787, %v783
    %v828 = vpack.c.b16 %v788, %v784
    %v829 = vpack.c.b16 %v789, %v785
    %v830 = vpack.c.b16 %v794, %v790
    %v831 = vpack.c.b16 %v795, %v791
    %v832 = vpack.c.b16 %v796, %v792
    %v833 = vpack.c.b16 %v797, %v793
    %v834 = vpack.c.b16 %v802, %v798
    %v835 = vpack.c.b16 %v803, %v799
    %v836 = vpack.c.b16 %v804, %v800
    %v837 = vpack.c.b16 %v805, %v801
    %870 = vmatpush.bf16.msra.mxu0 %v834
    %871 = vmatpush.bf16.msra.mxu0 %v830
    %872 = vmatpush.bf16.msra.mxu0 %v826
    %873 = vmatpush.bf16.msra.mxu0 %v822
    %874 = vmatpush.bf16.msra.mxu0 %v818
    %875 = vmatpush.bf16.msra.mxu0 %v814
    %876 = vmatpush.bf16.msra.mxu0 %v810
    %877 = vmatpush.bf16.msra.mxu0 %v806
    %878 = vmatmul.bf16.gmra.mxu0 %v677
    %v879 = vpop.f32.mrf.mxu0
    %v880 = vadd.f32 0.0, %v879
    %v881 = vpop.f32.mrf.mxu0
    %882 = vdwg.mxu0
    %883 = vmatpush.bf16.msra.mxu0 %v835
    %884 = vmatpush.bf16.msra.mxu0 %v831
    %885 = vmatpush.bf16.msra.mxu0 %v827
    %886 = vmatpush.bf16.msra.mxu0 %v823
    %887 = vmatpush.bf16.msra.mxu0 %v819
    %888 = vmatpush.bf16.msra.mxu0 %v815
    %889 = vmatpush.bf16.msra.mxu0 %v811
    %890 = vmatpush.bf16.msra.mxu0 %v807
    %891 = vmatmul.bf16.gmra.mxu0 %v677
    %v892 = vpop.f32.mrf.mxu0
    %v893 = vadd.f32 0.0, %v892
    %v894 = vpop.f32.mrf.mxu0
    %895 = vdwg.mxu0
    %896 = vmatpush.bf16.msra.mxu0 %v836
    %897 = vmatpush.bf16.msra.mxu0 %v832
    %898 = vmatpush.bf16.msra.mxu0 %v828
    %899 = vmatpush.bf16.msra.mxu0 %v824
    %900 = vmatpush.bf16.msra.mxu0 %v820
    %901 = vmatpush.bf16.msra.mxu0 %v816
    %902 = vmatpush.bf16.msra.mxu0 %v812
    %903 = vmatpush.bf16.msra.mxu0 %v808
    %904 = vmatmul.bf16.gmra.mxu0 %v677
    %v905 = vpop.f32.mrf.mxu0
    %v906 = vadd.f32 0.0, %v905
    %v907 = vpop.f32.mrf.mxu0
    %908 = vdwg.mxu0
    %909 = vmatpush.bf16.msra.mxu0 %v837
    %910 = vmatpush.bf16.msra.mxu0 %v833
    %911 = vmatpush.bf16.msra.mxu0 %v829
    %912 = vmatpush.bf16.msra.mxu0 %v825
    %913 = vmatpush.bf16.msra.mxu0 %v821
    %914 = vmatpush.bf16.msra.mxu0 %v817
    %915 = vmatpush.bf16.msra.mxu0 %v813
    %916 = vmatpush.bf16.msra.mxu0 %v809
    %917 = vmatmul.bf16.gmra.mxu0 %v677
    %v918 = vpop.f32.mrf.mxu0
    %v919 = vadd.f32 0.0, %v918
    %v920 = vpop.f32.mrf.mxu0
    %921 = vdwg.mxu0
    %v926 = vrot.slane %v893, 7
    %v927 = vrot.slane %v906, 6
    %v928 = vrot.slane %v919, 5
    %v929 = vsel %vm596, %v880, %v926
    %v930 = vsel %vm598, %v927, %v928
    %v931 = vsel %vm600, %v929, %v930
    %v933 = vadd.f32 %v676, %v931
    %v934 = vxor.u32 %v933, 2147483648
    %v935 = vmul.f32 %v934, 1.442695
    %v936 = vpow.pop %v935
    %v937 = vadd.f32 %v936, 1.0
    %v938 = vrcp.pop %v937
    %v939 = vmul.f32 %v937, %v938
    %v940 = vsub.f32 1.0, %v939
    %v941 = vmul.f32 %v938, %v940
    %v942 = vadd.f32 %v938, %v941
    %vm943 = vweird.f32 %v937
    %vm944 = vweird.f32 %v938
    %vm945 = vmor %vm943, %vm944
    %v946 = vsel %vm945, %v938, %v942
    %v947 = vand.u32 2147483647, %v937
    %vm948 = vcmp.eq.f32.partialorder %v947, 8.507059e+37
    %v949 = vand.u32 %v937, 2147483648
    %v950 = vor.u32 1.1754944e-38, %v949
    %v951 = vsel %vm948, %v950, %v946
    %v952 = vmul.f32 1.0, %v951
    %v954 = vrot.slane %v933, 1
    %v956 = vxor.u32 %v954, 2147483648
    %v957 = vmul.f32 %v956, 1.442695
    %v958 = vpow.pop %v957
    %v959 = vadd.f32 %v958, 1.0
    %v960 = vrcp.pop %v959
    %v961 = vmul.f32 %v959, %v960
    %v962 = vsub.f32 1.0, %v961
    %v963 = vmul.f32 %v960, %v962
    %v964 = vadd.f32 %v960, %v963
    %vm965 = vweird.f32 %v959
    %vm966 = vweird.f32 %v960
    %vm967 = vmor %vm965, %vm966
    %v968 = vsel %vm967, %v960, %v964
    %v969 = vand.u32 2147483647, %v959
    %vm970 = vcmp.eq.f32.partialorder %v969, 8.507059e+37
    %v971 = vand.u32 %v959, 2147483648
    %v972 = vor.u32 1.1754944e-38, %v971
    %v973 = vsel %vm970, %v972, %v968
    %v974 = vmul.f32 1.0, %v973
    %v975 = vrot.slane %v933, 2
    %v977 = vtanh.pop %v975
    %v978 = vrot.slane %v933, 3
    %v980 = vxor.u32 %v978, 2147483648
    %v981 = vmul.f32 %v980, 1.442695
    %v982 = vpow.pop %v981
    %v983 = vadd.f32 %v982, 1.0
    %v984 = vrcp.pop %v983
    %v985 = vmul.f32 %v983, %v984
    %v986 = vsub.f32 1.0, %v985
    %v987 = vmul.f32 %v984, %v986
    %v988 = vadd.f32 %v984, %v987
    %vm989 = vweird.f32 %v983
    %vm990 = vweird.f32 %v984
    %vm991 = vmor %vm989, %vm990
    %v992 = vsel %vm991, %v984, %v988
    %v993 = vand.u32 2147483647, %v983
    %vm994 = vcmp.eq.f32.partialorder %v993, 8.507059e+37
    %v995 = vand.u32 %v983, 2147483648
    %v996 = vor.u32 1.1754944e-38, %v995
    %v997 = vsel %vm994, %v996, %v992
    %v998 = vmul.f32 1.0, %v997
    %v999 = vmul.f32 %v974, %v671
    %v1000 = vmul.f32 %v952, %v977
    %v1001 = vadd.f32 %v999, %v1000
    %v1002 = vtanh.pop %v1001
    %v1003 = vmul.f32 %v998, %v1002
    %1004 = vst [vmem:[#allocation3 + $0x1] sm:$0x1] %v1003
    %s1005 = scalar_lea.vmem [#allocation2], 2
    %v1006 = vld [vmem:[%s1005] ss:$8 sm:$0xf]
    %v1007 = vpack.c.bf16 %v1003, %v1003
    %v1008 = vld [vmem:[#allocation7] sm:$0xff]
    %v1009 = vld [vmem:[#allocation7 + $0x8] sm:$0xff]
    %v1010 = vld [vmem:[#allocation7 + $0x10] sm:$0xff]
    %v1011 = vld [vmem:[#allocation7 + $0x18] sm:$0xff]
    %v1012 = vld [vmem:[#allocation7 + $0x20] sm:$0xff]
    %v1013 = vld [vmem:[#allocation7 + $0x28] sm:$0xff]
    %v1014 = vld [vmem:[#allocation7 + $0x30] sm:$0xff]
    %v1015 = vld [vmem:[#allocation7 + $0x38] sm:$0xff]
    %v1016 = vld [vmem:[#allocation7 + $0x40] sm:$0xff]
    %v1017 = vld [vmem:[#allocation7 + $0x48] sm:$0xff]
    %v1018 = vld [vmem:[#allocation7 + $0x50] sm:$0xff]
    %v1019 = vld [vmem:[#allocation7 + $0x58] sm:$0xff]
    %v1020 = vld [vmem:[#allocation7 + $0x60] sm:$0xff]
    %v1021 = vld [vmem:[#allocation7 + $0x68] sm:$0xff]
    %v1022 = vld [vmem:[#allocation7 + $0x70] sm:$0xff]
    %v1023 = vld [vmem:[#allocation7 + $0x78] sm:$0xff]
    %v1024 = vld [vmem:[#allocation7 + $0x80] sm:$0xff]
    %v1025 = vld [vmem:[#allocation7 + $0x88] sm:$0xff]
    %v1026 = vld [vmem:[#allocation7 + $0x90] sm:$0xff]
    %v1027 = vld [vmem:[#allocation7 + $0x98] sm:$0xff]
    %v1028 = vld [vmem:[#allocation7 + $0xa0] sm:$0xff]
    %v1029 = vld [vmem:[#allocation7 + $0xa8] sm:$0xff]
    %v1030 = vld [vmem:[#allocation7 + $0xb0] sm:$0xff]
    %v1031 = vld [vmem:[#allocation7 + $0xb8] sm:$0xff]
    %v1032 = vld [vmem:[#allocation7 + $0xc0] sm:$0xff]
    %v1033 = vld [vmem:[#allocation7 + $0xc8] sm:$0xff]
    %v1034 = vld [vmem:[#allocation7 + $0xd0] sm:$0xff]
    %v1035 = vld [vmem:[#allocation7 + $0xd8] sm:$0xff]
    %v1036 = vld [vmem:[#allocation7 + $0xe0] sm:$0xff]
    %v1037 = vld [vmem:[#allocation7 + $0xe8] sm:$0xff]
    %v1038 = vld [vmem:[#allocation7 + $0xf0] sm:$0xff]
    %v1039 = vld [vmem:[#allocation7 + $0xf8] sm:$0xff]
    %v1072 = vunpack.c.l.b16 %v1008
    %v1073 = vunpack.c.h.b16 %v1008
    %v1074 = vunpack.c.l.b16 %v1009
    %v1075 = vunpack.c.h.b16 %v1009
    %v1076 = vunpack.c.l.b16 %v1010
    %v1077 = vunpack.c.h.b16 %v1010
    %v1078 = vunpack.c.l.b16 %v1011
    %v1079 = vunpack.c.h.b16 %v1011
    %v1080 = vunpack.c.l.b16 %v1012
    %v1081 = vunpack.c.h.b16 %v1012
    %v1082 = vunpack.c.l.b16 %v1013
    %v1083 = vunpack.c.h.b16 %v1013
    %v1084 = vunpack.c.l.b16 %v1014
    %v1085 = vunpack.c.h.b16 %v1014
    %v1086 = vunpack.c.l.b16 %v1015
    %v1087 = vunpack.c.h.b16 %v1015
    %v1088 = vunpack.c.l.b16 %v1016
    %v1089 = vunpack.c.h.b16 %v1016
    %v1090 = vunpack.c.l.b16 %v1017
    %v1091 = vunpack.c.h.b16 %v1017
    %v1092 = vunpack.c.l.b16 %v1018
    %v1093 = vunpack.c.h.b16 %v1018
    %v1094 = vunpack.c.l.b16 %v1019
    %v1095 = vunpack.c.h.b16 %v1019
    %v1096 = vunpack.c.l.b16 %v1020
    %v1097 = vunpack.c.h.b16 %v1020
    %v1098 = vunpack.c.l.b16 %v1021
    %v1099 = vunpack.c.h.b16 %v1021
    %v1100 = vunpack.c.l.b16 %v1022
    %v1101 = vunpack.c.h.b16 %v1022
    %v1102 = vunpack.c.l.b16 %v1023
    %v1103 = vunpack.c.h.b16 %v1023
    %v1104 = vunpack.c.l.b16 %v1024
    %v1105 = vunpack.c.h.b16 %v1024
    %v1106 = vunpack.c.l.b16 %v1025
    %v1107 = vunpack.c.h.b16 %v1025
    %v1108 = vunpack.c.l.b16 %v1026
    %v1109 = vunpack.c.h.b16 %v1026
    %v1110 = vunpack.c.l.b16 %v1027
    %v1111 = vunpack.c.h.b16 %v1027
    %v1112 = vunpack.c.l.b16 %v1028
    %v1113 = vunpack.c.h.b16 %v1028
    %v1114 = vunpack.c.l.b16 %v1029
    %v1115 = vunpack.c.h.b16 %v1029
    %v1116 = vunpack.c.l.b16 %v1030
    %v1117 = vunpack.c.h.b16 %v1030
    %v1118 = vunpack.c.l.b16 %v1031
    %v1119 = vunpack.c.h.b16 %v1031
    %v1120 = vunpack.c.l.b16 %v1032
    %v1121 = vunpack.c.h.b16 %v1032
    %v1122 = vunpack.c.l.b16 %v1033
    %v1123 = vunpack.c.h.b16 %v1033
    %v1124 = vunpack.c.l.b16 %v1034
    %v1125 = vunpack.c.h.b16 %v1034
    %v1126 = vunpack.c.l.b16 %v1035
    %v1127 = vunpack.c.h.b16 %v1035
    %v1128 = vunpack.c.l.b16 %v1036
    %v1129 = vunpack.c.h.b16 %v1036
    %v1130 = vunpack.c.l.b16 %v1037
    %v1131 = vunpack.c.h.b16 %v1037
    %v1132 = vunpack.c.l.b16 %v1038
    %v1133 = vunpack.c.h.b16 %v1038
    %v1134 = vunpack.c.l.b16 %v1039
    %v1135 = vunpack.c.h.b16 %v1039
    %v1136 = vpack.c.b16 %v1076, %v1072
    %v1137 = vpack.c.b16 %v1077, %v1073
    %v1138 = vpack.c.b16 %v1078, %v1074
    %v1139 = vpack.c.b16 %v1079, %v1075
    %v1140 = vpack.c.b16 %v1084, %v1080
    %v1141 = vpack.c.b16 %v1085, %v1081
    %v1142 = vpack.c.b16 %v1086, %v1082
    %v1143 = vpack.c.b16 %v1087, %v1083
    %v1144 = vpack.c.b16 %v1092, %v1088
    %v1145 = vpack.c.b16 %v1093, %v1089
    %v1146 = vpack.c.b16 %v1094, %v1090
    %v1147 = vpack.c.b16 %v1095, %v1091
    %v1148 = vpack.c.b16 %v1100, %v1096
    %v1149 = vpack.c.b16 %v1101, %v1097
    %v1150 = vpack.c.b16 %v1102, %v1098
    %v1151 = vpack.c.b16 %v1103, %v1099
    %v1152 = vpack.c.b16 %v1108, %v1104
    %v1153 = vpack.c.b16 %v1109, %v1105
    %v1154 = vpack.c.b16 %v1110, %v1106
    %v1155 = vpack.c.b16 %v1111, %v1107
    %v1156 = vpack.c.b16 %v1116, %v1112
    %v1157 = vpack.c.b16 %v1117, %v1113
    %v1158 = vpack.c.b16 %v1118, %v1114
    %v1159 = vpack.c.b16 %v1119, %v1115
    %v1160 = vpack.c.b16 %v1124, %v1120
    %v1161 = vpack.c.b16 %v1125, %v1121
    %v1162 = vpack.c.b16 %v1126, %v1122
    %v1163 = vpack.c.b16 %v1127, %v1123
    %v1164 = vpack.c.b16 %v1132, %v1128
    %v1165 = vpack.c.b16 %v1133, %v1129
    %v1166 = vpack.c.b16 %v1134, %v1130
    %v1167 = vpack.c.b16 %v1135, %v1131
    %1200 = vmatpush.bf16.msra.mxu0 %v1164
    %1201 = vmatpush.bf16.msra.mxu0 %v1160
    %1202 = vmatpush.bf16.msra.mxu0 %v1156
    %1203 = vmatpush.bf16.msra.mxu0 %v1152
    %1204 = vmatpush.bf16.msra.mxu0 %v1148
    %1205 = vmatpush.bf16.msra.mxu0 %v1144
    %1206 = vmatpush.bf16.msra.mxu0 %v1140
    %1207 = vmatpush.bf16.msra.mxu0 %v1136
    %1208 = vmatmul.bf16.gmra.mxu0 %v1007
    %v1209 = vpop.f32.mrf.mxu0
    %v1210 = vadd.f32 0.0, %v1209
    %v1211 = vpop.f32.mrf.mxu0
    %1212 = vdwg.mxu0
    %1213 = vmatpush.bf16.msra.mxu0 %v1165
    %1214 = vmatpush.bf16.msra.mxu0 %v1161
    %1215 = vmatpush.bf16.msra.mxu0 %v1157
    %1216 = vmatpush.bf16.msra.mxu0 %v1153
    %1217 = vmatpush.bf16.msra.mxu0 %v1149
    %1218 = vmatpush.bf16.msra.mxu0 %v1145
    %1219 = vmatpush.bf16.msra.mxu0 %v1141
    %1220 = vmatpush.bf16.msra.mxu0 %v1137
    %1221 = vmatmul.bf16.gmra.mxu0 %v1007
    %v1222 = vpop.f32.mrf.mxu0
    %v1223 = vadd.f32 0.0, %v1222
    %v1224 = vpop.f32.mrf.mxu0
    %1225 = vdwg.mxu0
    %1226 = vmatpush.bf16.msra.mxu0 %v1166
    %1227 = vmatpush.bf16.msra.mxu0 %v1162
    %1228 = vmatpush.bf16.msra.mxu0 %v1158
    %1229 = vmatpush.bf16.msra.mxu0 %v1154
    %1230 = vmatpush.bf16.msra.mxu0 %v1150
    %1231 = vmatpush.bf16.msra.mxu0 %v1146
    %1232 = vmatpush.bf16.msra.mxu0 %v1142
    %1233 = vmatpush.bf16.msra.mxu0 %v1138
    %1234 = vmatmul.bf16.gmra.mxu0 %v1007
    %v1235 = vpop.f32.mrf.mxu0
    %v1236 = vadd.f32 0.0, %v1235
    %v1237 = vpop.f32.mrf.mxu0
    %1238 = vdwg.mxu0
    %1239 = vmatpush.bf16.msra.mxu0 %v1167
    %1240 = vmatpush.bf16.msra.mxu0 %v1163
    %1241 = vmatpush.bf16.msra.mxu0 %v1159
    %1242 = vmatpush.bf16.msra.mxu0 %v1155
    %1243 = vmatpush.bf16.msra.mxu0 %v1151
    %1244 = vmatpush.bf16.msra.mxu0 %v1147
    %1245 = vmatpush.bf16.msra.mxu0 %v1143
    %1246 = vmatpush.bf16.msra.mxu0 %v1139
    %1247 = vmatmul.bf16.gmra.mxu0 %v1007
    %v1248 = vpop.f32.mrf.mxu0
    %v1249 = vadd.f32 0.0, %v1248
    %v1250 = vpop.f32.mrf.mxu0
    %1251 = vdwg.mxu0
    %v1256 = vrot.slane %v1223, 7
    %v1257 = vrot.slane %v1236, 6
    %v1258 = vrot.slane %v1249, 5
    %v1259 = vsel %vm596, %v1210, %v1256
    %v1260 = vsel %vm598, %v1257, %v1258
    %v1261 = vsel %vm600, %v1259, %v1260
    %v1263 = vadd.f32 %v1006, %v1261
    %v1264 = vxor.u32 %v1263, 2147483648
    %v1265 = vmul.f32 %v1264, 1.442695
    %v1266 = vpow.pop %v1265
    %v1267 = vadd.f32 %v1266, 1.0
    %v1268 = vrcp.pop %v1267
    %v1269 = vmul.f32 %v1267, %v1268
    %v1270 = vsub.f32 1.0, %v1269
    %v1271 = vmul.f32 %v1268, %v1270
    %v1272 = vadd.f32 %v1268, %v1271
    %vm1273 = vweird.f32 %v1267
    %vm1274 = vweird.f32 %v1268
    %vm1275 = vmor %vm1273, %vm1274
    %v1276 = vsel %vm1275, %v1268, %v1272
    %v1277 = vand.u32 2147483647, %v1267
    %vm1278 = vcmp.eq.f32.partialorder %v1277, 8.507059e+37
    %v1279 = vand.u32 %v1267, 2147483648
    %v1280 = vor.u32 1.1754944e-38, %v1279
    %v1281 = vsel %vm1278, %v1280, %v1276
    %v1282 = vmul.f32 1.0, %v1281
    %v1284 = vrot.slane %v1263, 1
    %v1286 = vxor.u32 %v1284, 2147483648
    %v1287 = vmul.f32 %v1286, 1.442695
    %v1288 = vpow.pop %v1287
    %v1289 = vadd.f32 %v1288, 1.0
    %v1290 = vrcp.pop %v1289
    %v1291 = vmul.f32 %v1289, %v1290
    %v1292 = vsub.f32 1.0, %v1291
    %v1293 = vmul.f32 %v1290, %v1292
    %v1294 = vadd.f32 %v1290, %v1293
    %vm1295 = vweird.f32 %v1289
    %vm1296 = vweird.f32 %v1290
    %vm1297 = vmor %vm1295, %vm1296
    %v1298 = vsel %vm1297, %v1290, %v1294
    %v1299 = vand.u32 2147483647, %v1289
    %vm1300 = vcmp.eq.f32.partialorder %v1299, 8.507059e+37
    %v1301 = vand.u32 %v1289, 2147483648
    %v1302 = vor.u32 1.1754944e-38, %v1301
    %v1303 = vsel %vm1300, %v1302, %v1298
    %v1304 = vmul.f32 1.0, %v1303
    %v1305 = vrot.slane %v1263, 2
    %v1307 = vtanh.pop %v1305
    %v1308 = vrot.slane %v1263, 3
    %v1310 = vxor.u32 %v1308, 2147483648
    %v1311 = vmul.f32 %v1310, 1.442695
    %v1312 = vpow.pop %v1311
    %v1313 = vadd.f32 %v1312, 1.0
    %v1314 = vrcp.pop %v1313
    %v1315 = vmul.f32 %v1313, %v1314
    %v1316 = vsub.f32 1.0, %v1315
    %v1317 = vmul.f32 %v1314, %v1316
    %v1318 = vadd.f32 %v1314, %v1317
    %vm1319 = vweird.f32 %v1313
    %vm1320 = vweird.f32 %v1314
    %vm1321 = vmor %vm1319, %vm1320
    %v1322 = vsel %vm1321, %v1314, %v1318
    %v1323 = vand.u32 2147483647, %v1313
    %vm1324 = vcmp.eq.f32.partialorder %v1323, 8.507059e+37
    %v1325 = vand.u32 %v1313, 2147483648
    %v1326 = vor.u32 1.1754944e-38, %v1325
    %v1327 = vsel %vm1324, %v1326, %v1322
    %v1328 = vmul.f32 1.0, %v1327
    %v1329 = vmul.f32 %v1304, %v1001
    %v1330 = vmul.f32 %v1282, %v1307
    %v1331 = vadd.f32 %v1329, %v1330
    %v1332 = vtanh.pop %v1331
    %v1333 = vmul.f32 %v1328, %v1332
    %1334 = vst [vmem:[#allocation3 + $0x2] sm:$0x1] %v1333
    %s1335 = scalar_lea.vmem [#allocation2], 3
    %v1336 = vld [vmem:[%s1335] ss:$8 sm:$0xf]
    %v1337 = vpack.c.bf16 %v1333, %v1333
    %v1338 = vld [vmem:[#allocation7] sm:$0xff]
    %v1339 = vld [vmem:[#allocation7 + $0x8] sm:$0xff]
    %v1340 = vld [vmem:[#allocation7 + $0x10] sm:$0xff]
    %v1341 = vld [vmem:[#allocation7 + $0x18] sm:$0xff]
    %v1342 = vld [vmem:[#allocation7 + $0x20] sm:$0xff]
    %v1343 = vld [vmem:[#allocation7 + $0x28] sm:$0xff]
    %v1344 = vld [vmem:[#allocation7 + $0x30] sm:$0xff]
    %v1345 = vld [vmem:[#allocation7 + $0x38] sm:$0xff]
    %v1346 = vld [vmem:[#allocation7 + $0x40] sm:$0xff]
    %v1347 = vld [vmem:[#allocation7 + $0x48] sm:$0xff]
    %v1348 = vld [vmem:[#allocation7 + $0x50] sm:$0xff]
    %v1349 = vld [vmem:[#allocation7 + $0x58] sm:$0xff]
    %v1350 = vld [vmem:[#allocation7 + $0x60] sm:$0xff]
    %v1351 = vld [vmem:[#allocation7 + $0x68] sm:$0xff]
    %v1352 = vld [vmem:[#allocation7 + $0x70] sm:$0xff]
    %v1353 = vld [vmem:[#allocation7 + $0x78] sm:$0xff]
    %v1354 = vld [vmem:[#allocation7 + $0x80] sm:$0xff]
    %v1355 = vld [vmem:[#allocation7 + $0x88] sm:$0xff]
    %v1356 = vld [vmem:[#allocation7 + $0x90] sm:$0xff]
    %v1357 = vld [vmem:[#allocation7 + $0x98] sm:$0xff]
    %v1358 = vld [vmem:[#allocation7 + $0xa0] sm:$0xff]
    %v1359 = vld [vmem:[#allocation7 + $0xa8] sm:$0xff]
    %v1360 = vld [vmem:[#allocation7 + $0xb0] sm:$0xff]
    %v1361 = vld [vmem:[#allocation7 + $0xb8] sm:$0xff]
    %v1362 = vld [vmem:[#allocation7 + $0xc0] sm:$0xff]
    %v1363 = vld [vmem:[#allocation7 + $0xc8] sm:$0xff]
    %v1364 = vld [vmem:[#allocation7 + $0xd0] sm:$0xff]
    %v1365 = vld [vmem:[#allocation7 + $0xd8] sm:$0xff]
    %v1366 = vld [vmem:[#allocation7 + $0xe0] sm:$0xff]
    %v1367 = vld [vmem:[#allocation7 + $0xe8] sm:$0xff]
    %v1368 = vld [vmem:[#allocation7 + $0xf0] sm:$0xff]
    %v1369 = vld [vmem:[#allocation7 + $0xf8] sm:$0xff]
    %v1402 = vunpack.c.l.b16 %v1338
    %v1403 = vunpack.c.h.b16 %v1338
    %v1404 = vunpack.c.l.b16 %v1339
    %v1405 = vunpack.c.h.b16 %v1339
    %v1406 = vunpack.c.l.b16 %v1340
    %v1407 = vunpack.c.h.b16 %v1340
    %v1408 = vunpack.c.l.b16 %v1341
    %v1409 = vunpack.c.h.b16 %v1341
    %v1410 = vunpack.c.l.b16 %v1342
    %v1411 = vunpack.c.h.b16 %v1342
    %v1412 = vunpack.c.l.b16 %v1343
    %v1413 = vunpack.c.h.b16 %v1343
    %v1414 = vunpack.c.l.b16 %v1344
    %v1415 = vunpack.c.h.b16 %v1344
    %v1416 = vunpack.c.l.b16 %v1345
    %v1417 = vunpack.c.h.b16 %v1345
    %v1418 = vunpack.c.l.b16 %v1346
    %v1419 = vunpack.c.h.b16 %v1346
    %v1420 = vunpack.c.l.b16 %v1347
    %v1421 = vunpack.c.h.b16 %v1347
    %v1422 = vunpack.c.l.b16 %v1348
    %v1423 = vunpack.c.h.b16 %v1348
    %v1424 = vunpack.c.l.b16 %v1349
    %v1425 = vunpack.c.h.b16 %v1349
    %v1426 = vunpack.c.l.b16 %v1350
    %v1427 = vunpack.c.h.b16 %v1350
    %v1428 = vunpack.c.l.b16 %v1351
    %v1429 = vunpack.c.h.b16 %v1351
    %v1430 = vunpack.c.l.b16 %v1352
    %v1431 = vunpack.c.h.b16 %v1352
    %v1432 = vunpack.c.l.b16 %v1353
    %v1433 = vunpack.c.h.b16 %v1353
    %v1434 = vunpack.c.l.b16 %v1354
    %v1435 = vunpack.c.h.b16 %v1354
    %v1436 = vunpack.c.l.b16 %v1355
    %v1437 = vunpack.c.h.b16 %v1355
    %v1438 = vunpack.c.l.b16 %v1356
    %v1439 = vunpack.c.h.b16 %v1356
    %v1440 = vunpack.c.l.b16 %v1357
    %v1441 = vunpack.c.h.b16 %v1357
    %v1442 = vunpack.c.l.b16 %v1358
    %v1443 = vunpack.c.h.b16 %v1358
    %v1444 = vunpack.c.l.b16 %v1359
    %v1445 = vunpack.c.h.b16 %v1359
    %v1446 = vunpack.c.l.b16 %v1360
    %v1447 = vunpack.c.h.b16 %v1360
    %v1448 = vunpack.c.l.b16 %v1361
    %v1449 = vunpack.c.h.b16 %v1361
    %v1450 = vunpack.c.l.b16 %v1362
    %v1451 = vunpack.c.h.b16 %v1362
    %v1452 = vunpack.c.l.b16 %v1363
    %v1453 = vunpack.c.h.b16 %v1363
    %v1454 = vunpack.c.l.b16 %v1364
    %v1455 = vunpack.c.h.b16 %v1364
    %v1456 = vunpack.c.l.b16 %v1365
    %v1457 = vunpack.c.h.b16 %v1365
    %v1458 = vunpack.c.l.b16 %v1366
    %v1459 = vunpack.c.h.b16 %v1366
    %v1460 = vunpack.c.l.b16 %v1367
    %v1461 = vunpack.c.h.b16 %v1367
    %v1462 = vunpack.c.l.b16 %v1368
    %v1463 = vunpack.c.h.b16 %v1368
    %v1464 = vunpack.c.l.b16 %v1369
    %v1465 = vunpack.c.h.b16 %v1369
    %v1466 = vpack.c.b16 %v1406, %v1402
    %v1467 = vpack.c.b16 %v1407, %v1403
    %v1468 = vpack.c.b16 %v1408, %v1404
    %v1469 = vpack.c.b16 %v1409, %v1405
    %v1470 = vpack.c.b16 %v1414, %v1410
    %v1471 = vpack.c.b16 %v1415, %v1411
    %v1472 = vpack.c.b16 %v1416, %v1412
    %v1473 = vpack.c.b16 %v1417, %v1413
    %v1474 = vpack.c.b16 %v1422, %v1418
    %v1475 = vpack.c.b16 %v1423, %v1419
    %v1476 = vpack.c.b16 %v1424, %v1420
    %v1477 = vpack.c.b16 %v1425, %v1421
    %v1478 = vpack.c.b16 %v1430, %v1426
    %v1479 = vpack.c.b16 %v1431, %v1427
    %v1480 = vpack.c.b16 %v1432, %v1428
    %v1481 = vpack.c.b16 %v1433, %v1429
    %v1482 = vpack.c.b16 %v1438, %v1434
    %v1483 = vpack.c.b16 %v1439, %v1435
    %v1484 = vpack.c.b16 %v1440, %v1436
    %v1485 = vpack.c.b16 %v1441, %v1437
    %v1486 = vpack.c.b16 %v1446, %v1442
    %v1487 = vpack.c.b16 %v1447, %v1443
    %v1488 = vpack.c.b16 %v1448, %v1444
    %v1489 = vpack.c.b16 %v1449, %v1445
    %v1490 = vpack.c.b16 %v1454, %v1450
    %v1491 = vpack.c.b16 %v1455, %v1451
    %v1492 = vpack.c.b16 %v1456, %v1452
    %v1493 = vpack.c.b16 %v1457, %v1453
    %v1494 = vpack.c.b16 %v1462, %v1458
    %v1495 = vpack.c.b16 %v1463, %v1459
    %v1496 = vpack.c.b16 %v1464, %v1460
    %v1497 = vpack.c.b16 %v1465, %v1461
    %1530 = vmatpush.bf16.msra.mxu0 %v1494
    %1531 = vmatpush.bf16.msra.mxu0 %v1490
    %1532 = vmatpush.bf16.msra.mxu0 %v1486
    %1533 = vmatpush.bf16.msra.mxu0 %v1482
    %1534 = vmatpush.bf16.msra.mxu0 %v1478
    %1535 = vmatpush.bf16.msra.mxu0 %v1474
    %1536 = vmatpush.bf16.msra.mxu0 %v1470
    %1537 = vmatpush.bf16.msra.mxu0 %v1466
    %1538 = vmatmul.bf16.gmra.mxu0 %v1337
    %v1539 = vpop.f32.mrf.mxu0
    %v1540 = vadd.f32 0.0, %v1539
    %v1541 = vpop.f32.mrf.mxu0
    %1542 = vdwg.mxu0
    %1543 = vmatpush.bf16.msra.mxu0 %v1495
    %1544 = vmatpush.bf16.msra.mxu0 %v1491
    %1545 = vmatpush.bf16.msra.mxu0 %v1487
    %1546 = vmatpush.bf16.msra.mxu0 %v1483
    %1547 = vmatpush.bf16.msra.mxu0 %v1479
    %1548 = vmatpush.bf16.msra.mxu0 %v1475
    %1549 = vmatpush.bf16.msra.mxu0 %v1471
    %1550 = vmatpush.bf16.msra.mxu0 %v1467
    %1551 = vmatmul.bf16.gmra.mxu0 %v1337
    %v1552 = vpop.f32.mrf.mxu0
    %v1553 = vadd.f32 0.0, %v1552
    %v1554 = vpop.f32.mrf.mxu0
    %1555 = vdwg.mxu0
    %1556 = vmatpush.bf16.msra.mxu0 %v1496
    %1557 = vmatpush.bf16.msra.mxu0 %v1492
    %1558 = vmatpush.bf16.msra.mxu0 %v1488
    %1559 = vmatpush.bf16.msra.mxu0 %v1484
    %1560 = vmatpush.bf16.msra.mxu0 %v1480
    %1561 = vmatpush.bf16.msra.mxu0 %v1476
    %1562 = vmatpush.bf16.msra.mxu0 %v1472
    %1563 = vmatpush.bf16.msra.mxu0 %v1468
    %1564 = vmatmul.bf16.gmra.mxu0 %v1337
    %v1565 = vpop.f32.mrf.mxu0
    %v1566 = vadd.f32 0.0, %v1565
    %v1567 = vpop.f32.mrf.mxu0
    %1568 = vdwg.mxu0
    %1569 = vmatpush.bf16.msra.mxu0 %v1497
    %1570 = vmatpush.bf16.msra.mxu0 %v1493
    %1571 = vmatpush.bf16.msra.mxu0 %v1489
    %1572 = vmatpush.bf16.msra.mxu0 %v1485
    %1573 = vmatpush.bf16.msra.mxu0 %v1481
    %1574 = vmatpush.bf16.msra.mxu0 %v1477
    %1575 = vmatpush.bf16.msra.mxu0 %v1473
    %1576 = vmatpush.bf16.msra.mxu0 %v1469
    %1577 = vmatmul.bf16.gmra.mxu0 %v1337
    %v1578 = vpop.f32.mrf.mxu0
    %v1579 = vadd.f32 0.0, %v1578
    %v1580 = vpop.f32.mrf.mxu0
    %1581 = vdwg.mxu0
    %v1586 = vrot.slane %v1553, 7
    %v1587 = vrot.slane %v1566, 6
    %v1588 = vrot.slane %v1579, 5
    %v1589 = vsel %vm596, %v1540, %v1586
    %v1590 = vsel %vm598, %v1587, %v1588
    %v1591 = vsel %vm600, %v1589, %v1590
    %v1593 = vadd.f32 %v1336, %v1591
    %v1594 = vxor.u32 %v1593, 2147483648
    %v1595 = vmul.f32 %v1594, 1.442695
    %v1596 = vpow.pop %v1595
    %v1597 = vadd.f32 %v1596, 1.0
    %v1598 = vrcp.pop %v1597
    %v1599 = vmul.f32 %v1597, %v1598
    %v1600 = vsub.f32 1.0, %v1599
    %v1601 = vmul.f32 %v1598, %v1600
    %v1602 = vadd.f32 %v1598, %v1601
    %vm1603 = vweird.f32 %v1597
    %vm1604 = vweird.f32 %v1598
    %vm1605 = vmor %vm1603, %vm1604
    %v1606 = vsel %vm1605, %v1598, %v1602
    %v1607 = vand.u32 2147483647, %v1597
    %vm1608 = vcmp.eq.f32.partialorder %v1607, 8.507059e+37
    %v1609 = vand.u32 %v1597, 2147483648
    %v1610 = vor.u32 1.1754944e-38, %v1609
    %v1611 = vsel %vm1608, %v1610, %v1606
    %v1612 = vmul.f32 1.0, %v1611
    %v1614 = vrot.slane %v1593, 1
    %v1616 = vxor.u32 %v1614, 2147483648
    %v1617 = vmul.f32 %v1616, 1.442695
    %v1618 = vpow.pop %v1617
    %v1619 = vadd.f32 %v1618, 1.0
    %v1620 = vrcp.pop %v1619
    %v1621 = vmul.f32 %v1619, %v1620
    %v1622 = vsub.f32 1.0, %v1621
    %v1623 = vmul.f32 %v1620, %v1622
    %v1624 = vadd.f32 %v1620, %v1623
    %vm1625 = vweird.f32 %v1619
    %vm1626 = vweird.f32 %v1620
    %vm1627 = vmor %vm1625, %vm1626
    %v1628 = vsel %vm1627, %v1620, %v1624
    %v1629 = vand.u32 2147483647, %v1619
    %vm1630 = vcmp.eq.f32.partialorder %v1629, 8.507059e+37
    %v1631 = vand.u32 %v1619, 2147483648
    %v1632 = vor.u32 1.1754944e-38, %v1631
    %v1633 = vsel %vm1630, %v1632, %v1628
    %v1634 = vmul.f32 1.0, %v1633
    %v1635 = vrot.slane %v1593, 2
    %v1637 = vtanh.pop %v1635
    %v1638 = vrot.slane %v1593, 3
    %v1640 = vxor.u32 %v1638, 2147483648
    %v1641 = vmul.f32 %v1640, 1.442695
    %v1642 = vpow.pop %v1641
    %v1643 = vadd.f32 %v1642, 1.0
    %v1644 = vrcp.pop %v1643
    %v1645 = vmul.f32 %v1643, %v1644
    %v1646 = vsub.f32 1.0, %v1645
    %v1647 = vmul.f32 %v1644, %v1646
    %v1648 = vadd.f32 %v1644, %v1647
    %vm1649 = vweird.f32 %v1643
    %vm1650 = vweird.f32 %v1644
    %vm1651 = vmor %vm1649, %vm1650
    %v1652 = vsel %vm1651, %v1644, %v1648
    %v1653 = vand.u32 2147483647, %v1643
    %vm1654 = vcmp.eq.f32.partialorder %v1653, 8.507059e+37
    %v1655 = vand.u32 %v1643, 2147483648
    %v1656 = vor.u32 1.1754944e-38, %v1655
    %v1657 = vsel %vm1654, %v1656, %v1652
    %v1658 = vmul.f32 1.0, %v1657
    %v1659 = vmul.f32 %v1634, %v1331
    %v1660 = vmul.f32 %v1612, %v1637
    %v1661 = vadd.f32 %v1659, %v1660
    %v1662 = vtanh.pop %v1661
    %v1663 = vmul.f32 %v1658, %v1662
    %1664 = vst [vmem:[#allocation3 + $0x3] sm:$0x1] %v1663
    %s1665 = scalar_lea.vmem [#allocation2], 4
    %v1666 = vld [vmem:[%s1665] ss:$8 sm:$0xf]
    %v1667 = vpack.c.bf16 %v1663, %v1663
    %v1668 = vld [vmem:[#allocation7] sm:$0xff]
    %v1669 = vld [vmem:[#allocation7 + $0x8] sm:$0xff]
    %v1670 = vld [vmem:[#allocation7 + $0x10] sm:$0xff]
    %v1671 = vld [vmem:[#allocation7 + $0x18] sm:$0xff]
    %v1672 = vld [vmem:[#allocation7 + $0x20] sm:$0xff]
    %v1673 = vld [vmem:[#allocation7 + $0x28] sm:$0xff]
    %v1674 = vld [vmem:[#allocation7 + $0x30] sm:$0xff]
    %v1675 = vld [vmem:[#allocation7 + $0x38] sm:$0xff]
    %v1676 = vld [vmem:[#allocation7 + $0x40] sm:$0xff]
    %v1677 = vld [vmem:[#allocation7 + $0x48] sm:$0xff]
    %v1678 = vld [vmem:[#allocation7 + $0x50] sm:$0xff]
    %v1679 = vld [vmem:[#allocation7 + $0x58] sm:$0xff]
    %v1680 = vld [vmem:[#allocation7 + $0x60] sm:$0xff]
    %v1681 = vld [vmem:[#allocation7 + $0x68] sm:$0xff]
    %v1682 = vld [vmem:[#allocation7 + $0x70] sm:$0xff]
    %v1683 = vld [vmem:[#allocation7 + $0x78] sm:$0xff]
    %v1684 = vld [vmem:[#allocation7 + $0x80] sm:$0xff]
    %v1685 = vld [vmem:[#allocation7 + $0x88] sm:$0xff]
    %v1686 = vld [vmem:[#allocation7 + $0x90] sm:$0xff]
    %v1687 = vld [vmem:[#allocation7 + $0x98] sm:$0xff]
    %v1688 = vld [vmem:[#allocation7 + $0xa0] sm:$0xff]
    %v1689 = vld [vmem:[#allocation7 + $0xa8] sm:$0xff]
    %v1690 = vld [vmem:[#allocation7 + $0xb0] sm:$0xff]
    %v1691 = vld [vmem:[#allocation7 + $0xb8] sm:$0xff]
    %v1692 = vld [vmem:[#allocation7 + $0xc0] sm:$0xff]
    %v1693 = vld [vmem:[#allocation7 + $0xc8] sm:$0xff]
    %v1694 = vld [vmem:[#allocation7 + $0xd0] sm:$0xff]
    %v1695 = vld [vmem:[#allocation7 + $0xd8] sm:$0xff]
    %v1696 = vld [vmem:[#allocation7 + $0xe0] sm:$0xff]
    %v1697 = vld [vmem:[#allocation7 + $0xe8] sm:$0xff]
    %v1698 = vld [vmem:[#allocation7 + $0xf0] sm:$0xff]
    %v1699 = vld [vmem:[#allocation7 + $0xf8] sm:$0xff]
    %v1732 = vunpack.c.l.b16 %v1668
    %v1733 = vunpack.c.h.b16 %v1668
    %v1734 = vunpack.c.l.b16 %v1669
    %v1735 = vunpack.c.h.b16 %v1669
    %v1736 = vunpack.c.l.b16 %v1670
    %v1737 = vunpack.c.h.b16 %v1670
    %v1738 = vunpack.c.l.b16 %v1671
    %v1739 = vunpack.c.h.b16 %v1671
    %v1740 = vunpack.c.l.b16 %v1672
    %v1741 = vunpack.c.h.b16 %v1672
    %v1742 = vunpack.c.l.b16 %v1673
    %v1743 = vunpack.c.h.b16 %v1673
    %v1744 = vunpack.c.l.b16 %v1674
    %v1745 = vunpack.c.h.b16 %v1674
    %v1746 = vunpack.c.l.b16 %v1675
    %v1747 = vunpack.c.h.b16 %v1675
    %v1748 = vunpack.c.l.b16 %v1676
    %v1749 = vunpack.c.h.b16 %v1676
    %v1750 = vunpack.c.l.b16 %v1677
    %v1751 = vunpack.c.h.b16 %v1677
    %v1752 = vunpack.c.l.b16 %v1678
    %v1753 = vunpack.c.h.b16 %v1678
    %v1754 = vunpack.c.l.b16 %v1679
    %v1755 = vunpack.c.h.b16 %v1679
    %v1756 = vunpack.c.l.b16 %v1680
    %v1757 = vunpack.c.h.b16 %v1680
    %v1758 = vunpack.c.l.b16 %v1681
    %v1759 = vunpack.c.h.b16 %v1681
    %v1760 = vunpack.c.l.b16 %v1682
    %v1761 = vunpack.c.h.b16 %v1682
    %v1762 = vunpack.c.l.b16 %v1683
    %v1763 = vunpack.c.h.b16 %v1683
    %v1764 = vunpack.c.l.b16 %v1684
    %v1765 = vunpack.c.h.b16 %v1684
    %v1766 = vunpack.c.l.b16 %v1685
    %v1767 = vunpack.c.h.b16 %v1685
    %v1768 = vunpack.c.l.b16 %v1686
    %v1769 = vunpack.c.h.b16 %v1686
    %v1770 = vunpack.c.l.b16 %v1687
    %v1771 = vunpack.c.h.b16 %v1687
    %v1772 = vunpack.c.l.b16 %v1688
    %v1773 = vunpack.c.h.b16 %v1688
    %v1774 = vunpack.c.l.b16 %v1689
    %v1775 = vunpack.c.h.b16 %v1689
    %v1776 = vunpack.c.l.b16 %v1690
    %v1777 = vunpack.c.h.b16 %v1690
    %v1778 = vunpack.c.l.b16 %v1691
    %v1779 = vunpack.c.h.b16 %v1691
    %v1780 = vunpack.c.l.b16 %v1692
    %v1781 = vunpack.c.h.b16 %v1692
    %v1782 = vunpack.c.l.b16 %v1693
    %v1783 = vunpack.c.h.b16 %v1693
    %v1784 = vunpack.c.l.b16 %v1694
    %v1785 = vunpack.c.h.b16 %v1694
    %v1786 = vunpack.c.l.b16 %v1695
    %v1787 = vunpack.c.h.b16 %v1695
    %v1788 = vunpack.c.l.b16 %v1696
    %v1789 = vunpack.c.h.b16 %v1696
    %v1790 = vunpack.c.l.b16 %v1697
    %v1791 = vunpack.c.h.b16 %v1697
    %v1792 = vunpack.c.l.b16 %v1698
    %v1793 = vunpack.c.h.b16 %v1698
    %v1794 = vunpack.c.l.b16 %v1699
    %v1795 = vunpack.c.h.b16 %v1699
    %v1796 = vpack.c.b16 %v1736, %v1732
    %v1797 = vpack.c.b16 %v1737, %v1733
    %v1798 = vpack.c.b16 %v1738, %v1734
    %v1799 = vpack.c.b16 %v1739, %v1735
    %v1800 = vpack.c.b16 %v1744, %v1740
    %v1801 = vpack.c.b16 %v1745, %v1741
    %v1802 = vpack.c.b16 %v1746, %v1742
    %v1803 = vpack.c.b16 %v1747, %v1743
    %v1804 = vpack.c.b16 %v1752, %v1748
    %v1805 = vpack.c.b16 %v1753, %v1749
    %v1806 = vpack.c.b16 %v1754, %v1750
    %v1807 = vpack.c.b16 %v1755, %v1751
    %v1808 = vpack.c.b16 %v1760, %v1756
    %v1809 = vpack.c.b16 %v1761, %v1757
    %v1810 = vpack.c.b16 %v1762, %v1758
    %v1811 = vpack.c.b16 %v1763, %v1759
    %v1812 = vpack.c.b16 %v1768, %v1764
    %v1813 = vpack.c.b16 %v1769, %v1765
    %v1814 = vpack.c.b16 %v1770, %v1766
    %v1815 = vpack.c.b16 %v1771, %v1767
    %v1816 = vpack.c.b16 %v1776, %v1772
    %v1817 = vpack.c.b16 %v1777, %v1773
    %v1818 = vpack.c.b16 %v1778, %v1774
    %v1819 = vpack.c.b16 %v1779, %v1775
    %v1820 = vpack.c.b16 %v1784, %v1780
    %v1821 = vpack.c.b16 %v1785, %v1781
    %v1822 = vpack.c.b16 %v1786, %v1782
    %v1823 = vpack.c.b16 %v1787, %v1783
    %v1824 = vpack.c.b16 %v1792, %v1788
    %v1825 = vpack.c.b16 %v1793, %v1789
    %v1826 = vpack.c.b16 %v1794, %v1790
    %v1827 = vpack.c.b16 %v1795, %v1791
    %1860 = vmatpush.bf16.msra.mxu0 %v1824
    %1861 = vmatpush.bf16.msra.mxu0 %v1820
    %1862 = vmatpush.bf16.msra.mxu0 %v1816
    %1863 = vmatpush.bf16.msra.mxu0 %v1812
    %1864 = vmatpush.bf16.msra.mxu0 %v1808
    %1865 = vmatpush.bf16.msra.mxu0 %v1804
    %1866 = vmatpush.bf16.msra.mxu0 %v1800
    %1867 = vmatpush.bf16.msra.mxu0 %v1796
    %1868 = vmatmul.bf16.gmra.mxu0 %v1667
    %v1869 = vpop.f32.mrf.mxu0
    %v1870 = vadd.f32 0.0, %v1869
    %v1871 = vpop.f32.mrf.mxu0
    %1872 = vdwg.mxu0
    %1873 = vmatpush.bf16.msra.mxu0 %v1825
    %1874 = vmatpush.bf16.msra.mxu0 %v1821
    %1875 = vmatpush.bf16.msra.mxu0 %v1817
    %1876 = vmatpush.bf16.msra.mxu0 %v1813
    %1877 = vmatpush.bf16.msra.mxu0 %v1809
    %1878 = vmatpush.bf16.msra.mxu0 %v1805
    %1879 = vmatpush.bf16.msra.mxu0 %v1801
    %1880 = vmatpush.bf16.msra.mxu0 %v1797
    %1881 = vmatmul.bf16.gmra.mxu0 %v1667
    %v1882 = vpop.f32.mrf.mxu0
    %v1883 = vadd.f32 0.0, %v1882
    %v1884 = vpop.f32.mrf.mxu0
    %1885 = vdwg.mxu0
    %1886 = vmatpush.bf16.msra.mxu0 %v1826
    %1887 = vmatpush.bf16.msra.mxu0 %v1822
    %1888 = vmatpush.bf16.msra.mxu0 %v1818
    %1889 = vmatpush.bf16.msra.mxu0 %v1814
    %1890 = vmatpush.bf16.msra.mxu0 %v1810
    %1891 = vmatpush.bf16.msra.mxu0 %v1806
    %1892 = vmatpush.bf16.msra.mxu0 %v1802
    %1893 = vmatpush.bf16.msra.mxu0 %v1798
    %1894 = vmatmul.bf16.gmra.mxu0 %v1667
    %v1895 = vpop.f32.mrf.mxu0
    %v1896 = vadd.f32 0.0, %v1895
    %v1897 = vpop.f32.mrf.mxu0
    %1898 = vdwg.mxu0
    %1899 = vmatpush.bf16.msra.mxu0 %v1827
    %1900 = vmatpush.bf16.msra.mxu0 %v1823
    %1901 = vmatpush.bf16.msra.mxu0 %v1819
    %1902 = vmatpush.bf16.msra.mxu0 %v1815
    %1903 = vmatpush.bf16.msra.mxu0 %v1811
    %1904 = vmatpush.bf16.msra.mxu0 %v1807
    %1905 = vmatpush.bf16.msra.mxu0 %v1803
    %1906 = vmatpush.bf16.msra.mxu0 %v1799
    %1907 = vmatmul.bf16.gmra.mxu0 %v1667
    %v1908 = vpop.f32.mrf.mxu0
    %v1909 = vadd.f32 0.0, %v1908
    %v1910 = vpop.f32.mrf.mxu0
    %1911 = vdwg.mxu0
    %v1916 = vrot.slane %v1883, 7
    %v1917 = vrot.slane %v1896, 6
    %v1918 = vrot.slane %v1909, 5
    %v1919 = vsel %vm596, %v1870, %v1916
    %v1920 = vsel %vm598, %v1917, %v1918
    %v1921 = vsel %vm600, %v1919, %v1920
    %v1923 = vadd.f32 %v1666, %v1921
    %v1924 = vxor.u32 %v1923, 2147483648
    %v1925 = vmul.f32 %v1924, 1.442695
    %v1926 = vpow.pop %v1925
    %v1927 = vadd.f32 %v1926, 1.0
    %v1928 = vrcp.pop %v1927
    %v1929 = vmul.f32 %v1927, %v1928
    %v1930 = vsub.f32 1.0, %v1929
    %v1931 = vmul.f32 %v1928, %v1930
    %v1932 = vadd.f32 %v1928, %v1931
    %vm1933 = vweird.f32 %v1927
    %vm1934 = vweird.f32 %v1928
    %vm1935 = vmor %vm1933, %vm1934
    %v1936 = vsel %vm1935, %v1928, %v1932
    %v1937 = vand.u32 2147483647, %v1927
    %vm1938 = vcmp.eq.f32.partialorder %v1937, 8.507059e+37
    %v1939 = vand.u32 %v1927, 2147483648
    %v1940 = vor.u32 1.1754944e-38, %v1939
    %v1941 = vsel %vm1938, %v1940, %v1936
    %v1942 = vmul.f32 1.0, %v1941
    %v1944 = vrot.slane %v1923, 1
    %v1946 = vxor.u32 %v1944, 2147483648
    %v1947 = vmul.f32 %v1946, 1.442695
    %v1948 = vpow.pop %v1947
    %v1949 = vadd.f32 %v1948, 1.0
    %v1950 = vrcp.pop %v1949
    %v1951 = vmul.f32 %v1949, %v1950
    %v1952 = vsub.f32 1.0, %v1951
    %v1953 = vmul.f32 %v1950, %v1952
    %v1954 = vadd.f32 %v1950, %v1953
    %vm1955 = vweird.f32 %v1949
    %vm1956 = vweird.f32 %v1950
    %vm1957 = vmor %vm1955, %vm1956
    %v1958 = vsel %vm1957, %v1950, %v1954
    %v1959 = vand.u32 2147483647, %v1949
    %vm1960 = vcmp.eq.f32.partialorder %v1959, 8.507059e+37
    %v1961 = vand.u32 %v1949, 2147483648
    %v1962 = vor.u32 1.1754944e-38, %v1961
    %v1963 = vsel %vm1960, %v1962, %v1958
    %v1964 = vmul.f32 1.0, %v1963
    %v1965 = vrot.slane %v1923, 2
    %v1967 = vtanh.pop %v1965
    %v1968 = vrot.slane %v1923, 3
    %v1970 = vxor.u32 %v1968, 2147483648
    %v1971 = vmul.f32 %v1970, 1.442695
    %v1972 = vpow.pop %v1971
    %v1973 = vadd.f32 %v1972, 1.0
    %v1974 = vrcp.pop %v1973
    %v1975 = vmul.f32 %v1973, %v1974
    %v1976 = vsub.f32 1.0, %v1975
    %v1977 = vmul.f32 %v1974, %v1976
    %v1978 = vadd.f32 %v1974, %v1977
    %vm1979 = vweird.f32 %v1973
    %vm1980 = vweird.f32 %v1974
    %vm1981 = vmor %vm1979, %vm1980
    %v1982 = vsel %vm1981, %v1974, %v1978
    %v1983 = vand.u32 2147483647, %v1973
    %vm1984 = vcmp.eq.f32.partialorder %v1983, 8.507059e+37
    %v1985 = vand.u32 %v1973, 2147483648
    %v1986 = vor.u32 1.1754944e-38, %v1985
    %v1987 = vsel %vm1984, %v1986, %v1982
    %v1988 = vmul.f32 1.0, %v1987
    %v1989 = vmul.f32 %v1964, %v1661
    %v1990 = vmul.f32 %v1942, %v1967
    %v1991 = vadd.f32 %v1989, %v1990
    %v1992 = vtanh.pop %v1991
    %v1993 = vmul.f32 %v1988, %v1992
    %1994 = vst [vmem:[#allocation3 + $0x4] sm:$0x1] %v1993
    %s1995 = scalar_lea.vmem [#allocation2], 5
    %v1996 = vld [vmem:[%s1995] ss:$8 sm:$0xf]
    %v1997 = vpack.c.bf16 %v1993, %v1993
    %v1998 = vld [vmem:[#allocation7] sm:$0xff]
    %v1999 = vld [vmem:[#allocation7 + $0x8] sm:$0xff]
    %v2000 = vld [vmem:[#allocation7 + $0x10] sm:$0xff]
    %v2001 = vld [vmem:[#allocation7 + $0x18] sm:$0xff]
    %v2002 = vld [vmem:[#allocation7 + $0x20] sm:$0xff]
    %v2003 = vld [vmem:[#allocation7 + $0x28] sm:$0xff]
    %v2004 = vld [vmem:[#allocation7 + $0x30] sm:$0xff]
    %v2005 = vld [vmem:[#allocation7 + $0x38] sm:$0xff]
    %v2006 = vld [vmem:[#allocation7 + $0x40] sm:$0xff]
    %v2007 = vld [vmem:[#allocation7 + $0x48] sm:$0xff]
    %v2008 = vld [vmem:[#allocation7 + $0x50] sm:$0xff]
    %v2009 = vld [vmem:[#allocation7 + $0x58] sm:$0xff]
    %v2010 = vld [vmem:[#allocation7 + $0x60] sm:$0xff]
    %v2011 = vld [vmem:[#allocation7 + $0x68] sm:$0xff]
    %v2012 = vld [vmem:[#allocation7 + $0x70] sm:$0xff]
    %v2013 = vld [vmem:[#allocation7 + $0x78] sm:$0xff]
    %v2014 = vld [vmem:[#allocation7 + $0x80] sm:$0xff]
    %v2015 = vld [vmem:[#allocation7 + $0x88] sm:$0xff]
    %v2016 = vld [vmem:[#allocation7 + $0x90] sm:$0xff]
    %v2017 = vld [vmem:[#allocation7 + $0x98] sm:$0xff]
    %v2018 = vld [vmem:[#allocation7 + $0xa0] sm:$0xff]
    %v2019 = vld [vmem:[#allocation7 + $0xa8] sm:$0xff]
    %v2020 = vld [vmem:[#allocation7 + $0xb0] sm:$0xff]
    %v2021 = vld [vmem:[#allocation7 + $0xb8] sm:$0xff]
    %v2022 = vld [vmem:[#allocation7 + $0xc0] sm:$0xff]
    %v2023 = vld [vmem:[#allocation7 + $0xc8] sm:$0xff]
    %v2024 = vld [vmem:[#allocation7 + $0xd0] sm:$0xff]
    %v2025 = vld [vmem:[#allocation7 + $0xd8] sm:$0xff]
    %v2026 = vld [vmem:[#allocation7 + $0xe0] sm:$0xff]
    %v2027 = vld [vmem:[#allocation7 + $0xe8] sm:$0xff]
    %v2028 = vld [vmem:[#allocation7 + $0xf0] sm:$0xff]
    %v2029 = vld [vmem:[#allocation7 + $0xf8] sm:$0xff]
    %v2062 = vunpack.c.l.b16 %v1998
    %v2063 = vunpack.c.h.b16 %v1998
    %v2064 = vunpack.c.l.b16 %v1999
    %v2065 = vunpack.c.h.b16 %v1999
    %v2066 = vunpack.c.l.b16 %v2000
    %v2067 = vunpack.c.h.b16 %v2000
    %v2068 = vunpack.c.l.b16 %v2001
    %v2069 = vunpack.c.h.b16 %v2001
    %v2070 = vunpack.c.l.b16 %v2002
    %v2071 = vunpack.c.h.b16 %v2002
    %v2072 = vunpack.c.l.b16 %v2003
    %v2073 = vunpack.c.h.b16 %v2003
    %v2074 = vunpack.c.l.b16 %v2004
    %v2075 = vunpack.c.h.b16 %v2004
    %v2076 = vunpack.c.l.b16 %v2005
    %v2077 = vunpack.c.h.b16 %v2005
    %v2078 = vunpack.c.l.b16 %v2006
    %v2079 = vunpack.c.h.b16 %v2006
    %v2080 = vunpack.c.l.b16 %v2007
    %v2081 = vunpack.c.h.b16 %v2007
    %v2082 = vunpack.c.l.b16 %v2008
    %v2083 = vunpack.c.h.b16 %v2008
    %v2084 = vunpack.c.l.b16 %v2009
    %v2085 = vunpack.c.h.b16 %v2009
    %v2086 = vunpack.c.l.b16 %v2010
    %v2087 = vunpack.c.h.b16 %v2010
    %v2088 = vunpack.c.l.b16 %v2011
    %v2089 = vunpack.c.h.b16 %v2011
    %v2090 = vunpack.c.l.b16 %v2012
    %v2091 = vunpack.c.h.b16 %v2012
    %v2092 = vunpack.c.l.b16 %v2013
    %v2093 = vunpack.c.h.b16 %v2013
    %v2094 = vunpack.c.l.b16 %v2014
    %v2095 = vunpack.c.h.b16 %v2014
    %v2096 = vunpack.c.l.b16 %v2015
    %v2097 = vunpack.c.h.b16 %v2015
    %v2098 = vunpack.c.l.b16 %v2016
    %v2099 = vunpack.c.h.b16 %v2016
    %v2100 = vunpack.c.l.b16 %v2017
    %v2101 = vunpack.c.h.b16 %v2017
    %v2102 = vunpack.c.l.b16 %v2018
    %v2103 = vunpack.c.h.b16 %v2018
    %v2104 = vunpack.c.l.b16 %v2019
    %v2105 = vunpack.c.h.b16 %v2019
    %v2106 = vunpack.c.l.b16 %v2020
    %v2107 = vunpack.c.h.b16 %v2020
    %v2108 = vunpack.c.l.b16 %v2021
    %v2109 = vunpack.c.h.b16 %v2021
    %v2110 = vunpack.c.l.b16 %v2022
    %v2111 = vunpack.c.h.b16 %v2022
    %v2112 = vunpack.c.l.b16 %v2023
    %v2113 = vunpack.c.h.b16 %v2023
    %v2114 = vunpack.c.l.b16 %v2024
    %v2115 = vunpack.c.h.b16 %v2024
    %v2116 = vunpack.c.l.b16 %v2025
    %v2117 = vunpack.c.h.b16 %v2025
    %v2118 = vunpack.c.l.b16 %v2026
    %v2119 = vunpack.c.h.b16 %v2026
    %v2120 = vunpack.c.l.b16 %v2027
    %v2121 = vunpack.c.h.b16 %v2027
    %v2122 = vunpack.c.l.b16 %v2028
    %v2123 = vunpack.c.h.b16 %v2028
    %v2124 = vunpack.c.l.b16 %v2029
    %v2125 = vunpack.c.h.b16 %v2029
    %v2126 = vpack.c.b16 %v2066, %v2062
    %v2127 = vpack.c.b16 %v2067, %v2063
    %v2128 = vpack.c.b16 %v2068, %v2064
    %v2129 = vpack.c.b16 %v2069, %v2065
    %v2130 = vpack.c.b16 %v2074, %v2070
    %v2131 = vpack.c.b16 %v2075, %v2071
    %v2132 = vpack.c.b16 %v2076, %v2072
    %v2133 = vpack.c.b16 %v2077, %v2073
    %v2134 = vpack.c.b16 %v2082, %v2078
    %v2135 = vpack.c.b16 %v2083, %v2079
    %v2136 = vpack.c.b16 %v2084, %v2080
    %v2137 = vpack.c.b16 %v2085, %v2081
    %v2138 = vpack.c.b16 %v2090, %v2086
    %v2139 = vpack.c.b16 %v2091, %v2087
    %v2140 = vpack.c.b16 %v2092, %v2088
    %v2141 = vpack.c.b16 %v2093, %v2089
    %v2142 = vpack.c.b16 %v2098, %v2094
    %v2143 = vpack.c.b16 %v2099, %v2095
    %v2144 = vpack.c.b16 %v2100, %v2096
    %v2145 = vpack.c.b16 %v2101, %v2097
    %v2146 = vpack.c.b16 %v2106, %v2102
    %v2147 = vpack.c.b16 %v2107, %v2103
    %v2148 = vpack.c.b16 %v2108, %v2104
    %v2149 = vpack.c.b16 %v2109, %v2105
    %v2150 = vpack.c.b16 %v2114, %v2110
    %v2151 = vpack.c.b16 %v2115, %v2111
    %v2152 = vpack.c.b16 %v2116, %v2112
    %v2153 = vpack.c.b16 %v2117, %v2113
    %v2154 = vpack.c.b16 %v2122, %v2118
    %v2155 = vpack.c.b16 %v2123, %v2119
    %v2156 = vpack.c.b16 %v2124, %v2120
    %v2157 = vpack.c.b16 %v2125, %v2121
    %2190 = vmatpush.bf16.msra.mxu0 %v2154
    %2191 = vmatpush.bf16.msra.mxu0 %v2150
    %2192 = vmatpush.bf16.msra.mxu0 %v2146
    %2193 = vmatpush.bf16.msra.mxu0 %v2142
    %2194 = vmatpush.bf16.msra.mxu0 %v2138
    %2195 = vmatpush.bf16.msra.mxu0 %v2134
    %2196 = vmatpush.bf16.msra.mxu0 %v2130
    %2197 = vmatpush.bf16.msra.mxu0 %v2126
    %2198 = vmatmul.bf16.gmra.mxu0 %v1997
    %v2199 = vpop.f32.mrf.mxu0
    %v2200 = vadd.f32 0.0, %v2199
    %v2201 = vpop.f32.mrf.mxu0
    %2202 = vdwg.mxu0
    %2203 = vmatpush.bf16.msra.mxu0 %v2155
    %2204 = vmatpush.bf16.msra.mxu0 %v2151
    %2205 = vmatpush.bf16.msra.mxu0 %v2147
    %2206 = vmatpush.bf16.msra.mxu0 %v2143
    %2207 = vmatpush.bf16.msra.mxu0 %v2139
    %2208 = vmatpush.bf16.msra.mxu0 %v2135
    %2209 = vmatpush.bf16.msra.mxu0 %v2131
    %2210 = vmatpush.bf16.msra.mxu0 %v2127
    %2211 = vmatmul.bf16.gmra.mxu0 %v1997
    %v2212 = vpop.f32.mrf.mxu0
    %v2213 = vadd.f32 0.0, %v2212
    %v2214 = vpop.f32.mrf.mxu0
    %2215 = vdwg.mxu0
    %2216 = vmatpush.bf16.msra.mxu0 %v2156
    %2217 = vmatpush.bf16.msra.mxu0 %v2152
    %2218 = vmatpush.bf16.msra.mxu0 %v2148
    %2219 = vmatpush.bf16.msra.mxu0 %v2144
    %2220 = vmatpush.bf16.msra.mxu0 %v2140
    %2221 = vmatpush.bf16.msra.mxu0 %v2136
    %2222 = vmatpush.bf16.msra.mxu0 %v2132
    %2223 = vmatpush.bf16.msra.mxu0 %v2128
    %2224 = vmatmul.bf16.gmra.mxu0 %v1997
    %v2225 = vpop.f32.mrf.mxu0
    %v2226 = vadd.f32 0.0, %v2225
    %v2227 = vpop.f32.mrf.mxu0
    %2228 = vdwg.mxu0
    %2229 = vmatpush.bf16.msra.mxu0 %v2157
    %2230 = vmatpush.bf16.msra.mxu0 %v2153
    %2231 = vmatpush.bf16.msra.mxu0 %v2149
    %2232 = vmatpush.bf16.msra.mxu0 %v2145
    %2233 = vmatpush.bf16.msra.mxu0 %v2141
    %2234 = vmatpush.bf16.msra.mxu0 %v2137
    %2235 = vmatpush.bf16.msra.mxu0 %v2133
    %2236 = vmatpush.bf16.msra.mxu0 %v2129
    %2237 = vmatmul.bf16.gmra.mxu0 %v1997
    %v2238 = vpop.f32.mrf.mxu0
    %v2239 = vadd.f32 0.0, %v2238
    %v2240 = vpop.f32.mrf.mxu0
    %2241 = vdwg.mxu0
    %v2246 = vrot.slane %v2213, 7
    %v2247 = vrot.slane %v2226, 6
    %v2248 = vrot.slane %v2239, 5
    %v2249 = vsel %vm596, %v2200, %v2246
    %v2250 = vsel %vm598, %v2247, %v2248
    %v2251 = vsel %vm600, %v2249, %v2250
    %v2253 = vadd.f32 %v1996, %v2251
    %v2254 = vxor.u32 %v2253, 2147483648
    %v2255 = vmul.f32 %v2254, 1.442695
    %v2256 = vpow.pop %v2255
    %v2257 = vadd.f32 %v2256, 1.0
    %v2258 = vrcp.pop %v2257
    %v2259 = vmul.f32 %v2257, %v2258
    %v2260 = vsub.f32 1.0, %v2259
    %v2261 = vmul.f32 %v2258, %v2260
    %v2262 = vadd.f32 %v2258, %v2261
    %vm2263 = vweird.f32 %v2257
    %vm2264 = vweird.f32 %v2258
    %vm2265 = vmor %vm2263, %vm2264
    %v2266 = vsel %vm2265, %v2258, %v2262
    %v2267 = vand.u32 2147483647, %v2257
    %vm2268 = vcmp.eq.f32.partialorder %v2267, 8.507059e+37
    %v2269 = vand.u32 %v2257, 2147483648
    %v2270 = vor.u32 1.1754944e-38, %v2269
    %v2271 = vsel %vm2268, %v2270, %v2266
    %v2272 = vmul.f32 1.0, %v2271
    %v2274 = vrot.slane %v2253, 1
    %v2276 = vxor.u32 %v2274, 2147483648
    %v2277 = vmul.f32 %v2276, 1.442695
    %v2278 = vpow.pop %v2277
    %v2279 = vadd.f32 %v2278, 1.0
    %v2280 = vrcp.pop %v2279
    %v2281 = vmul.f32 %v2279, %v2280
    %v2282 = vsub.f32 1.0, %v2281
    %v2283 = vmul.f32 %v2280, %v2282
    %v2284 = vadd.f32 %v2280, %v2283
    %vm2285 = vweird.f32 %v2279
    %vm2286 = vweird.f32 %v2280
    %vm2287 = vmor %vm2285, %vm2286
    %v2288 = vsel %vm2287, %v2280, %v2284
    %v2289 = vand.u32 2147483647, %v2279
    %vm2290 = vcmp.eq.f32.partialorder %v2289, 8.507059e+37
    %v2291 = vand.u32 %v2279, 2147483648
    %v2292 = vor.u32 1.1754944e-38, %v2291
    %v2293 = vsel %vm2290, %v2292, %v2288
    %v2294 = vmul.f32 1.0, %v2293
    %v2295 = vrot.slane %v2253, 2
    %v2297 = vtanh.pop %v2295
    %v2298 = vrot.slane %v2253, 3
    %v2300 = vxor.u32 %v2298, 2147483648
    %v2301 = vmul.f32 %v2300, 1.442695
    %v2302 = vpow.pop %v2301
    %v2303 = vadd.f32 %v2302, 1.0
    %v2304 = vrcp.pop %v2303
    %v2305 = vmul.f32 %v2303, %v2304
    %v2306 = vsub.f32 1.0, %v2305
    %v2307 = vmul.f32 %v2304, %v2306
    %v2308 = vadd.f32 %v2304, %v2307
    %vm2309 = vweird.f32 %v2303
    %vm2310 = vweird.f32 %v2304
    %vm2311 = vmor %vm2309, %vm2310
    %v2312 = vsel %vm2311, %v2304, %v2308
    %v2313 = vand.u32 2147483647, %v2303
    %vm2314 = vcmp.eq.f32.partialorder %v2313, 8.507059e+37
    %v2315 = vand.u32 %v2303, 2147483648
    %v2316 = vor.u32 1.1754944e-38, %v2315
    %v2317 = vsel %vm2314, %v2316, %v2312
    %v2318 = vmul.f32 1.0, %v2317
    %v2319 = vmul.f32 %v2294, %v1991
    %v2320 = vmul.f32 %v2272, %v2297
    %v2321 = vadd.f32 %v2319, %v2320
    %v2322 = vtanh.pop %v2321
    %v2323 = vmul.f32 %v2318, %v2322
    %2324 = vst [vmem:[#allocation3 + $0x5] sm:$0x1] %v2323
    %s2325 = scalar_lea.vmem [#allocation2], 6
    %v2326 = vld [vmem:[%s2325] ss:$8 sm:$0xf]
    %v2327 = vpack.c.bf16 %v2323, %v2323
    %v2328 = vld [vmem:[#allocation7] sm:$0xff]
    %v2329 = vld [vmem:[#allocation7 + $0x8] sm:$0xff]
    %v2330 = vld [vmem:[#allocation7 + $0x10] sm:$0xff]
    %v2331 = vld [vmem:[#allocation7 + $0x18] sm:$0xff]
    %v2332 = vld [vmem:[#allocation7 + $0x20] sm:$0xff]
    %v2333 = vld [vmem:[#allocation7 + $0x28] sm:$0xff]
    %v2334 = vld [vmem:[#allocation7 + $0x30] sm:$0xff]
    %v2335 = vld [vmem:[#allocation7 + $0x38] sm:$0xff]
    %v2336 = vld [vmem:[#allocation7 + $0x40] sm:$0xff]
    %v2337 = vld [vmem:[#allocation7 + $0x48] sm:$0xff]
    %v2338 = vld [vmem:[#allocation7 + $0x50] sm:$0xff]
    %v2339 = vld [vmem:[#allocation7 + $0x58] sm:$0xff]
    %v2340 = vld [vmem:[#allocation7 + $0x60] sm:$0xff]
    %v2341 = vld [vmem:[#allocation7 + $0x68] sm:$0xff]
    %v2342 = vld [vmem:[#allocation7 + $0x70] sm:$0xff]
    %v2343 = vld [vmem:[#allocation7 + $0x78] sm:$0xff]
    %v2344 = vld [vmem:[#allocation7 + $0x80] sm:$0xff]
    %v2345 = vld [vmem:[#allocation7 + $0x88] sm:$0xff]
    %v2346 = vld [vmem:[#allocation7 + $0x90] sm:$0xff]
    %v2347 = vld [vmem:[#allocation7 + $0x98] sm:$0xff]
    %v2348 = vld [vmem:[#allocation7 + $0xa0] sm:$0xff]
    %v2349 = vld [vmem:[#allocation7 + $0xa8] sm:$0xff]
    %v2350 = vld [vmem:[#allocation7 + $0xb0] sm:$0xff]
    %v2351 = vld [vmem:[#allocation7 + $0xb8] sm:$0xff]
    %v2352 = vld [vmem:[#allocation7 + $0xc0] sm:$0xff]
    %v2353 = vld [vmem:[#allocation7 + $0xc8] sm:$0xff]
    %v2354 = vld [vmem:[#allocation7 + $0xd0] sm:$0xff]
    %v2355 = vld [vmem:[#allocation7 + $0xd8] sm:$0xff]
    %v2356 = vld [vmem:[#allocation7 + $0xe0] sm:$0xff]
    %v2357 = vld [vmem:[#allocation7 + $0xe8] sm:$0xff]
    %v2358 = vld [vmem:[#allocation7 + $0xf0] sm:$0xff]
    %v2359 = vld [vmem:[#allocation7 + $0xf8] sm:$0xff]
    %v2392 = vunpack.c.l.b16 %v2328
    %v2393 = vunpack.c.h.b16 %v2328
    %v2394 = vunpack.c.l.b16 %v2329
    %v2395 = vunpack.c.h.b16 %v2329
    %v2396 = vunpack.c.l.b16 %v2330
    %v2397 = vunpack.c.h.b16 %v2330
    %v2398 = vunpack.c.l.b16 %v2331
    %v2399 = vunpack.c.h.b16 %v2331
    %v2400 = vunpack.c.l.b16 %v2332
    %v2401 = vunpack.c.h.b16 %v2332
    %v2402 = vunpack.c.l.b16 %v2333
    %v2403 = vunpack.c.h.b16 %v2333
    %v2404 = vunpack.c.l.b16 %v2334
    %v2405 = vunpack.c.h.b16 %v2334
    %v2406 = vunpack.c.l.b16 %v2335
    %v2407 = vunpack.c.h.b16 %v2335
    %v2408 = vunpack.c.l.b16 %v2336
    %v2409 = vunpack.c.h.b16 %v2336
    %v2410 = vunpack.c.l.b16 %v2337
    %v2411 = vunpack.c.h.b16 %v2337
    %v2412 = vunpack.c.l.b16 %v2338
    %v2413 = vunpack.c.h.b16 %v2338
    %v2414 = vunpack.c.l.b16 %v2339
    %v2415 = vunpack.c.h.b16 %v2339
    %v2416 = vunpack.c.l.b16 %v2340
    %v2417 = vunpack.c.h.b16 %v2340
    %v2418 = vunpack.c.l.b16 %v2341
    %v2419 = vunpack.c.h.b16 %v2341
    %v2420 = vunpack.c.l.b16 %v2342
    %v2421 = vunpack.c.h.b16 %v2342
    %v2422 = vunpack.c.l.b16 %v2343
    %v2423 = vunpack.c.h.b16 %v2343
    %v2424 = vunpack.c.l.b16 %v2344
    %v2425 = vunpack.c.h.b16 %v2344
    %v2426 = vunpack.c.l.b16 %v2345
    %v2427 = vunpack.c.h.b16 %v2345
    %v2428 = vunpack.c.l.b16 %v2346
    %v2429 = vunpack.c.h.b16 %v2346
    %v2430 = vunpack.c.l.b16 %v2347
    %v2431 = vunpack.c.h.b16 %v2347
    %v2432 = vunpack.c.l.b16 %v2348
    %v2433 = vunpack.c.h.b16 %v2348
    %v2434 = vunpack.c.l.b16 %v2349
    %v2435 = vunpack.c.h.b16 %v2349
    %v2436 = vunpack.c.l.b16 %v2350
    %v2437 = vunpack.c.h.b16 %v2350
    %v2438 = vunpack.c.l.b16 %v2351
    %v2439 = vunpack.c.h.b16 %v2351
    %v2440 = vunpack.c.l.b16 %v2352
    %v2441 = vunpack.c.h.b16 %v2352
    %v2442 = vunpack.c.l.b16 %v2353
    %v2443 = vunpack.c.h.b16 %v2353
    %v2444 = vunpack.c.l.b16 %v2354
    %v2445 = vunpack.c.h.b16 %v2354
    %v2446 = vunpack.c.l.b16 %v2355
    %v2447 = vunpack.c.h.b16 %v2355
    %v2448 = vunpack.c.l.b16 %v2356
    %v2449 = vunpack.c.h.b16 %v2356
    %v2450 = vunpack.c.l.b16 %v2357
    %v2451 = vunpack.c.h.b16 %v2357
    %v2452 = vunpack.c.l.b16 %v2358
    %v2453 = vunpack.c.h.b16 %v2358
    %v2454 = vunpack.c.l.b16 %v2359
    %v2455 = vunpack.c.h.b16 %v2359
    %v2456 = vpack.c.b16 %v2396, %v2392
    %v2457 = vpack.c.b16 %v2397, %v2393
    %v2458 = vpack.c.b16 %v2398, %v2394
    %v2459 = vpack.c.b16 %v2399, %v2395
    %v2460 = vpack.c.b16 %v2404, %v2400
    %v2461 = vpack.c.b16 %v2405, %v2401
    %v2462 = vpack.c.b16 %v2406, %v2402
    %v2463 = vpack.c.b16 %v2407, %v2403
    %v2464 = vpack.c.b16 %v2412, %v2408
    %v2465 = vpack.c.b16 %v2413, %v2409
    %v2466 = vpack.c.b16 %v2414, %v2410
    %v2467 = vpack.c.b16 %v2415, %v2411
    %v2468 = vpack.c.b16 %v2420, %v2416
    %v2469 = vpack.c.b16 %v2421, %v2417
    %v2470 = vpack.c.b16 %v2422, %v2418
    %v2471 = vpack.c.b16 %v2423, %v2419
    %v2472 = vpack.c.b16 %v2428, %v2424
    %v2473 = vpack.c.b16 %v2429, %v2425
    %v2474 = vpack.c.b16 %v2430, %v2426
    %v2475 = vpack.c.b16 %v2431, %v2427
    %v2476 = vpack.c.b16 %v2436, %v2432
    %v2477 = vpack.c.b16 %v2437, %v2433
    %v2478 = vpack.c.b16 %v2438, %v2434
    %v2479 = vpack.c.b16 %v2439, %v2435
    %v2480 = vpack.c.b16 %v2444, %v2440
    %v2481 = vpack.c.b16 %v2445, %v2441
    %v2482 = vpack.c.b16 %v2446, %v2442
    %v2483 = vpack.c.b16 %v2447, %v2443
    %v2484 = vpack.c.b16 %v2452, %v2448
    %v2485 = vpack.c.b16 %v2453, %v2449
    %v2486 = vpack.c.b16 %v2454, %v2450
    %v2487 = vpack.c.b16 %v2455, %v2451
    %2520 = vmatpush.bf16.msra.mxu0 %v2484
    %2521 = vmatpush.bf16.msra.mxu0 %v2480
    %2522 = vmatpush.bf16.msra.mxu0 %v2476
    %2523 = vmatpush.bf16.msra.mxu0 %v2472
    %2524 = vmatpush.bf16.msra.mxu0 %v2468
    %2525 = vmatpush.bf16.msra.mxu0 %v2464
    %2526 = vmatpush.bf16.msra.mxu0 %v2460
    %2527 = vmatpush.bf16.msra.mxu0 %v2456
    %2528 = vmatmul.bf16.gmra.mxu0 %v2327
    %v2529 = vpop.f32.mrf.mxu0
    %v2530 = vadd.f32 0.0, %v2529
    %v2531 = vpop.f32.mrf.mxu0
    %2532 = vdwg.mxu0
    %2533 = vmatpush.bf16.msra.mxu0 %v2485
    %2534 = vmatpush.bf16.msra.mxu0 %v2481
    %2535 = vmatpush.bf16.msra.mxu0 %v2477
    %2536 = vmatpush.bf16.msra.mxu0 %v2473
    %2537 = vmatpush.bf16.msra.mxu0 %v2469
    %2538 = vmatpush.bf16.msra.mxu0 %v2465
    %2539 = vmatpush.bf16.msra.mxu0 %v2461
    %2540 = vmatpush.bf16.msra.mxu0 %v2457
    %2541 = vmatmul.bf16.gmra.mxu0 %v2327
    %v2542 = vpop.f32.mrf.mxu0
    %v2543 = vadd.f32 0.0, %v2542
    %v2544 = vpop.f32.mrf.mxu0
    %2545 = vdwg.mxu0
    %2546 = vmatpush.bf16.msra.mxu0 %v2486
    %2547 = vmatpush.bf16.msra.mxu0 %v2482
    %2548 = vmatpush.bf16.msra.mxu0 %v2478
    %2549 = vmatpush.bf16.msra.mxu0 %v2474
    %2550 = vmatpush.bf16.msra.mxu0 %v2470
    %2551 = vmatpush.bf16.msra.mxu0 %v2466
    %2552 = vmatpush.bf16.msra.mxu0 %v2462
    %2553 = vmatpush.bf16.msra.mxu0 %v2458
    %2554 = vmatmul.bf16.gmra.mxu0 %v2327
    %v2555 = vpop.f32.mrf.mxu0
    %v2556 = vadd.f32 0.0, %v2555
    %v2557 = vpop.f32.mrf.mxu0
    %2558 = vdwg.mxu0
    %2559 = vmatpush.bf16.msra.mxu0 %v2487
    %2560 = vmatpush.bf16.msra.mxu0 %v2483
    %2561 = vmatpush.bf16.msra.mxu0 %v2479
    %2562 = vmatpush.bf16.msra.mxu0 %v2475
    %2563 = vmatpush.bf16.msra.mxu0 %v2471
    %2564 = vmatpush.bf16.msra.mxu0 %v2467
    %2565 = vmatpush.bf16.msra.mxu0 %v2463
    %2566 = vmatpush.bf16.msra.mxu0 %v2459
    %2567 = vmatmul.bf16.gmra.mxu0 %v2327
    %v2568 = vpop.f32.mrf.mxu0
    %v2569 = vadd.f32 0.0, %v2568
    %v2570 = vpop.f32.mrf.mxu0
    %2571 = vdwg.mxu0
    %v2576 = vrot.slane %v2543, 7
    %v2577 = vrot.slane %v2556, 6
    %v2578 = vrot.slane %v2569, 5
    %v2579 = vsel %vm596, %v2530, %v2576
    %v2580 = vsel %vm598, %v2577, %v2578
    %v2581 = vsel %vm600, %v2579, %v2580
    %v2583 = vadd.f32 %v2326, %v2581
    %v2584 = vxor.u32 %v2583, 2147483648
    %v2585 = vmul.f32 %v2584, 1.442695
    %v2586 = vpow.pop %v2585
    %v2587 = vadd.f32 %v2586, 1.0
    %v2588 = vrcp.pop %v2587
    %v2589 = vmul.f32 %v2587, %v2588
    %v2590 = vsub.f32 1.0, %v2589
    %v2591 = vmul.f32 %v2588, %v2590
    %v2592 = vadd.f32 %v2588, %v2591
    %vm2593 = vweird.f32 %v2587
    %vm2594 = vweird.f32 %v2588
    %vm2595 = vmor %vm2593, %vm2594
    %v2596 = vsel %vm2595, %v2588, %v2592
    %v2597 = vand.u32 2147483647, %v2587
    %vm2598 = vcmp.eq.f32.partialorder %v2597, 8.507059e+37
    %v2599 = vand.u32 %v2587, 2147483648
    %v2600 = vor.u32 1.1754944e-38, %v2599
    %v2601 = vsel %vm2598, %v2600, %v2596
    %v2602 = vmul.f32 1.0, %v2601
    %v2604 = vrot.slane %v2583, 1
    %v2606 = vxor.u32 %v2604, 2147483648
    %v2607 = vmul.f32 %v2606, 1.442695
    %v2608 = vpow.pop %v2607
    %v2609 = vadd.f32 %v2608, 1.0
    %v2610 = vrcp.pop %v2609
    %v2611 = vmul.f32 %v2609, %v2610
    %v2612 = vsub.f32 1.0, %v2611
    %v2613 = vmul.f32 %v2610, %v2612
    %v2614 = vadd.f32 %v2610, %v2613
    %vm2615 = vweird.f32 %v2609
    %vm2616 = vweird.f32 %v2610
    %vm2617 = vmor %vm2615, %vm2616
    %v2618 = vsel %vm2617, %v2610, %v2614
    %v2619 = vand.u32 2147483647, %v2609
    %vm2620 = vcmp.eq.f32.partialorder %v2619, 8.507059e+37
    %v2621 = vand.u32 %v2609, 2147483648
    %v2622 = vor.u32 1.1754944e-38, %v2621
    %v2623 = vsel %vm2620, %v2622, %v2618
    %v2624 = vmul.f32 1.0, %v2623
    %v2625 = vrot.slane %v2583, 2
    %v2627 = vtanh.pop %v2625
    %v2628 = vrot.slane %v2583, 3
    %v2630 = vxor.u32 %v2628, 2147483648
    %v2631 = vmul.f32 %v2630, 1.442695
    %v2632 = vpow.pop %v2631
    %v2633 = vadd.f32 %v2632, 1.0
    %v2634 = vrcp.pop %v2633
    %v2635 = vmul.f32 %v2633, %v2634
    %v2636 = vsub.f32 1.0, %v2635
    %v2637 = vmul.f32 %v2634, %v2636
    %v2638 = vadd.f32 %v2634, %v2637
    %vm2639 = vweird.f32 %v2633
    %vm2640 = vweird.f32 %v2634
    %vm2641 = vmor %vm2639, %vm2640
    %v2642 = vsel %vm2641, %v2634, %v2638
    %v2643 = vand.u32 2147483647, %v2633
    %vm2644 = vcmp.eq.f32.partialorder %v2643, 8.507059e+37
    %v2645 = vand.u32 %v2633, 2147483648
    %v2646 = vor.u32 1.1754944e-38, %v2645
    %v2647 = vsel %vm2644, %v2646, %v2642
    %v2648 = vmul.f32 1.0, %v2647
    %v2649 = vmul.f32 %v2624, %v2321
    %v2650 = vmul.f32 %v2602, %v2627
    %v2651 = vadd.f32 %v2649, %v2650
    %v2652 = vtanh.pop %v2651
    %v2653 = vmul.f32 %v2648, %v2652
    %2654 = vst [vmem:[#allocation3 + $0x6] sm:$0x1] %v2653
    %s2655 = scalar_lea.vmem [#allocation2], 7
    %v2656 = vld [vmem:[%s2655] ss:$8 sm:$0xf]
    %v2657 = vpack.c.bf16 %v2653, %v2653
    %v2658 = vld [vmem:[#allocation7] sm:$0xff]
    %v2659 = vld [vmem:[#allocation7 + $0x8] sm:$0xff]
    %v2660 = vld [vmem:[#allocation7 + $0x10] sm:$0xff]
    %v2661 = vld [vmem:[#allocation7 + $0x18] sm:$0xff]
    %v2662 = vld [vmem:[#allocation7 + $0x20] sm:$0xff]
    %v2663 = vld [vmem:[#allocation7 + $0x28] sm:$0xff]
    %v2664 = vld [vmem:[#allocation7 + $0x30] sm:$0xff]
    %v2665 = vld [vmem:[#allocation7 + $0x38] sm:$0xff]
    %v2666 = vld [vmem:[#allocation7 + $0x40] sm:$0xff]
    %v2667 = vld [vmem:[#allocation7 + $0x48] sm:$0xff]
    %v2668 = vld [vmem:[#allocation7 + $0x50] sm:$0xff]
    %v2669 = vld [vmem:[#allocation7 + $0x58] sm:$0xff]
    %v2670 = vld [vmem:[#allocation7 + $0x60] sm:$0xff]
    %v2671 = vld [vmem:[#allocation7 + $0x68] sm:$0xff]
    %v2672 = vld [vmem:[#allocation7 + $0x70] sm:$0xff]
    %v2673 = vld [vmem:[#allocation7 + $0x78] sm:$0xff]
    %v2674 = vld [vmem:[#allocation7 + $0x80] sm:$0xff]
    %v2675 = vld [vmem:[#allocation7 + $0x88] sm:$0xff]
    %v2676 = vld [vmem:[#allocation7 + $0x90] sm:$0xff]
    %v2677 = vld [vmem:[#allocation7 + $0x98] sm:$0xff]
    %v2678 = vld [vmem:[#allocation7 + $0xa0] sm:$0xff]
    %v2679 = vld [vmem:[#allocation7 + $0xa8] sm:$0xff]
    %v2680 = vld [vmem:[#allocation7 + $0xb0] sm:$0xff]
    %v2681 = vld [vmem:[#allocation7 + $0xb8] sm:$0xff]
    %v2682 = vld [vmem:[#allocation7 + $0xc0] sm:$0xff]
    %v2683 = vld [vmem:[#allocation7 + $0xc8] sm:$0xff]
    %v2684 = vld [vmem:[#allocation7 + $0xd0] sm:$0xff]
    %v2685 = vld [vmem:[#allocation7 + $0xd8] sm:$0xff]
    %v2686 = vld [vmem:[#allocation7 + $0xe0] sm:$0xff]
    %v2687 = vld [vmem:[#allocation7 + $0xe8] sm:$0xff]
    %v2688 = vld [vmem:[#allocation7 + $0xf0] sm:$0xff]
    %v2689 = vld [vmem:[#allocation7 + $0xf8] sm:$0xff]
    %v2722 = vunpack.c.l.b16 %v2658
    %v2723 = vunpack.c.h.b16 %v2658
    %v2724 = vunpack.c.l.b16 %v2659
    %v2725 = vunpack.c.h.b16 %v2659
    %v2726 = vunpack.c.l.b16 %v2660
    %v2727 = vunpack.c.h.b16 %v2660
    %v2728 = vunpack.c.l.b16 %v2661
    %v2729 = vunpack.c.h.b16 %v2661
    %v2730 = vunpack.c.l.b16 %v2662
    %v2731 = vunpack.c.h.b16 %v2662
    %v2732 = vunpack.c.l.b16 %v2663
    %v2733 = vunpack.c.h.b16 %v2663
    %v2734 = vunpack.c.l.b16 %v2664
    %v2735 = vunpack.c.h.b16 %v2664
    %v2736 = vunpack.c.l.b16 %v2665
    %v2737 = vunpack.c.h.b16 %v2665
    %v2738 = vunpack.c.l.b16 %v2666
    %v2739 = vunpack.c.h.b16 %v2666
    %v2740 = vunpack.c.l.b16 %v2667
    %v2741 = vunpack.c.h.b16 %v2667
    %v2742 = vunpack.c.l.b16 %v2668
    %v2743 = vunpack.c.h.b16 %v2668
    %v2744 = vunpack.c.l.b16 %v2669
    %v2745 = vunpack.c.h.b16 %v2669
    %v2746 = vunpack.c.l.b16 %v2670
    %v2747 = vunpack.c.h.b16 %v2670
    %v2748 = vunpack.c.l.b16 %v2671
    %v2749 = vunpack.c.h.b16 %v2671
    %v2750 = vunpack.c.l.b16 %v2672
    %v2751 = vunpack.c.h.b16 %v2672
    %v2752 = vunpack.c.l.b16 %v2673
    %v2753 = vunpack.c.h.b16 %v2673
    %v2754 = vunpack.c.l.b16 %v2674
    %v2755 = vunpack.c.h.b16 %v2674
    %v2756 = vunpack.c.l.b16 %v2675
    %v2757 = vunpack.c.h.b16 %v2675
    %v2758 = vunpack.c.l.b16 %v2676
    %v2759 = vunpack.c.h.b16 %v2676
    %v2760 = vunpack.c.l.b16 %v2677
    %v2761 = vunpack.c.h.b16 %v2677
    %v2762 = vunpack.c.l.b16 %v2678
    %v2763 = vunpack.c.h.b16 %v2678
    %v2764 = vunpack.c.l.b16 %v2679
    %v2765 = vunpack.c.h.b16 %v2679
    %v2766 = vunpack.c.l.b16 %v2680
    %v2767 = vunpack.c.h.b16 %v2680
    %v2768 = vunpack.c.l.b16 %v2681
    %v2769 = vunpack.c.h.b16 %v2681
    %v2770 = vunpack.c.l.b16 %v2682
    %v2771 = vunpack.c.h.b16 %v2682
    %v2772 = vunpack.c.l.b16 %v2683
    %v2773 = vunpack.c.h.b16 %v2683
    %v2774 = vunpack.c.l.b16 %v2684
    %v2775 = vunpack.c.h.b16 %v2684
    %v2776 = vunpack.c.l.b16 %v2685
    %v2777 = vunpack.c.h.b16 %v2685
    %v2778 = vunpack.c.l.b16 %v2686
    %v2779 = vunpack.c.h.b16 %v2686
    %v2780 = vunpack.c.l.b16 %v2687
    %v2781 = vunpack.c.h.b16 %v2687
    %v2782 = vunpack.c.l.b16 %v2688
    %v2783 = vunpack.c.h.b16 %v2688
    %v2784 = vunpack.c.l.b16 %v2689
    %v2785 = vunpack.c.h.b16 %v2689
    %v2786 = vpack.c.b16 %v2726, %v2722
    %v2787 = vpack.c.b16 %v2727, %v2723
    %v2788 = vpack.c.b16 %v2728, %v2724
    %v2789 = vpack.c.b16 %v2729, %v2725
    %v2790 = vpack.c.b16 %v2734, %v2730
    %v2791 = vpack.c.b16 %v2735, %v2731
    %v2792 = vpack.c.b16 %v2736, %v2732
    %v2793 = vpack.c.b16 %v2737, %v2733
    %v2794 = vpack.c.b16 %v2742, %v2738
    %v2795 = vpack.c.b16 %v2743, %v2739
    %v2796 = vpack.c.b16 %v2744, %v2740
    %v2797 = vpack.c.b16 %v2745, %v2741
    %v2798 = vpack.c.b16 %v2750, %v2746
    %v2799 = vpack.c.b16 %v2751, %v2747
    %v2800 = vpack.c.b16 %v2752, %v2748
    %v2801 = vpack.c.b16 %v2753, %v2749
    %v2802 = vpack.c.b16 %v2758, %v2754
    %v2803 = vpack.c.b16 %v2759, %v2755
    %v2804 = vpack.c.b16 %v2760, %v2756
    %v2805 = vpack.c.b16 %v2761, %v2757
    %v2806 = vpack.c.b16 %v2766, %v2762
    %v2807 = vpack.c.b16 %v2767, %v2763
    %v2808 = vpack.c.b16 %v2768, %v2764
    %v2809 = vpack.c.b16 %v2769, %v2765
    %v2810 = vpack.c.b16 %v2774, %v2770
    %v2811 = vpack.c.b16 %v2775, %v2771
    %v2812 = vpack.c.b16 %v2776, %v2772
    %v2813 = vpack.c.b16 %v2777, %v2773
    %v2814 = vpack.c.b16 %v2782, %v2778
    %v2815 = vpack.c.b16 %v2783, %v2779
    %v2816 = vpack.c.b16 %v2784, %v2780
    %v2817 = vpack.c.b16 %v2785, %v2781
    %2850 = vmatpush.bf16.msra.mxu0 %v2814
    %2851 = vmatpush.bf16.msra.mxu0 %v2810
    %2852 = vmatpush.bf16.msra.mxu0 %v2806
    %2853 = vmatpush.bf16.msra.mxu0 %v2802
    %2854 = vmatpush.bf16.msra.mxu0 %v2798
    %2855 = vmatpush.bf16.msra.mxu0 %v2794
    %2856 = vmatpush.bf16.msra.mxu0 %v2790
    %2857 = vmatpush.bf16.msra.mxu0 %v2786
    %2858 = vmatmul.bf16.gmra.mxu0 %v2657
    %v2859 = vpop.f32.mrf.mxu0
    %v2860 = vadd.f32 0.0, %v2859
    %v2861 = vpop.f32.mrf.mxu0
    %2862 = vdwg.mxu0
    %2863 = vmatpush.bf16.msra.mxu0 %v2815
    %2864 = vmatpush.bf16.msra.mxu0 %v2811
    %2865 = vmatpush.bf16.msra.mxu0 %v2807
    %2866 = vmatpush.bf16.msra.mxu0 %v2803
    %2867 = vmatpush.bf16.msra.mxu0 %v2799
    %2868 = vmatpush.bf16.msra.mxu0 %v2795
    %2869 = vmatpush.bf16.msra.mxu0 %v2791
    %2870 = vmatpush.bf16.msra.mxu0 %v2787
    %2871 = vmatmul.bf16.gmra.mxu0 %v2657
    %v2872 = vpop.f32.mrf.mxu0
    %v2873 = vadd.f32 0.0, %v2872
    %v2874 = vpop.f32.mrf.mxu0
    %2875 = vdwg.mxu0
    %2876 = vmatpush.bf16.msra.mxu0 %v2816
    %2877 = vmatpush.bf16.msra.mxu0 %v2812
    %2878 = vmatpush.bf16.msra.mxu0 %v2808
    %2879 = vmatpush.bf16.msra.mxu0 %v2804
    %2880 = vmatpush.bf16.msra.mxu0 %v2800
    %2881 = vmatpush.bf16.msra.mxu0 %v2796
    %2882 = vmatpush.bf16.msra.mxu0 %v2792
    %2883 = vmatpush.bf16.msra.mxu0 %v2788
    %2884 = vmatmul.bf16.gmra.mxu0 %v2657
    %v2885 = vpop.f32.mrf.mxu0
    %v2886 = vadd.f32 0.0, %v2885
    %v2887 = vpop.f32.mrf.mxu0
    %2888 = vdwg.mxu0
    %2889 = vmatpush.bf16.msra.mxu0 %v2817
    %2890 = vmatpush.bf16.msra.mxu0 %v2813
    %2891 = vmatpush.bf16.msra.mxu0 %v2809
    %2892 = vmatpush.bf16.msra.mxu0 %v2805
    %2893 = vmatpush.bf16.msra.mxu0 %v2801
    %2894 = vmatpush.bf16.msra.mxu0 %v2797
    %2895 = vmatpush.bf16.msra.mxu0 %v2793
    %2896 = vmatpush.bf16.msra.mxu0 %v2789
    %2897 = vmatmul.bf16.gmra.mxu0 %v2657
    %v2898 = vpop.f32.mrf.mxu0
    %v2899 = vadd.f32 0.0, %v2898
    %v2900 = vpop.f32.mrf.mxu0
    %2901 = vdwg.mxu0
    %v2906 = vrot.slane %v2873, 7
    %v2907 = vrot.slane %v2886, 6
    %v2908 = vrot.slane %v2899, 5
    %v2909 = vsel %vm596, %v2860, %v2906
    %v2910 = vsel %vm598, %v2907, %v2908
    %v2911 = vsel %vm600, %v2909, %v2910
    %v2913 = vadd.f32 %v2656, %v2911
    %v2914 = vxor.u32 %v2913, 2147483648
    %v2915 = vmul.f32 %v2914, 1.442695
    %v2916 = vpow.pop %v2915
    %v2917 = vadd.f32 %v2916, 1.0
    %v2918 = vrcp.pop %v2917
    %v2919 = vmul.f32 %v2917, %v2918
    %v2920 = vsub.f32 1.0, %v2919
    %v2921 = vmul.f32 %v2918, %v2920
    %v2922 = vadd.f32 %v2918, %v2921
    %vm2923 = vweird.f32 %v2917
    %vm2924 = vweird.f32 %v2918
    %vm2925 = vmor %vm2923, %vm2924
    %v2926 = vsel %vm2925, %v2918, %v2922
    %v2927 = vand.u32 2147483647, %v2917
    %vm2928 = vcmp.eq.f32.partialorder %v2927, 8.507059e+37
    %v2929 = vand.u32 %v2917, 2147483648
    %v2930 = vor.u32 1.1754944e-38, %v2929
    %v2931 = vsel %vm2928, %v2930, %v2926
    %v2932 = vmul.f32 1.0, %v2931
    %v2934 = vrot.slane %v2913, 1
    %v2936 = vxor.u32 %v2934, 2147483648
    %v2937 = vmul.f32 %v2936, 1.442695
    %v2938 = vpow.pop %v2937
    %v2939 = vadd.f32 %v2938, 1.0
    %v2940 = vrcp.pop %v2939
    %v2941 = vmul.f32 %v2939, %v2940
    %v2942 = vsub.f32 1.0, %v2941
    %v2943 = vmul.f32 %v2940, %v2942
    %v2944 = vadd.f32 %v2940, %v2943
    %vm2945 = vweird.f32 %v2939
    %vm2946 = vweird.f32 %v2940
    %vm2947 = vmor %vm2945, %vm2946
    %v2948 = vsel %vm2947, %v2940, %v2944
    %v2949 = vand.u32 2147483647, %v2939
    %vm2950 = vcmp.eq.f32.partialorder %v2949, 8.507059e+37
    %v2951 = vand.u32 %v2939, 2147483648
    %v2952 = vor.u32 1.1754944e-38, %v2951
    %v2953 = vsel %vm2950, %v2952, %v2948
    %v2954 = vmul.f32 1.0, %v2953
    %v2955 = vrot.slane %v2913, 2
    %v2957 = vtanh.pop %v2955
    %v2958 = vrot.slane %v2913, 3
    %v2960 = vxor.u32 %v2958, 2147483648
    %v2961 = vmul.f32 %v2960, 1.442695
    %v2962 = vpow.pop %v2961
    %v2963 = vadd.f32 %v2962, 1.0
    %v2964 = vrcp.pop %v2963
    %v2965 = vmul.f32 %v2963, %v2964
    %v2966 = vsub.f32 1.0, %v2965
    %v2967 = vmul.f32 %v2964, %v2966
    %v2968 = vadd.f32 %v2964, %v2967
    %vm2969 = vweird.f32 %v2963
    %vm2970 = vweird.f32 %v2964
    %vm2971 = vmor %vm2969, %vm2970
    %v2972 = vsel %vm2971, %v2964, %v2968
    %v2973 = vand.u32 2147483647, %v2963
    %vm2974 = vcmp.eq.f32.partialorder %v2973, 8.507059e+37
    %v2975 = vand.u32 %v2963, 2147483648
    %v2976 = vor.u32 1.1754944e-38, %v2975
    %v2977 = vsel %vm2974, %v2976, %v2972
    %v2978 = vmul.f32 1.0, %v2977
    %v2979 = vmul.f32 %v2954, %v2651
    %v2980 = vmul.f32 %v2932, %v2957
    %v2981 = vadd.f32 %v2979, %v2980
    %v2982 = vtanh.pop %v2981
    %v2983 = vmul.f32 %v2978, %v2982
    %2984 = vst [vmem:[#allocation3 + $0x7] sm:$0x1] %v2983
    %2985 = vst [vmem:[#allocation11] sm:$0x1] %v2983
    %2986 = vst [vmem:[#allocation13] sm:$0x1] %v2981
    %v2987 = vld [vmem:[#allocation3] sm:$0xff]
    %v2988 = vpack.c.bf16 %v2987, %v2987
    %v2989 = vld [vmem:[#allocation9] sm:$0xff]
    %v2990 = vld [vmem:[#allocation9 + $0x8] sm:$0xff]
    %v2991 = vld [vmem:[#allocation9 + $0x10] sm:$0xff]
    %v2992 = vld [vmem:[#allocation9 + $0x18] sm:$0xff]
    %v2993 = vld [vmem:[#allocation9 + $0x20] sm:$0xff]
    %v2994 = vld [vmem:[#allocation9 + $0x28] sm:$0xff]
    %v2995 = vld [vmem:[#allocation9 + $0x30] sm:$0xff]
    %v2996 = vld [vmem:[#allocation9 + $0x38] sm:$0xff]
    %v2997 = vld [vmem:[#allocation9 + $0x40] sm:$0xff]
    %v2998 = vld [vmem:[#allocation9 + $0x48] sm:$0xff]
    %v2999 = vld [vmem:[#allocation9 + $0x50] sm:$0xff]
    %v3000 = vld [vmem:[#allocation9 + $0x58] sm:$0xff]
    %v3001 = vld [vmem:[#allocation9 + $0x60] sm:$0xff]
    %v3002 = vld [vmem:[#allocation9 + $0x68] sm:$0xff]
    %v3003 = vld [vmem:[#allocation9 + $0x70] sm:$0xff]
    %v3004 = vld [vmem:[#allocation9 + $0x78] sm:$0xff]
    %v3005 = vld [vmem:[%s5] sm:$0x3]
    %v3007 = vperm.slane %v3005, 0
    %v3008 = vperm.slane %v3005, 1
    %v3027 = vunpack.c.l.b16 %v2989
    %v3028 = vunpack.c.h.b16 %v2989
    %v3029 = vunpack.c.l.b16 %v2990
    %v3030 = vunpack.c.h.b16 %v2990
    %v3031 = vunpack.c.l.b16 %v2991
    %v3032 = vunpack.c.h.b16 %v2991
    %v3033 = vunpack.c.l.b16 %v2992
    %v3034 = vunpack.c.h.b16 %v2992
    %v3035 = vunpack.c.l.b16 %v2993
    %v3036 = vunpack.c.h.b16 %v2993
    %v3037 = vunpack.c.l.b16 %v2994
    %v3038 = vunpack.c.h.b16 %v2994
    %v3039 = vunpack.c.l.b16 %v2995
    %v3040 = vunpack.c.h.b16 %v2995
    %v3041 = vunpack.c.l.b16 %v2996
    %v3042 = vunpack.c.h.b16 %v2996
    %v3043 = vunpack.c.l.b16 %v2997
    %v3044 = vunpack.c.h.b16 %v2997
    %v3045 = vunpack.c.l.b16 %v2998
    %v3046 = vunpack.c.h.b16 %v2998
    %v3047 = vunpack.c.l.b16 %v2999
    %v3048 = vunpack.c.h.b16 %v2999
    %v3049 = vunpack.c.l.b16 %v3000
    %v3050 = vunpack.c.h.b16 %v3000
    %v3051 = vunpack.c.l.b16 %v3001
    %v3052 = vunpack.c.h.b16 %v3001
    %v3053 = vunpack.c.l.b16 %v3002
    %v3054 = vunpack.c.h.b16 %v3002
    %v3055 = vunpack.c.l.b16 %v3003
    %v3056 = vunpack.c.h.b16 %v3003
    %v3057 = vunpack.c.l.b16 %v3004
    %v3058 = vunpack.c.h.b16 %v3004
    %v3059 = vpack.c.b16 %v3029, %v3027
    %v3060 = vpack.c.b16 %v3030, %v3028
    %v3061 = vpack.c.b16 %v3033, %v3031
    %v3062 = vpack.c.b16 %v3034, %v3032
    %v3063 = vpack.c.b16 %v3037, %v3035
    %v3064 = vpack.c.b16 %v3038, %v3036
    %v3065 = vpack.c.b16 %v3041, %v3039
    %v3066 = vpack.c.b16 %v3042, %v3040
    %v3067 = vpack.c.b16 %v3045, %v3043
    %v3068 = vpack.c.b16 %v3046, %v3044
    %v3069 = vpack.c.b16 %v3049, %v3047
    %v3070 = vpack.c.b16 %v3050, %v3048
    %v3071 = vpack.c.b16 %v3053, %v3051
    %v3072 = vpack.c.b16 %v3054, %v3052
    %v3073 = vpack.c.b16 %v3057, %v3055
    %v3074 = vpack.c.b16 %v3058, %v3056
    %3091 = vmatpush.bf16.msra.mxu0 %v3073
    %3092 = vmatpush.bf16.msra.mxu0 %v3071
    %3093 = vmatpush.bf16.msra.mxu0 %v3069
    %3094 = vmatpush.bf16.msra.mxu0 %v3067
    %3095 = vmatpush.bf16.msra.mxu0 %v3065
    %3096 = vmatpush.bf16.msra.mxu0 %v3063
    %3097 = vmatpush.bf16.msra.mxu0 %v3061
    %3098 = vmatpush.bf16.msra.mxu0 %v3059
    %3099 = vmatmul.bf16.gmra.mxu0 %v2988
    %v3100 = vpop.f32.mrf.mxu0
    %v3101 = vadd.f32 %v3007, %v3100
    %v3102 = vpop.f32.mrf.mxu0
    %3103 = vdwg.mxu0
    %3104 = vmatpush.bf16.msra.mxu0 %v3074
    %3105 = vmatpush.bf16.msra.mxu0 %v3072
    %3106 = vmatpush.bf16.msra.mxu0 %v3070
    %3107 = vmatpush.bf16.msra.mxu0 %v3068
    %3108 = vmatpush.bf16.msra.mxu0 %v3066
    %3109 = vmatpush.bf16.msra.mxu0 %v3064
    %3110 = vmatpush.bf16.msra.mxu0 %v3062
    %3111 = vmatpush.bf16.msra.mxu0 %v3060
    %3112 = vmatmul.bf16.gmra.mxu0 %v2988
    %v3113 = vpop.f32.mrf.mxu0
    %v3114 = vadd.f32 %v3008, %v3113
    %v3115 = vpop.f32.mrf.mxu0
    %3116 = vdwg.mxu0
    %v3117 = vmax.f32 %v3101, %v3114
    %3118 = vmax.xlane.f32.xlu0 %v3117
    %v3119 = vpop.xlane.xlu0 %3118
    %v3120 = vsub.f32 %v3101, %v3119
    %v3121 = vsub.f32 %v3114, %v3119
    %v3122 = vmul.f32 %v3120, 1.442695
    %v3123 = vpow.pop %v3122
    %v3124 = vmul.f32 %v3121, 1.442695
    %v3125 = vpow.pop %v3124
    %v3126 = vadd.f32 %v3123, %v3125
    %3127 = vadd.xlane.f32.xlu0 %v3126
    %v3128 = vpop.xlane.xlu0 %3127
    %v3129 = vlog2.pop %v3128
    %v3130 = vmul.f32 %v3129, 0.6931472
    %v3131 = vadd.f32 %v3130, %v3119
    %v3132 = vsub.f32 %v3101, %v3131
    %v3133 = vsub.f32 %v3114, %v3131
    %3134 = vst [vmem:[#allocation10] sm:$0xff] %v3132
    %3135 = vst [vmem:[#allocation10 + $0x8] sm:$0xff] %v3133
    // Predicated region
    $region46: #{lstm_predictor_forward.1} parent=1 // pred_check
      _
    $region47: #{lstm_predictor_forward.1} parent=1 // pred_check_branch
      %3137 = sbr.rel (0) target = $region49
    $region48: #{lstm_predictor_forward.1} parent=1 // pred_region
      %3139 = vsyncadd [#allocation6], 0
      %s3141 = sshll.u32 [#allocation10], 4
      %s3142 = int_to_ptr.vmem [resolvable:$true] %s3141
      %s3143 = sshll.u32 %s8, 4
      %s3144 = int_to_ptr.hbm [resolvable:$true] %s3143
      %3146 = dma.vmem_to_hbm [thread:$0]  %s3142, 256, %s3144, [#allocation6]
    $region49: #{lstm_predictor_forward.1} parent=1 // pred_fallthru
      _
    // Predicated region
    $region50: #{lstm_predictor_forward.1} parent=1 // pred_check
      _
    $region51: #{lstm_predictor_forward.1} parent=1 // pred_check_branch
      %3148 = sbr.rel (0) target = $region53
    $region52: #{lstm_predictor_forward.1} parent=1 // pred_region
      %3150 = vsyncadd [#allocation12], 0
      %s3152 = sshll.u32 [#allocation11], 4
      %s3153 = int_to_ptr.vmem [resolvable:$true] %s3152
      %s3154 = sshll.u32 %s9, 4
      %s3155 = int_to_ptr.hbm [resolvable:$true] %s3154
      %3157 = dma.vmem_to_hbm [thread:$0]  %s3153, 16, %s3155, [#allocation12]
    $region53: #{lstm_predictor_forward.1} parent=1 // pred_fallthru
      _
    // Predicated region
    $region54: #{lstm_predictor_forward.1} parent=1 // pred_check
      _
    $region55: #{lstm_predictor_forward.1} parent=1 // pred_check_branch
      %3159 = sbr.rel (0) target = $region57
    $region56: #{lstm_predictor_forward.1} parent=1 // pred_region
      %3161 = vsyncadd [#allocation12], 0
      %s3163 = sshll.u32 [#allocation13], 4
      %s3164 = int_to_ptr.vmem [resolvable:$true] %s3163
      %s3165 = sshll.u32 %s10, 4
      %s3166 = int_to_ptr.hbm [resolvable:$true] %s3165
      %3168 = dma.vmem_to_hbm [thread:$0]  %s3164, 16, %s3166, [#allocation12]
    $region57: #{lstm_predictor_forward.1} parent=1 // pred_fallthru
      _
    // Predicated region
    $region58: #{lstm_predictor_forward.1} parent=1 // pred_check
      _
    $region59: #{lstm_predictor_forward.1} parent=1 // pred_check_branch
      %3170 = sbr.rel (0) target = $region61
    $region60: #{lstm_predictor_forward.1} parent=1 // pred_region
      %3172 = dma.done [#allocation6], 256
    $region61: #{lstm_predictor_forward.1} parent=1 // pred_fallthru
      _
    // Predicated region
    $region62: #{lstm_predictor_forward.1} parent=1 // pred_check
      _
    $region63: #{lstm_predictor_forward.1} parent=1 // pred_check_branch
      %3174 = sbr.rel (0) target = $region65
    $region64: #{lstm_predictor_forward.1} parent=1 // pred_region
      %3176 = dma.done [#allocation12], 16
    $region65: #{lstm_predictor_forward.1} parent=1 // pred_fallthru
      _
    // Predicated region
    $region66: #{lstm_predictor_forward.1} parent=1 // pred_check
      _
    $region67: #{lstm_predictor_forward.1} parent=1 // pred_check_branch
      %3178 = sbr.rel (0) target = $region69
    $region68: #{lstm_predictor_forward.1} parent=1 // pred_region
      %3180 = dma.done [#allocation12], 16
    $region69: #{lstm_predictor_forward.1} parent=1 // pred_fallthru
      _
    %3181 = vsyncpa [#allocation5], 1
    %3182 = vsyncpa [#allocation8], 1
    %3183 = vsyncpa [#allocation6], 1
    %3184 = vsyncpa [#allocation12], 1

</llo_original>
